<compile_context>
chip_gen: v7x
topology: tpu7x:2x2x1
jax: 0.10.0
libtpu: 0.0.40
codegen_flags: <defaults>
</compile_context>

<pallas_src>
import functools

import jax
import jax.numpy as jnp
from jax.experimental import pallas as pl
from jax.experimental.pallas import tpu as pltpu

_PAD = 128  # zero padding (lanes) on each side of the flattened spatial axis; >= W + 1


def _elu(x):
    # torch.nn.ELU(alpha=1): x if x > 0 else exp(x) - 1
    return jnp.where(x > 0, x, jnp.exp(jnp.minimum(x, 0.0)) - 1.0)


def _fused_rk4_kernel(x0_ref, v0_ref, w1x_ref, w1v_ref, b1_ref, w2_ref, b2_ref,
                      w3_ref, b3_ref, mask_ref, out_ref, *, n_steps, width):
    """Integrate one (x_i, v_i) sample from t=0 to t=1 with RK4, fully in VMEM.

    Channel-major, lane-dense layout: activations are (channels, H*W).

    x0_ref, v0_ref : (1, C, HW) f32   initial position / velocity
    w1x, w1v       : (NH, C)    f32   split 1x1-conv weight (x-half / v-half of 2C)
    w2             : (NH, 9*NH) f32   3x3 conv weight, columns ordered (ky, kx, in-ch)
    w3             : (C, NH)    f32   final 1x1 conv weight
    b1, b2, b3     : (NH,1)/(NH,1)/(C,1) f32 biases (lane-broadcast on use)
    mask_ref       : (2, HW)    f32   row-boundary masks for the dx=-1 / dx=+1 taps
    out_ref        : (1, C, HW) f32   position at t=1
    """
    _, C, HW = x0_ref.shape
    NH = w1x_ref.shape[0]
    W = width

    x0 = x0_ref[0]                                            # (C, HW)
    v0 = v0_ref[0]

    def df(x, v):
        """DF(cat(x, v)): 1x1 conv -> ELU -> 3x3 conv (pad 1) -> ELU -> 1x1 conv."""
        # fc1: channel concat folded into split weights (no concatenate on the state).
        h1 = (jnp.dot(w1x_ref[...], x, preferred_element_type=jnp.float32)
              + jnp.dot(w1v_ref[...], v, preferred_element_type=jnp.float32)
              + b1_ref[...])
        h1 = _elu(h1)

        # fc2: 3x3 conv, padding=1, on the flattened spatial (lane) axis.
        # Zero-extend h1 once (lane-tile-aligned concat); each tap is then a static
        # lane-shifted slice (out-of-image rows read the zero pad), and the dx=+/-1
        # taps are masked where they would cross a row boundary.
        zpad = jnp.zeros((NH, _PAD), jnp.float32)
        h1w = jnp.concatenate([zpad, h1, zpad], axis=1)       # (NH, _PAD + HW + _PAD)
        mask_l = mask_ref[0:1, :]                             # (1, HW): valid for dx=-1
        mask_r = mask_ref[1:2, :]                             # (1, HW): valid for dx=+1
        taps = []
        for ky in range(3):
            for kx in range(3):
                s = (ky - 1) * W + (kx - 1)
                t = h1w[:, _PAD + s:_PAD + s + HW]            # tap[:, p] = h1pad[:, p+s]
                if kx == 0:
                    t = t * mask_l
                elif kx == 2:
                    t = t * mask_r
                taps.append(t)
        cols = jnp.concatenate(taps, axis=0)                  # (9*NH, HW), sublane-aligned
        h2 = jnp.dot(w2_ref[...], cols,
                     preferred_element_type=jnp.float32) + b2_ref[...]
        h2 = _elu(h2)

        # fc3: 1x1 conv -> acceleration.
        return jnp.dot(w3_ref[...], h2,
                       preferred_element_type=jnp.float32) + b3_ref[...]

    dt = 1.0 / n_steps
    half_dt = 0.5 * dt
    sixth_dt = dt / 6.0

    def rk4_step(_, carry):
        x, v = carry
        # dz/dt = [v ; DF(x, v)]
        k1x, k1v = v, df(x, v)
        x2, v2 = x + half_dt * k1x, v + half_dt * k1v
        k2x, k2v = v2, df(x2, v2)
        x3, v3 = x + half_dt * k2x, v + half_dt * k2v
        k3x, k3v = v3, df(x3, v3)
        x4, v4 = x + dt * k3x, v + dt * k3v
        k4x, k4v = v4, df(x4, v4)
        xn = x + sixth_dt * (k1x + 2.0 * k2x + 2.0 * k3x + k4x)
        vn = v + sixth_dt * (k1v + 2.0 * k2v + 2.0 * k3v + k4v)
        return xn, vn

    xf, _ = jax.lax.fori_loop(0, n_steps, rk4_step, (x0, v0))

    # ODEBlock.forward returns the position half of the state at t=1.
    out_ref[0] = xf


def ode_block_forward(x_nchw, params, n_steps=8):
    """ODEBlock.forward: integrate z' = [v; DF(x,v)] from t=0 to t=1 and return the
    position half of the final state. Input/output are NCHW like PyTorch."""
    w1, b1, w2, b2, w3, b3 = params
    B2, C, H, W = x_nchw.shape
    B = B2 // 2
    NH = w1.shape[1]
    HW = H * W
    assert W + 1 <= _PAD, "spatial width too large for the shift padding"

    # Lane-dense HBM layout: NCHW with H,W flattened -> (batch, C, HW); no transposes.
    z0 = x_nchw.reshape(B2, C, HW).astype(jnp.float32)
    x0s = z0[:B]                                               # positions  (B, C, HW)
    v0s = z0[B:]                                               # velocities (B, C, HW)

    # Channel-major weights (compute h = W^T @ act). w2: (ky,kx,in,out) -> (out, 9*in).
    w1xT = jnp.transpose(w1[:C]).astype(jnp.float32)           # (NH, C)
    w1vT = jnp.transpose(w1[C:]).astype(jnp.float32)           # (NH, C)
    w2T = jnp.transpose(w2, (3, 0, 1, 2)).reshape(NH, 9 * NH).astype(jnp.float32)
    w3T = jnp.transpose(w3).astype(jnp.float32)                # (C, NH)
    b1c = b1.reshape(NH, 1).astype(jnp.float32)
    b2c = b2.reshape(NH, 1).astype(jnp.float32)
    b3c = b3.reshape(C, 1).astype(jnp.float32)

    # Row-boundary masks for the dx = -1 / dx = +1 conv taps (indexed by output w).
    wcoord = jnp.arange(HW, dtype=jnp.int32) % W
    masks = jnp.stack([(wcoord >= 1), (wcoord <= W - 2)], axis=0).astype(jnp.float32)

    n_evals = n_steps * 4
    flops = 2 * B * n_evals * HW * (2 * C * NH + 9 * NH * NH + NH * C)
    transcendentals = B * n_evals * HW * 2 * NH                # two ELU layers per eval
    bytes_accessed = 4 * (x0s.size + v0s.size + B * C * HW
                          + w1xT.size + w1vT.size + w2T.size + w3T.size
                          + b1c.size + b2c.size + b3c.size + masks.size)

    kernel = functools.partial(_fused_rk4_kernel, n_steps=n_steps, width=W)

    out = pl.pallas_call(
        kernel,
        out_shape=jax.ShapeDtypeStruct((B, C, HW), jnp.float32),
        grid=(B,),
        in_specs=[
            pl.BlockSpec((1, C, HW), lambda b: (b, 0, 0)),      # x0
            pl.BlockSpec((1, C, HW), lambda b: (b, 0, 0)),      # v0
            pl.BlockSpec((NH, C), lambda b: (0, 0)),            # w1x^T
            pl.BlockSpec((NH, C), lambda b: (0, 0)),            # w1v^T
            pl.BlockSpec((NH, 1), lambda b: (0, 0)),            # b1
            pl.BlockSpec((NH, 9 * NH), lambda b: (0, 0)),       # w2^T (tap-major cols)
            pl.BlockSpec((NH, 1), lambda b: (0, 0)),            # b2
            pl.BlockSpec((C, NH), lambda b: (0, 0)),            # w3^T
            pl.BlockSpec((C, 1), lambda b: (0, 0)),             # b3
            pl.BlockSpec((2, HW), lambda b: (0, 0)),            # row-boundary masks
        ],
        out_specs=pl.BlockSpec((1, C, HW), lambda b: (b, 0, 0)),
        compiler_params=pltpu.CompilerParams(
            dimension_semantics=("parallel",),
        ),
        cost_estimate=pl.CostEstimate(
            flops=flops, transcendentals=transcendentals, bytes_accessed=bytes_accessed),
    )(x0s, v0s, w1xT, w1vT, b1c, w2T, b2c, w3T, b3c, masks)

    return out.reshape(B, C, H, W)                              # back to NCHW


def ode_block_reference(x_nchw, params, n_steps=8):
    """Pure-JAX (f32, HIGHEST precision) reference of the same fixed-step RK4 forward."""
    w1, b1, w2, b2, w3, b3 = params
    B2, C, H, W = x_nchw.shape
    B = B2 // 2
    NH = w1.shape[1]
    hi = jax.lax.Precision.HIGHEST
    dn = ('NCHW', 'OIHW', 'NCHW')
    wc1 = jnp.transpose(w1).reshape(NH, 2 * C, 1, 1)
    wc2 = jnp.transpose(w2, (3, 2, 0, 1))                       # (out, in, ky, kx)
    wc3 = jnp.transpose(w3).reshape(C, NH, 1, 1)

    def conv(x, w, pad):
        return jax.lax.conv_general_dilated(x, w, (1, 1), pad,
                                            dimension_numbers=dn, precision=hi)

    def df(z):
        x, v = z[:B], z[B:]
        h = jnp.concatenate([x, v], axis=1)
        h = _elu(conv(h, wc1, 'VALID') + b1.reshape(1, NH, 1, 1))
        h = _elu(conv(h, wc2, ((1, 1), (1, 1))) + b2.reshape(1, NH, 1, 1))
        a = conv(h, wc3, 'VALID') + b3.reshape(1, C, 1, 1)
        return jnp.concatenate([v, a], axis=0)

    z = x_nchw.astype(jnp.float32)
    dt = 1.0 / n_steps
    for _ in range(n_steps):
        k1 = df(z)
        k2 = df(z + 0.5 * dt * k1)
        k3 = df(z + 0.5 * dt * k2)
        k4 = df(z + dt * k3)
        z = z + (dt / 6.0) * (k1 + 2.0 * k2 + 2.0 * k3 + k4)
    return z[:B]


def init_params(key, in_channels, nhidden):
    """Deterministic synthetic parameters (shapes match the PyTorch convs)."""
    k1, k2, k3, k4, k5, k6 = jax.random.split(key, 6)
    c2 = 2 * in_channels
    s1 = 1.0 / jnp.sqrt(c2 * 1.0)
    s2 = 1.0 / jnp.sqrt(nhidden * 9.0)
    s3 = 1.0 / jnp.sqrt(nhidden * 1.0)
    w1 = s1 * jax.random.normal(k1, (c2, nhidden), jnp.float32)             # (in, out)
    b1 = s1 * jax.random.normal(k2, (nhidden,), jnp.float32)
    w2 = s2 * jax.random.normal(k3, (3, 3, nhidden, nhidden), jnp.float32)  # (ky,kx,in,out)
    b2 = s2 * jax.random.normal(k4, (nhidden,), jnp.float32)
    w3 = s3 * jax.random.normal(k5, (nhidden, in_channels), jnp.float32)    # (in, out)
    b3 = s3 * jax.random.normal(k6, (in_channels,), jnp.float32)
    return (w1, b1, w2, b2, w3, b3)


if __name__ == "__main__":
    key = jax.random.PRNGKey(0)
    k_x, k_p = jax.random.split(key)

    B = 2            # number of "position" samples; total ODE state batch = 2B
    C = 4            # in_channels
    H = W = 16       # spatial
    NH = 16          # hidden conv channels

    # x holds positions and velocities stacked on the batch axis (len(x) = 2B), NCHW.
    x = jax.random.normal(k_x, (2 * B, C, H, W), jnp.float32)
    params = init_params(k_p, C, NH)

    fwd = jax.jit(lambda xx: ode_block_forward(xx, params))
    out = fwd(x)
    jax.block_until_ready(out)

    assert out.shape == (B, C, H, W), out.shape
    assert bool(jnp.all(jnp.isfinite(out)))

    ref = ode_block_reference(x, params)
    err = float(jnp.max(jnp.abs(out - ref)))
    # f32 matmul operands + f32 elementwise math: expected max abs diff << 5e-2.
    assert err < 5e-2, f"max |pallas - reference| too large: {err}"

    print("KERNEL_OK")
</pallas_src>

<mosaic_0001>
module attributes {stable_mosaic.version = 11 : i64} {
  func.func @_fused_rk4_kernel(%arg0: i32, %arg1: memref<1x4x256xf32, #tpu.memory_space<vmem>>, %arg2: memref<1x4x256xf32, #tpu.memory_space<vmem>>, %arg3: memref<16x4xf32, #tpu.memory_space<vmem>>, %arg4: memref<16x4xf32, #tpu.memory_space<vmem>>, %arg5: memref<16x1xf32, #tpu.memory_space<vmem>>, %arg6: memref<16x144xf32, #tpu.memory_space<vmem>>, %arg7: memref<16x1xf32, #tpu.memory_space<vmem>>, %arg8: memref<4x16xf32, #tpu.memory_space<vmem>>, %arg9: memref<4x1xf32, #tpu.memory_space<vmem>>, %arg10: memref<2x256xf32, #tpu.memory_space<vmem>>, %arg11: memref<1x4x256xf32, #tpu.memory_space<vmem>>) attributes {dimension_semantics = [#tpu.dimension_semantics<parallel>], iteration_bounds = array<i64: 2>, scalar_prefetch = 0 : i64, scratch_operands = 0 : i64, tpu.core_type = #tpu.core_type<tc>, window_params = [{transform_indices = @transform_0, window_bounds = array<i64: 1, 4, 256>}, {transform_indices = @transform_1, window_bounds = array<i64: 1, 4, 256>}, {pipeline_mode = #tpu.pipeline_mode<synchronous>, transform_indices = @transform_2, window_bounds = array<i64: 16, 4>}, {pipeline_mode = #tpu.pipeline_mode<synchronous>, transform_indices = @transform_3, window_bounds = array<i64: 16, 4>}, {pipeline_mode = #tpu.pipeline_mode<synchronous>, transform_indices = @transform_4, window_bounds = array<i64: 16, 1>}, {pipeline_mode = #tpu.pipeline_mode<synchronous>, transform_indices = @transform_5, window_bounds = array<i64: 16, 144>}, {pipeline_mode = #tpu.pipeline_mode<synchronous>, transform_indices = @transform_6, window_bounds = array<i64: 16, 1>}, {pipeline_mode = #tpu.pipeline_mode<synchronous>, transform_indices = @transform_7, window_bounds = array<i64: 4, 16>}, {pipeline_mode = #tpu.pipeline_mode<synchronous>, transform_indices = @transform_8, window_bounds = array<i64: 4, 1>}, {pipeline_mode = #tpu.pipeline_mode<synchronous>, transform_indices = @transform_9, window_bounds = array<i64: 2, 256>}, {transform_indices = @transform_10, window_bounds = array<i64: 1, 4, 256>}]} {
    %c0 = arith.constant 0 : index
    %c0_0 = arith.constant 0 : index
    %c0_1 = arith.constant 0 : index
    %0 = vector.load %arg1[%c0, %c0_0, %c0_1] : memref<1x4x256xf32, #tpu.memory_space<vmem>>, vector<1x4x256xf32>
    %1 = vector.shape_cast %0 : vector<1x4x256xf32> to vector<4x256xf32>
    %c0_2 = arith.constant 0 : index
    %c0_3 = arith.constant 0 : index
    %c0_4 = arith.constant 0 : index
    %2 = vector.load %arg2[%c0_2, %c0_3, %c0_4] : memref<1x4x256xf32, #tpu.memory_space<vmem>>, vector<1x4x256xf32>
    %3 = vector.shape_cast %2 : vector<1x4x256xf32> to vector<4x256xf32>
    %c0_i32 = arith.constant 0 : i32
    %c8_i32 = arith.constant 8 : i32
    %4 = arith.addi %c0_i32, %c8_i32 : i32
    %c1_i32 = arith.constant 1 : i32
    %5:2 = scf.for %arg12 = %c0_i32 to %4 step %c1_i32 iter_args(%arg13 = %1, %arg14 = %3) -> (vector<4x256xf32>, vector<4x256xf32>)  : i32 {
      %c0_8 = arith.constant 0 : index
      %c0_9 = arith.constant 0 : index
      %9 = vector.load %arg3[%c0_8, %c0_9] : memref<16x4xf32, #tpu.memory_space<vmem>>, vector<16x4xf32>
      %cst = arith.constant dense<0.000000e+00> : vector<16x256xf32>
      %10 = tpu.matmul %9, %arg13, %cst {dimension_numbers = #tpu.dot_dimension_numbers<[1], [0], [0], [1], [0, 0, 1, 1], [], []>} : vector<16x4xf32>, vector<4x256xf32>, vector<16x256xf32> -> vector<16x256xf32>
      %c0_10 = arith.constant 0 : index
      %c0_11 = arith.constant 0 : index
      %11 = vector.load %arg4[%c0_10, %c0_11] : memref<16x4xf32, #tpu.memory_space<vmem>>, vector<16x4xf32>
      %cst_12 = arith.constant dense<0.000000e+00> : vector<16x256xf32>
      %12 = tpu.matmul %11, %arg14, %cst_12 {dimension_numbers = #tpu.dot_dimension_numbers<[1], [0], [0], [1], [0, 0, 1, 1], [], []>} : vector<16x4xf32>, vector<4x256xf32>, vector<16x256xf32> -> vector<16x256xf32>
      %13 = arith.addf %10, %12 : vector<16x256xf32>
      %c0_13 = arith.constant 0 : index
      %c0_14 = arith.constant 0 : index
      %14 = vector.load %arg5[%c0_13, %c0_14] : memref<16x1xf32, #tpu.memory_space<vmem>>, vector<16x1xf32>
      %15 = vector.broadcast %14 : vector<16x1xf32> to vector<16x256xf32>
      %16 = arith.addf %13, %15 : vector<16x256xf32>
      %cst_15 = arith.constant 0.000000e+00 : f32
      %17 = vector.broadcast %cst_15 : f32 to vector<16x256xf32>
      %18 = arith.cmpf ogt, %16, %17 : vector<16x256xf32>
      %cst_16 = arith.constant 0.000000e+00 : f32
      %19 = vector.broadcast %cst_16 : f32 to vector<16x256xf32>
      %20 = arith.minimumf %16, %19 : vector<16x256xf32>
      %21 = math.exp %20 : vector<16x256xf32>
      %cst_17 = arith.constant 1.000000e+00 : f32
      %22 = vector.broadcast %cst_17 : f32 to vector<16x256xf32>
      %23 = arith.subf %21, %22 : vector<16x256xf32>
      %24 = arith.select %18, %16, %23 : vector<16x256xi1>, vector<16x256xf32>
      %cst_18 = arith.constant 0.000000e+00 : f32
      %25 = vector.broadcast %cst_18 : f32 to vector<16x128xf32>
      %26 = tpu.concatenate %25, %24, %25 in 1 : vector<16x128xf32>, vector<16x256xf32>, vector<16x128xf32> -> vector<16x512xf32>
      %c0_19 = arith.constant 0 : index
      %c0_20 = arith.constant 0 : index
      %27 = vector.load %arg10[%c0_19, %c0_20] : memref<2x256xf32, #tpu.memory_space<vmem>>, vector<1x256xf32>
      %c1 = arith.constant 1 : index
      %c0_21 = arith.constant 0 : index
      %28 = vector.load %arg10[%c1, %c0_21] : memref<2x256xf32, #tpu.memory_space<vmem>>, vector<1x256xf32>
      %29 = vector.extract_strided_slice %26 {offsets = [0, 111], sizes = [16, 256], strides = [1, 1]} : vector<16x512xf32> to vector<16x256xf32>
      %30 = vector.broadcast %27 : vector<1x256xf32> to vector<16x256xf32>
      %31 = arith.mulf %29, %30 : vector<16x256xf32>
      %32 = vector.extract_strided_slice %26 {offsets = [0, 112], sizes = [16, 256], strides = [1, 1]} : vector<16x512xf32> to vector<16x256xf32>
      %33 = vector.extract_strided_slice %26 {offsets = [0, 113], sizes = [16, 256], strides = [1, 1]} : vector<16x512xf32> to vector<16x256xf32>
      %34 = vector.broadcast %28 : vector<1x256xf32> to vector<16x256xf32>
      %35 = arith.mulf %33, %34 : vector<16x256xf32>
      %36 = vector.extract_strided_slice %26 {offsets = [0, 127], sizes = [16, 256], strides = [1, 1]} : vector<16x512xf32> to vector<16x256xf32>
      %37 = vector.broadcast %27 : vector<1x256xf32> to vector<16x256xf32>
      %38 = arith.mulf %36, %37 : vector<16x256xf32>
      %39 = vector.extract_strided_slice %26 {offsets = [0, 128], sizes = [16, 256], strides = [1, 1]} : vector<16x512xf32> to vector<16x256xf32>
      %40 = vector.extract_strided_slice %26 {offsets = [0, 129], sizes = [16, 256], strides = [1, 1]} : vector<16x512xf32> to vector<16x256xf32>
      %41 = vector.broadcast %28 : vector<1x256xf32> to vector<16x256xf32>
      %42 = arith.mulf %40, %41 : vector<16x256xf32>
      %43 = vector.extract_strided_slice %26 {offsets = [0, 143], sizes = [16, 256], strides = [1, 1]} : vector<16x512xf32> to vector<16x256xf32>
      %44 = vector.broadcast %27 : vector<1x256xf32> to vector<16x256xf32>
      %45 = arith.mulf %43, %44 : vector<16x256xf32>
      %46 = vector.extract_strided_slice %26 {offsets = [0, 144], sizes = [16, 256], strides = [1, 1]} : vector<16x512xf32> to vector<16x256xf32>
      %47 = vector.extract_strided_slice %26 {offsets = [0, 145], sizes = [16, 256], strides = [1, 1]} : vector<16x512xf32> to vector<16x256xf32>
      %48 = vector.broadcast %28 : vector<1x256xf32> to vector<16x256xf32>
      %49 = arith.mulf %47, %48 : vector<16x256xf32>
      %50 = tpu.concatenate %31, %32, %35, %38, %39, %42, %45, %46, %49 in 0 : vector<16x256xf32>, vector<16x256xf32>, vector<16x256xf32>, vector<16x256xf32>, vector<16x256xf32>, vector<16x256xf32>, vector<16x256xf32>, vector<16x256xf32>, vector<16x256xf32> -> vector<144x256xf32>
      %c0_22 = arith.constant 0 : index
      %c0_23 = arith.constant 0 : index
      %51 = vector.load %arg6[%c0_22, %c0_23] : memref<16x144xf32, #tpu.memory_space<vmem>>, vector<16x144xf32>
      %cst_24 = arith.constant dense<0.000000e+00> : vector<16x256xf32>
      %52 = tpu.matmul %51, %50, %cst_24 {dimension_numbers = #tpu.dot_dimension_numbers<[1], [0], [0], [1], [0, 0, 1, 1], [], []>} : vector<16x144xf32>, vector<144x256xf32>, vector<16x256xf32> -> vector<16x256xf32>
      %c0_25 = arith.constant 0 : index
      %c0_26 = arith.constant 0 : index
      %53 = vector.load %arg7[%c0_25, %c0_26] : memref<16x1xf32, #tpu.memory_space<vmem>>, vector<16x1xf32>
      %54 = vector.broadcast %53 : vector<16x1xf32> to vector<16x256xf32>
      %55 = arith.addf %52, %54 : vector<16x256xf32>
      %cst_27 = arith.constant 0.000000e+00 : f32
      %56 = vector.broadcast %cst_27 : f32 to vector<16x256xf32>
      %57 = arith.cmpf ogt, %55, %56 : vector<16x256xf32>
      %cst_28 = arith.constant 0.000000e+00 : f32
      %58 = vector.broadcast %cst_28 : f32 to vector<16x256xf32>
      %59 = arith.minimumf %55, %58 : vector<16x256xf32>
      %60 = math.exp %59 : vector<16x256xf32>
      %cst_29 = arith.constant 1.000000e+00 : f32
      %61 = vector.broadcast %cst_29 : f32 to vector<16x256xf32>
      %62 = arith.subf %60, %61 : vector<16x256xf32>
      %63 = arith.select %57, %55, %62 : vector<16x256xi1>, vector<16x256xf32>
      %c0_30 = arith.constant 0 : index
      %c0_31 = arith.constant 0 : index
      %64 = vector.load %arg8[%c0_30, %c0_31] : memref<4x16xf32, #tpu.memory_space<vmem>>, vector<4x16xf32>
      %cst_32 = arith.constant dense<0.000000e+00> : vector<4x256xf32>
      %65 = tpu.matmul %64, %63, %cst_32 {dimension_numbers = #tpu.dot_dimension_numbers<[1], [0], [0], [1], [0, 0, 1, 1], [], []>} : vector<4x16xf32>, vector<16x256xf32>, vector<4x256xf32> -> vector<4x256xf32>
      %c0_33 = arith.constant 0 : index
      %c0_34 = arith.constant 0 : index
      %66 = vector.load %arg9[%c0_33, %c0_34] : memref<4x1xf32, #tpu.memory_space<vmem>>, vector<4x1xf32>
      %67 = vector.broadcast %66 : vector<4x1xf32> to vector<4x256xf32>
      %68 = arith.addf %65, %67 : vector<4x256xf32>
      %cst_35 = arith.constant 6.250000e-02 : f32
      %69 = vector.broadcast %cst_35 : f32 to vector<4x256xf32>
      %70 = arith.mulf %69, %arg14 : vector<4x256xf32>
      %71 = arith.addf %arg13, %70 : vector<4x256xf32>
      %cst_36 = arith.constant 6.250000e-02 : f32
      %72 = vector.broadcast %cst_36 : f32 to vector<4x256xf32>
      %73 = arith.mulf %72, %68 : vector<4x256xf32>
      %74 = arith.addf %arg14, %73 : vector<4x256xf32>
      %c0_37 = arith.constant 0 : index
      %c0_38 = arith.constant 0 : index
      %75 = vector.load %arg3[%c0_37, %c0_38] : memref<16x4xf32, #tpu.memory_space<vmem>>, vector<16x4xf32>
      %cst_39 = arith.constant dense<0.000000e+00> : vector<16x256xf32>
      %76 = tpu.matmul %75, %71, %cst_39 {dimension_numbers = #tpu.dot_dimension_numbers<[1], [0], [0], [1], [0, 0, 1, 1], [], []>} : vector<16x4xf32>, vector<4x256xf32>, vector<16x256xf32> -> vector<16x256xf32>
      %c0_40 = arith.constant 0 : index
      %c0_41 = arith.constant 0 : index
      %77 = vector.load %arg4[%c0_40, %c0_41] : memref<16x4xf32, #tpu.memory_space<vmem>>, vector<16x4xf32>
      %cst_42 = arith.constant dense<0.000000e+00> : vector<16x256xf32>
      %78 = tpu.matmul %77, %74, %cst_42 {dimension_numbers = #tpu.dot_dimension_numbers<[1], [0], [0], [1], [0, 0, 1, 1], [], []>} : vector<16x4xf32>, vector<4x256xf32>, vector<16x256xf32> -> vector<16x256xf32>
      %79 = arith.addf %76, %78 : vector<16x256xf32>
      %c0_43 = arith.constant 0 : index
      %c0_44 = arith.constant 0 : index
      %80 = vector.load %arg5[%c0_43, %c0_44] : memref<16x1xf32, #tpu.memory_space<vmem>>, vector<16x1xf32>
      %81 = vector.broadcast %80 : vector<16x1xf32> to vector<16x256xf32>
      %82 = arith.addf %79, %81 : vector<16x256xf32>
      %cst_45 = arith.constant 0.000000e+00 : f32
      %83 = vector.broadcast %cst_45 : f32 to vector<16x256xf32>
      %84 = arith.cmpf ogt, %82, %83 : vector<16x256xf32>
      %cst_46 = arith.constant 0.000000e+00 : f32
      %85 = vector.broadcast %cst_46 : f32 to vector<16x256xf32>
      %86 = arith.minimumf %82, %85 : vector<16x256xf32>
      %87 = math.exp %86 : vector<16x256xf32>
      %cst_47 = arith.constant 1.000000e+00 : f32
      %88 = vector.broadcast %cst_47 : f32 to vector<16x256xf32>
      %89 = arith.subf %87, %88 : vector<16x256xf32>
      %90 = arith.select %84, %82, %89 : vector<16x256xi1>, vector<16x256xf32>
      %cst_48 = arith.constant 0.000000e+00 : f32
      %91 = vector.broadcast %cst_48 : f32 to vector<16x128xf32>
      %92 = tpu.concatenate %91, %90, %91 in 1 : vector<16x128xf32>, vector<16x256xf32>, vector<16x128xf32> -> vector<16x512xf32>
      %c0_49 = arith.constant 0 : index
      %c0_50 = arith.constant 0 : index
      %93 = vector.load %arg10[%c0_49, %c0_50] : memref<2x256xf32, #tpu.memory_space<vmem>>, vector<1x256xf32>
      %c1_51 = arith.constant 1 : index
      %c0_52 = arith.constant 0 : index
      %94 = vector.load %arg10[%c1_51, %c0_52] : memref<2x256xf32, #tpu.memory_space<vmem>>, vector<1x256xf32>
      %95 = vector.extract_strided_slice %92 {offsets = [0, 111], sizes = [16, 256], strides = [1, 1]} : vector<16x512xf32> to vector<16x256xf32>
      %96 = vector.broadcast %93 : vector<1x256xf32> to vector<16x256xf32>
      %97 = arith.mulf %95, %96 : vector<16x256xf32>
      %98 = vector.extract_strided_slice %92 {offsets = [0, 112], sizes = [16, 256], strides = [1, 1]} : vector<16x512xf32> to vector<16x256xf32>
      %99 = vector.extract_strided_slice %92 {offsets = [0, 113], sizes = [16, 256], strides = [1, 1]} : vector<16x512xf32> to vector<16x256xf32>
      %100 = vector.broadcast %94 : vector<1x256xf32> to vector<16x256xf32>
      %101 = arith.mulf %99, %100 : vector<16x256xf32>
      %102 = vector.extract_strided_slice %92 {offsets = [0, 127], sizes = [16, 256], strides = [1, 1]} : vector<16x512xf32> to vector<16x256xf32>
      %103 = vector.broadcast %93 : vector<1x256xf32> to vector<16x256xf32>
      %104 = arith.mulf %102, %103 : vector<16x256xf32>
      %105 = vector.extract_strided_slice %92 {offsets = [0, 128], sizes = [16, 256], strides = [1, 1]} : vector<16x512xf32> to vector<16x256xf32>
      %106 = vector.extract_strided_slice %92 {offsets = [0, 129], sizes = [16, 256], strides = [1, 1]} : vector<16x512xf32> to vector<16x256xf32>
      %107 = vector.broadcast %94 : vector<1x256xf32> to vector<16x256xf32>
      %108 = arith.mulf %106, %107 : vector<16x256xf32>
      %109 = vector.extract_strided_slice %92 {offsets = [0, 143], sizes = [16, 256], strides = [1, 1]} : vector<16x512xf32> to vector<16x256xf32>
      %110 = vector.broadcast %93 : vector<1x256xf32> to vector<16x256xf32>
      %111 = arith.mulf %109, %110 : vector<16x256xf32>
      %112 = vector.extract_strided_slice %92 {offsets = [0, 144], sizes = [16, 256], strides = [1, 1]} : vector<16x512xf32> to vector<16x256xf32>
      %113 = vector.extract_strided_slice %92 {offsets = [0, 145], sizes = [16, 256], strides = [1, 1]} : vector<16x512xf32> to vector<16x256xf32>
      %114 = vector.broadcast %94 : vector<1x256xf32> to vector<16x256xf32>
      %115 = arith.mulf %113, %114 : vector<16x256xf32>
      %116 = tpu.concatenate %97, %98, %101, %104, %105, %108, %111, %112, %115 in 0 : vector<16x256xf32>, vector<16x256xf32>, vector<16x256xf32>, vector<16x256xf32>, vector<16x256xf32>, vector<16x256xf32>, vector<16x256xf32>, vector<16x256xf32>, vector<16x256xf32> -> vector<144x256xf32>
      %c0_53 = arith.constant 0 : index
      %c0_54 = arith.constant 0 : index
      %117 = vector.load %arg6[%c0_53, %c0_54] : memref<16x144xf32, #tpu.memory_space<vmem>>, vector<16x144xf32>
      %cst_55 = arith.constant dense<0.000000e+00> : vector<16x256xf32>
      %118 = tpu.matmul %117, %116, %cst_55 {dimension_numbers = #tpu.dot_dimension_numbers<[1], [0], [0], [1], [0, 0, 1, 1], [], []>} : vector<16x144xf32>, vector<144x256xf32>, vector<16x256xf32> -> vector<16x256xf32>
      %c0_56 = arith.constant 0 : index
      %c0_57 = arith.constant 0 : index
      %119 = vector.load %arg7[%c0_56, %c0_57] : memref<16x1xf32, #tpu.memory_space<vmem>>, vector<16x1xf32>
      %120 = vector.broadcast %119 : vector<16x1xf32> to vector<16x256xf32>
      %121 = arith.addf %118, %120 : vector<16x256xf32>
      %cst_58 = arith.constant 0.000000e+00 : f32
      %122 = vector.broadcast %cst_58 : f32 to vector<16x256xf32>
      %123 = arith.cmpf ogt, %121, %122 : vector<16x256xf32>
      %cst_59 = arith.constant 0.000000e+00 : f32
      %124 = vector.broadcast %cst_59 : f32 to vector<16x256xf32>
      %125 = arith.minimumf %121, %124 : vector<16x256xf32>
      %126 = math.exp %125 : vector<16x256xf32>
      %cst_60 = arith.constant 1.000000e+00 : f32
      %127 = vector.broadcast %cst_60 : f32 to vector<16x256xf32>
      %128 = arith.subf %126, %127 : vector<16x256xf32>
      %129 = arith.select %123, %121, %128 : vector<16x256xi1>, vector<16x256xf32>
      %c0_61 = arith.constant 0 : index
      %c0_62 = arith.constant 0 : index
      %130 = vector.load %arg8[%c0_61, %c0_62] : memref<4x16xf32, #tpu.memory_space<vmem>>, vector<4x16xf32>
      %cst_63 = arith.constant dense<0.000000e+00> : vector<4x256xf32>
      %131 = tpu.matmul %130, %129, %cst_63 {dimension_numbers = #tpu.dot_dimension_numbers<[1], [0], [0], [1], [0, 0, 1, 1], [], []>} : vector<4x16xf32>, vector<16x256xf32>, vector<4x256xf32> -> vector<4x256xf32>
      %c0_64 = arith.constant 0 : index
      %c0_65 = arith.constant 0 : index
      %132 = vector.load %arg9[%c0_64, %c0_65] : memref<4x1xf32, #tpu.memory_space<vmem>>, vector<4x1xf32>
      %133 = vector.broadcast %132 : vector<4x1xf32> to vector<4x256xf32>
      %134 = arith.addf %131, %133 : vector<4x256xf32>
      %cst_66 = arith.constant 6.250000e-02 : f32
      %135 = vector.broadcast %cst_66 : f32 to vector<4x256xf32>
      %136 = arith.mulf %135, %74 : vector<4x256xf32>
      %137 = arith.addf %arg13, %136 : vector<4x256xf32>
      %cst_67 = arith.constant 6.250000e-02 : f32
      %138 = vector.broadcast %cst_67 : f32 to vector<4x256xf32>
      %139 = arith.mulf %138, %134 : vector<4x256xf32>
      %140 = arith.addf %arg14, %139 : vector<4x256xf32>
      %c0_68 = arith.constant 0 : index
      %c0_69 = arith.constant 0 : index
      %141 = vector.load %arg3[%c0_68, %c0_69] : memref<16x4xf32, #tpu.memory_space<vmem>>, vector<16x4xf32>
      %cst_70 = arith.constant dense<0.000000e+00> : vector<16x256xf32>
      %142 = tpu.matmul %141, %137, %cst_70 {dimension_numbers = #tpu.dot_dimension_numbers<[1], [0], [0], [1], [0, 0, 1, 1], [], []>} : vector<16x4xf32>, vector<4x256xf32>, vector<16x256xf32> -> vector<16x256xf32>
      %c0_71 = arith.constant 0 : index
      %c0_72 = arith.constant 0 : index
      %143 = vector.load %arg4[%c0_71, %c0_72] : memref<16x4xf32, #tpu.memory_space<vmem>>, vector<16x4xf32>
      %cst_73 = arith.constant dense<0.000000e+00> : vector<16x256xf32>
      %144 = tpu.matmul %143, %140, %cst_73 {dimension_numbers = #tpu.dot_dimension_numbers<[1], [0], [0], [1], [0, 0, 1, 1], [], []>} : vector<16x4xf32>, vector<4x256xf32>, vector<16x256xf32> -> vector<16x256xf32>
      %145 = arith.addf %142, %144 : vector<16x256xf32>
      %c0_74 = arith.constant 0 : index
      %c0_75 = arith.constant 0 : index
      %146 = vector.load %arg5[%c0_74, %c0_75] : memref<16x1xf32, #tpu.memory_space<vmem>>, vector<16x1xf32>
      %147 = vector.broadcast %146 : vector<16x1xf32> to vector<16x256xf32>
      %148 = arith.addf %145, %147 : vector<16x256xf32>
      %cst_76 = arith.constant 0.000000e+00 : f32
      %149 = vector.broadcast %cst_76 : f32 to vector<16x256xf32>
      %150 = arith.cmpf ogt, %148, %149 : vector<16x256xf32>
      %cst_77 = arith.constant 0.000000e+00 : f32
      %151 = vector.broadcast %cst_77 : f32 to vector<16x256xf32>
      %152 = arith.minimumf %148, %151 : vector<16x256xf32>
      %153 = math.exp %152 : vector<16x256xf32>
      %cst_78 = arith.constant 1.000000e+00 : f32
      %154 = vector.broadcast %cst_78 : f32 to vector<16x256xf32>
      %155 = arith.subf %153, %154 : vector<16x256xf32>
      %156 = arith.select %150, %148, %155 : vector<16x256xi1>, vector<16x256xf32>
      %cst_79 = arith.constant 0.000000e+00 : f32
      %157 = vector.broadcast %cst_79 : f32 to vector<16x128xf32>
      %158 = tpu.concatenate %157, %156, %157 in 1 : vector<16x128xf32>, vector<16x256xf32>, vector<16x128xf32> -> vector<16x512xf32>
      %c0_80 = arith.constant 0 : index
      %c0_81 = arith.constant 0 : index
      %159 = vector.load %arg10[%c0_80, %c0_81] : memref<2x256xf32, #tpu.memory_space<vmem>>, vector<1x256xf32>
      %c1_82 = arith.constant 1 : index
      %c0_83 = arith.constant 0 : index
      %160 = vector.load %arg10[%c1_82, %c0_83] : memref<2x256xf32, #tpu.memory_space<vmem>>, vector<1x256xf32>
      %161 = vector.extract_strided_slice %158 {offsets = [0, 111], sizes = [16, 256], strides = [1, 1]} : vector<16x512xf32> to vector<16x256xf32>
      %162 = vector.broadcast %159 : vector<1x256xf32> to vector<16x256xf32>
      %163 = arith.mulf %161, %162 : vector<16x256xf32>
      %164 = vector.extract_strided_slice %158 {offsets = [0, 112], sizes = [16, 256], strides = [1, 1]} : vector<16x512xf32> to vector<16x256xf32>
      %165 = vector.extract_strided_slice %158 {offsets = [0, 113], sizes = [16, 256], strides = [1, 1]} : vector<16x512xf32> to vector<16x256xf32>
      %166 = vector.broadcast %160 : vector<1x256xf32> to vector<16x256xf32>
      %167 = arith.mulf %165, %166 : vector<16x256xf32>
      %168 = vector.extract_strided_slice %158 {offsets = [0, 127], sizes = [16, 256], strides = [1, 1]} : vector<16x512xf32> to vector<16x256xf32>
      %169 = vector.broadcast %159 : vector<1x256xf32> to vector<16x256xf32>
      %170 = arith.mulf %168, %169 : vector<16x256xf32>
      %171 = vector.extract_strided_slice %158 {offsets = [0, 128], sizes = [16, 256], strides = [1, 1]} : vector<16x512xf32> to vector<16x256xf32>
      %172 = vector.extract_strided_slice %158 {offsets = [0, 129], sizes = [16, 256], strides = [1, 1]} : vector<16x512xf32> to vector<16x256xf32>
      %173 = vector.broadcast %160 : vector<1x256xf32> to vector<16x256xf32>
      %174 = arith.mulf %172, %173 : vector<16x256xf32>
      %175 = vector.extract_strided_slice %158 {offsets = [0, 143], sizes = [16, 256], strides = [1, 1]} : vector<16x512xf32> to vector<16x256xf32>
      %176 = vector.broadcast %159 : vector<1x256xf32> to vector<16x256xf32>
      %177 = arith.mulf %175, %176 : vector<16x256xf32>
      %178 = vector.extract_strided_slice %158 {offsets = [0, 144], sizes = [16, 256], strides = [1, 1]} : vector<16x512xf32> to vector<16x256xf32>
      %179 = vector.extract_strided_slice %158 {offsets = [0, 145], sizes = [16, 256], strides = [1, 1]} : vector<16x512xf32> to vector<16x256xf32>
      %180 = vector.broadcast %160 : vector<1x256xf32> to vector<16x256xf32>
      %181 = arith.mulf %179, %180 : vector<16x256xf32>
      %182 = tpu.concatenate %163, %164, %167, %170, %171, %174, %177, %178, %181 in 0 : vector<16x256xf32>, vector<16x256xf32>, vector<16x256xf32>, vector<16x256xf32>, vector<16x256xf32>, vector<16x256xf32>, vector<16x256xf32>, vector<16x256xf32>, vector<16x256xf32> -> vector<144x256xf32>
      %c0_84 = arith.constant 0 : index
      %c0_85 = arith.constant 0 : index
      %183 = vector.load %arg6[%c0_84, %c0_85] : memref<16x144xf32, #tpu.memory_space<vmem>>, vector<16x144xf32>
      %cst_86 = arith.constant dense<0.000000e+00> : vector<16x256xf32>
      %184 = tpu.matmul %183, %182, %cst_86 {dimension_numbers = #tpu.dot_dimension_numbers<[1], [0], [0], [1], [0, 0, 1, 1], [], []>} : vector<16x144xf32>, vector<144x256xf32>, vector<16x256xf32> -> vector<16x256xf32>
      %c0_87 = arith.constant 0 : index
      %c0_88 = arith.constant 0 : index
      %185 = vector.load %arg7[%c0_87, %c0_88] : memref<16x1xf32, #tpu.memory_space<vmem>>, vector<16x1xf32>
      %186 = vector.broadcast %185 : vector<16x1xf32> to vector<16x256xf32>
      %187 = arith.addf %184, %186 : vector<16x256xf32>
      %cst_89 = arith.constant 0.000000e+00 : f32
      %188 = vector.broadcast %cst_89 : f32 to vector<16x256xf32>
      %189 = arith.cmpf ogt, %187, %188 : vector<16x256xf32>
      %cst_90 = arith.constant 0.000000e+00 : f32
      %190 = vector.broadcast %cst_90 : f32 to vector<16x256xf32>
      %191 = arith.minimumf %187, %190 : vector<16x256xf32>
      %192 = math.exp %191 : vector<16x256xf32>
      %cst_91 = arith.constant 1.000000e+00 : f32
      %193 = vector.broadcast %cst_91 : f32 to vector<16x256xf32>
      %194 = arith.subf %192, %193 : vector<16x256xf32>
      %195 = arith.select %189, %187, %194 : vector<16x256xi1>, vector<16x256xf32>
      %c0_92 = arith.constant 0 : index
      %c0_93 = arith.constant 0 : index
      %196 = vector.load %arg8[%c0_92, %c0_93] : memref<4x16xf32, #tpu.memory_space<vmem>>, vector<4x16xf32>
      %cst_94 = arith.constant dense<0.000000e+00> : vector<4x256xf32>
      %197 = tpu.matmul %196, %195, %cst_94 {dimension_numbers = #tpu.dot_dimension_numbers<[1], [0], [0], [1], [0, 0, 1, 1], [], []>} : vector<4x16xf32>, vector<16x256xf32>, vector<4x256xf32> -> vector<4x256xf32>
      %c0_95 = arith.constant 0 : index
      %c0_96 = arith.constant 0 : index
      %198 = vector.load %arg9[%c0_95, %c0_96] : memref<4x1xf32, #tpu.memory_space<vmem>>, vector<4x1xf32>
      %199 = vector.broadcast %198 : vector<4x1xf32> to vector<4x256xf32>
      %200 = arith.addf %197, %199 : vector<4x256xf32>
      %cst_97 = arith.constant 1.250000e-01 : f32
      %201 = vector.broadcast %cst_97 : f32 to vector<4x256xf32>
      %202 = arith.mulf %201, %140 : vector<4x256xf32>
      %203 = arith.addf %arg13, %202 : vector<4x256xf32>
      %cst_98 = arith.constant 1.250000e-01 : f32
      %204 = vector.broadcast %cst_98 : f32 to vector<4x256xf32>
      %205 = arith.mulf %204, %200 : vector<4x256xf32>
      %206 = arith.addf %arg14, %205 : vector<4x256xf32>
      %c0_99 = arith.constant 0 : index
      %c0_100 = arith.constant 0 : index
      %207 = vector.load %arg3[%c0_99, %c0_100] : memref<16x4xf32, #tpu.memory_space<vmem>>, vector<16x4xf32>
      %cst_101 = arith.constant dense<0.000000e+00> : vector<16x256xf32>
      %208 = tpu.matmul %207, %203, %cst_101 {dimension_numbers = #tpu.dot_dimension_numbers<[1], [0], [0], [1], [0, 0, 1, 1], [], []>} : vector<16x4xf32>, vector<4x256xf32>, vector<16x256xf32> -> vector<16x256xf32>
      %c0_102 = arith.constant 0 : index
      %c0_103 = arith.constant 0 : index
      %209 = vector.load %arg4[%c0_102, %c0_103] : memref<16x4xf32, #tpu.memory_space<vmem>>, vector<16x4xf32>
      %cst_104 = arith.constant dense<0.000000e+00> : vector<16x256xf32>
      %210 = tpu.matmul %209, %206, %cst_104 {dimension_numbers = #tpu.dot_dimension_numbers<[1], [0], [0], [1], [0, 0, 1, 1], [], []>} : vector<16x4xf32>, vector<4x256xf32>, vector<16x256xf32> -> vector<16x256xf32>
      %211 = arith.addf %208, %210 : vector<16x256xf32>
      %c0_105 = arith.constant 0 : index
      %c0_106 = arith.constant 0 : index
      %212 = vector.load %arg5[%c0_105, %c0_106] : memref<16x1xf32, #tpu.memory_space<vmem>>, vector<16x1xf32>
      %213 = vector.broadcast %212 : vector<16x1xf32> to vector<16x256xf32>
      %214 = arith.addf %211, %213 : vector<16x256xf32>
      %cst_107 = arith.constant 0.000000e+00 : f32
      %215 = vector.broadcast %cst_107 : f32 to vector<16x256xf32>
      %216 = arith.cmpf ogt, %214, %215 : vector<16x256xf32>
      %cst_108 = arith.constant 0.000000e+00 : f32
      %217 = vector.broadcast %cst_108 : f32 to vector<16x256xf32>
      %218 = arith.minimumf %214, %217 : vector<16x256xf32>
      %219 = math.exp %218 : vector<16x256xf32>
      %cst_109 = arith.constant 1.000000e+00 : f32
      %220 = vector.broadcast %cst_109 : f32 to vector<16x256xf32>
      %221 = arith.subf %219, %220 : vector<16x256xf32>
      %222 = arith.select %216, %214, %221 : vector<16x256xi1>, vector<16x256xf32>
      %cst_110 = arith.constant 0.000000e+00 : f32
      %223 = vector.broadcast %cst_110 : f32 to vector<16x128xf32>
      %224 = tpu.concatenate %223, %222, %223 in 1 : vector<16x128xf32>, vector<16x256xf32>, vector<16x128xf32> -> vector<16x512xf32>
      %c0_111 = arith.constant 0 : index
      %c0_112 = arith.constant 0 : index
      %225 = vector.load %arg10[%c0_111, %c0_112] : memref<2x256xf32, #tpu.memory_space<vmem>>, vector<1x256xf32>
      %c1_113 = arith.constant 1 : index
      %c0_114 = arith.constant 0 : index
      %226 = vector.load %arg10[%c1_113, %c0_114] : memref<2x256xf32, #tpu.memory_space<vmem>>, vector<1x256xf32>
      %227 = vector.extract_strided_slice %224 {offsets = [0, 111], sizes = [16, 256], strides = [1, 1]} : vector<16x512xf32> to vector<16x256xf32>
      %228 = vector.broadcast %225 : vector<1x256xf32> to vector<16x256xf32>
      %229 = arith.mulf %227, %228 : vector<16x256xf32>
      %230 = vector.extract_strided_slice %224 {offsets = [0, 112], sizes = [16, 256], strides = [1, 1]} : vector<16x512xf32> to vector<16x256xf32>
      %231 = vector.extract_strided_slice %224 {offsets = [0, 113], sizes = [16, 256], strides = [1, 1]} : vector<16x512xf32> to vector<16x256xf32>
      %232 = vector.broadcast %226 : vector<1x256xf32> to vector<16x256xf32>
      %233 = arith.mulf %231, %232 : vector<16x256xf32>
      %234 = vector.extract_strided_slice %224 {offsets = [0, 127], sizes = [16, 256], strides = [1, 1]} : vector<16x512xf32> to vector<16x256xf32>
      %235 = vector.broadcast %225 : vector<1x256xf32> to vector<16x256xf32>
      %236 = arith.mulf %234, %235 : vector<16x256xf32>
      %237 = vector.extract_strided_slice %224 {offsets = [0, 128], sizes = [16, 256], strides = [1, 1]} : vector<16x512xf32> to vector<16x256xf32>
      %238 = vector.extract_strided_slice %224 {offsets = [0, 129], sizes = [16, 256], strides = [1, 1]} : vector<16x512xf32> to vector<16x256xf32>
      %239 = vector.broadcast %226 : vector<1x256xf32> to vector<16x256xf32>
      %240 = arith.mulf %238, %239 : vector<16x256xf32>
      %241 = vector.extract_strided_slice %224 {offsets = [0, 143], sizes = [16, 256], strides = [1, 1]} : vector<16x512xf32> to vector<16x256xf32>
      %242 = vector.broadcast %225 : vector<1x256xf32> to vector<16x256xf32>
      %243 = arith.mulf %241, %242 : vector<16x256xf32>
      %244 = vector.extract_strided_slice %224 {offsets = [0, 144], sizes = [16, 256], strides = [1, 1]} : vector<16x512xf32> to vector<16x256xf32>
      %245 = vector.extract_strided_slice %224 {offsets = [0, 145], sizes = [16, 256], strides = [1, 1]} : vector<16x512xf32> to vector<16x256xf32>
      %246 = vector.broadcast %226 : vector<1x256xf32> to vector<16x256xf32>
      %247 = arith.mulf %245, %246 : vector<16x256xf32>
      %248 = tpu.concatenate %229, %230, %233, %236, %237, %240, %243, %244, %247 in 0 : vector<16x256xf32>, vector<16x256xf32>, vector<16x256xf32>, vector<16x256xf32>, vector<16x256xf32>, vector<16x256xf32>, vector<16x256xf32>, vector<16x256xf32>, vector<16x256xf32> -> vector<144x256xf32>
      %c0_115 = arith.constant 0 : index
      %c0_116 = arith.constant 0 : index
      %249 = vector.load %arg6[%c0_115, %c0_116] : memref<16x144xf32, #tpu.memory_space<vmem>>, vector<16x144xf32>
      %cst_117 = arith.constant dense<0.000000e+00> : vector<16x256xf32>
      %250 = tpu.matmul %249, %248, %cst_117 {dimension_numbers = #tpu.dot_dimension_numbers<[1], [0], [0], [1], [0, 0, 1, 1], [], []>} : vector<16x144xf32>, vector<144x256xf32>, vector<16x256xf32> -> vector<16x256xf32>
      %c0_118 = arith.constant 0 : index
      %c0_119 = arith.constant 0 : index
      %251 = vector.load %arg7[%c0_118, %c0_119] : memref<16x1xf32, #tpu.memory_space<vmem>>, vector<16x1xf32>
      %252 = vector.broadcast %251 : vector<16x1xf32> to vector<16x256xf32>
      %253 = arith.addf %250, %252 : vector<16x256xf32>
      %cst_120 = arith.constant 0.000000e+00 : f32
      %254 = vector.broadcast %cst_120 : f32 to vector<16x256xf32>
      %255 = arith.cmpf ogt, %253, %254 : vector<16x256xf32>
      %cst_121 = arith.constant 0.000000e+00 : f32
      %256 = vector.broadcast %cst_121 : f32 to vector<16x256xf32>
      %257 = arith.minimumf %253, %256 : vector<16x256xf32>
      %258 = math.exp %257 : vector<16x256xf32>
      %cst_122 = arith.constant 1.000000e+00 : f32
      %259 = vector.broadcast %cst_122 : f32 to vector<16x256xf32>
      %260 = arith.subf %258, %259 : vector<16x256xf32>
      %261 = arith.select %255, %253, %260 : vector<16x256xi1>, vector<16x256xf32>
      %c0_123 = arith.constant 0 : index
      %c0_124 = arith.constant 0 : index
      %262 = vector.load %arg8[%c0_123, %c0_124] : memref<4x16xf32, #tpu.memory_space<vmem>>, vector<4x16xf32>
      %cst_125 = arith.constant dense<0.000000e+00> : vector<4x256xf32>
      %263 = tpu.matmul %262, %261, %cst_125 {dimension_numbers = #tpu.dot_dimension_numbers<[1], [0], [0], [1], [0, 0, 1, 1], [], []>} : vector<4x16xf32>, vector<16x256xf32>, vector<4x256xf32> -> vector<4x256xf32>
      %c0_126 = arith.constant 0 : index
      %c0_127 = arith.constant 0 : index
      %264 = vector.load %arg9[%c0_126, %c0_127] : memref<4x1xf32, #tpu.memory_space<vmem>>, vector<4x1xf32>
      %265 = vector.broadcast %264 : vector<4x1xf32> to vector<4x256xf32>
      %266 = arith.addf %263, %265 : vector<4x256xf32>
      %cst_128 = arith.constant 2.000000e+00 : f32
      %267 = vector.broadcast %cst_128 : f32 to vector<4x256xf32>
      %268 = arith.mulf %267, %74 : vector<4x256xf32>
      %269 = arith.addf %arg14, %268 : vector<4x256xf32>
      %cst_129 = arith.constant 2.000000e+00 : f32
      %270 = vector.broadcast %cst_129 : f32 to vector<4x256xf32>
      %271 = arith.mulf %270, %140 : vector<4x256xf32>
      %272 = arith.addf %269, %271 : vector<4x256xf32>
      %273 = arith.addf %272, %206 : vector<4x256xf32>
      %cst_130 = arith.constant 0.020833334 : f32
      %274 = vector.broadcast %cst_130 : f32 to vector<4x256xf32>
      %275 = arith.mulf %274, %273 : vector<4x256xf32>
      %276 = arith.addf %arg13, %275 : vector<4x256xf32>
      %cst_131 = arith.constant 2.000000e+00 : f32
      %277 = vector.broadcast %cst_131 : f32 to vector<4x256xf32>
      %278 = arith.mulf %277, %134 : vector<4x256xf32>
      %279 = arith.addf %68, %278 : vector<4x256xf32>
      %cst_132 = arith.constant 2.000000e+00 : f32
      %280 = vector.broadcast %cst_132 : f32 to vector<4x256xf32>
      %281 = arith.mulf %280, %200 : vector<4x256xf32>
      %282 = arith.addf %279, %281 : vector<4x256xf32>
      %283 = arith.addf %282, %266 : vector<4x256xf32>
      %cst_133 = arith.constant 0.020833334 : f32
      %284 = vector.broadcast %cst_133 : f32 to vector<4x256xf32>
      %285 = arith.mulf %284, %283 : vector<4x256xf32>
      %286 = arith.addf %arg14, %285 : vector<4x256xf32>
      scf.yield %276, %286 : vector<4x256xf32>, vector<4x256xf32>
    }
    %c0_5 = arith.constant 0 : index
    %c0_6 = arith.constant 0 : index
    %c0_7 = arith.constant 0 : index
    %6 = vector.load %arg11[%c0_5, %c0_6, %c0_7] : memref<1x4x256xf32, #tpu.memory_space<vmem>>, vector<1x4x256xf32>
    %7 = vector.shape_cast %6 : vector<1x4x256xf32> to vector<4x256xf32>
    %8 = vector.shape_cast %5#0 : vector<4x256xf32> to vector<1x4x256xf32>
    tpu.vector_store %arg11[%c0_5, %c0_6, %c0_7], %8 {strides = array<i32>} : memref<1x4x256xf32, #tpu.memory_space<vmem>>, vector<1x4x256xf32>,
    return
  }
  func.func @transform_0(%arg0: i32) -> (i32, i32, i32) {
    %c0_i32 = arith.constant 0 : i32
    %c0_i32_0 = arith.constant 0 : i32
    %c0_i32_1 = arith.constant 0 : i32
    return %arg0, %c0_i32, %c0_i32_0 : i32, i32, i32
  }
  func.func @transform_1(%arg0: i32) -> (i32, i32, i32) {
    %c0_i32 = arith.constant 0 : i32
    %c0_i32_0 = arith.constant 0 : i32
    %c0_i32_1 = arith.constant 0 : i32
    return %arg0, %c0_i32, %c0_i32_0 : i32, i32, i32
  }
  func.func @transform_2(%arg0: i32) -> (i32, i32) {
    %c0_i32 = arith.constant 0 : i32
    %c0_i32_0 = arith.constant 0 : i32
    %c0_i32_1 = arith.constant 0 : i32
    return %c0_i32, %c0_i32_0 : i32, i32
  }
  func.func @transform_3(%arg0: i32) -> (i32, i32) {
    %c0_i32 = arith.constant 0 : i32
    %c0_i32_0 = arith.constant 0 : i32
    %c0_i32_1 = arith.constant 0 : i32
    return %c0_i32, %c0_i32_0 : i32, i32
  }
  func.func @transform_4(%arg0: i32) -> (i32, i32) {
    %c0_i32 = arith.constant 0 : i32
    %c0_i32_0 = arith.constant 0 : i32
    %c0_i32_1 = arith.constant 0 : i32
    return %c0_i32, %c0_i32_0 : i32, i32
  }
  func.func @transform_5(%arg0: i32) -> (i32, i32) {
    %c0_i32 = arith.constant 0 : i32
    %c0_i32_0 = arith.constant 0 : i32
    %c0_i32_1 = arith.constant 0 : i32
    return %c0_i32, %c0_i32_0 : i32, i32
  }
  func.func @transform_6(%arg0: i32) -> (i32, i32) {
    %c0_i32 = arith.constant 0 : i32
    %c0_i32_0 = arith.constant 0 : i32
    %c0_i32_1 = arith.constant 0 : i32
    return %c0_i32, %c0_i32_0 : i32, i32
  }
  func.func @transform_7(%arg0: i32) -> (i32, i32) {
    %c0_i32 = arith.constant 0 : i32
    %c0_i32_0 = arith.constant 0 : i32
    %c0_i32_1 = arith.constant 0 : i32
    return %c0_i32, %c0_i32_0 : i32, i32
  }
  func.func @transform_8(%arg0: i32) -> (i32, i32) {
    %c0_i32 = arith.constant 0 : i32
    %c0_i32_0 = arith.constant 0 : i32
    %c0_i32_1 = arith.constant 0 : i32
    return %c0_i32, %c0_i32_0 : i32, i32
  }
  func.func @transform_9(%arg0: i32) -> (i32, i32) {
    %c0_i32 = arith.constant 0 : i32
    %c0_i32_0 = arith.constant 0 : i32
    %c0_i32_1 = arith.constant 0 : i32
    return %c0_i32, %c0_i32_0 : i32, i32
  }
  func.func @transform_10(%arg0: i32) -> (i32, i32, i32) {
    %c0_i32 = arith.constant 0 : i32
    %c0_i32_0 = arith.constant 0 : i32
    %c0_i32_1 = arith.constant 0 : i32
    return %arg0, %c0_i32, %c0_i32_0 : i32, i32, i32
  }
}

</mosaic_0001>

<llo_original>
// kernel: _lambda_.1
$region0: #{_lambda_.1}
  #allocation0 [shape = 'u32[]', space=smem, size = 0x4, offset = 0x4, fixed_abs, tag = 'smem constant byte address 0x4 - core index']
  #allocation1 [shape = 'u32[144,128]{1,0:T(1,128)}', space=vmem, size = 0x12000, scoped, tag = 'internal scratch']
  %s0 = inlined_call_operand.vmem [shape: f32[2,4,256], index: 0, kind: input, shape index: {}]
  %s1 = inlined_call_operand.vmem [shape: f32[2,4,256], index: 1, kind: input, shape index: {}]
  %s2 = inlined_call_operand.vmem [shape: f32[16,4], index: 2, kind: input, shape index: {}]
  %s3 = inlined_call_operand.vmem [shape: f32[16,4], index: 3, kind: input, shape index: {}]
  %s4 = inlined_call_operand.vmem [shape: f32[16,1], index: 4, kind: input, shape index: {}]
  %s5 = inlined_call_operand.vmem [shape: f32[16,144], index: 5, kind: input, shape index: {}]
  %s6 = inlined_call_operand.vmem [shape: f32[16,1], index: 6, kind: input, shape index: {}]
  %s7 = inlined_call_operand.vmem [shape: f32[4,16], index: 7, kind: input, shape index: {}]
  %s8 = inlined_call_operand.vmem [shape: f32[4,1], index: 8, kind: input, shape index: {}]
  %s9 = inlined_call_operand.vmem [shape: f32[2,256], index: 9, kind: input, shape index: {}]
  %s10 = inlined_call_operand.vmem [shape: f32[2,4,256], index: 10, kind: output, shape index: {}]
  %s11 = sld [smem:[#allocation0]]
  $region80: #{_lambda_.1} parent=0
    _
  %s13 = ssub.s32 1, %s11
  %s14 = scalar_select 0, %s13, %s11
  loop: start=0, step=1, limit=4
  $region2: #{_lambda_.1} parent=0 // loop_pre_header
    _
  $region3: #{_lambda_.1} parent=0 // loop_header
    %s16 = sphi 0, %s20
    %p17 = scmp.ge.s32.totalorder %s16, 4
    %s26 = sphi 0, %s28
    %s29 = sphi 0, %s26
    %s30 = sphi 0, %s29
    %s46 = sphi 0, %s30
    %s52 = sphi 0, %s54
    %s55 = sphi 0, %s52
    %s56 = sphi 0, %s55
    %s72 = sphi 0, %s56
    %s76 = sphi 0, %s76
    %s78 = sphi 0, %s76
    %s79 = sphi 0, %s78
    %s93 = sphi 0, %s79
    %s97 = sphi 0, %s97
    %s99 = sphi 0, %s97
    %s100 = sphi 0, %s99
    %s114 = sphi 0, %s100
    %s118 = sphi 0, %s118
    %s120 = sphi 0, %s118
    %s121 = sphi 0, %s120
    %s135 = sphi 0, %s121
    %s139 = sphi 0, %s139
    %s141 = sphi 0, %s139
    %s142 = sphi 0, %s141
    %s156 = sphi 0, %s142
    %s160 = sphi 0, %s160
    %s162 = sphi 0, %s160
    %s163 = sphi 0, %s162
    %s177 = sphi 0, %s163
    %s181 = sphi 0, %s181
    %s183 = sphi 0, %s181
    %s184 = sphi 0, %s183
    %s198 = sphi 0, %s184
    %s202 = sphi 0, %s202
    %s204 = sphi 0, %s202
    %s205 = sphi 0, %s204
    %s219 = sphi 0, %s205
    %s223 = sphi 0, %s223
    %s225 = sphi 0, %s223
    %s226 = sphi 0, %s225
    %s240 = sphi 0, %s226
    %s246 = sphi 0, %s248
    %s249 = sphi 0, %s246
    %s250 = sphi 0, %s249
    %s266 = sphi 0, %s250
  $region4: #{_lambda_.1} parent=0 // loop_header_branch
    %19 = sbr.rel (%p17) target = $region8
  $region5: #{_lambda_.1} parent=0 // loop_body
    %s21 = ssub.s32 %s16, 1
    %s22 = ssub.s32 %s16, 2
    %s23 = sadd.s32 %s16, 1
    %s24 = ssub.s32 %s16, %s23
    %p25 = scmp.eq.s32.totalorder %s24, 0
    %s27 = sadd.s32 %s26, 1
    %s28 = scalar_select %p25, %s26, %s27
    %p31 = pneg %p25
    %p32 = scmp.eq.s32.totalorder %s16, 1
    %p33 = por %p31, %p32
    %p34 = scmp.ne.s32.totalorder %s26, %s29
    %p35 = scmp.eq.s32.totalorder %s16, 0
    %p36 = por %p34, %p35
    %p37 = scmp.ne.s32.totalorder %s26, %s29
    %p38 = scmp.eq.s32.totalorder %s21, 1
    %p39 = por %p37, %p38
    %p40 = scmp.ne.s32.totalorder %s29, %s30
    %p41 = scmp.eq.s32.totalorder %s21, 0
    %p42 = por %p40, %p41
    %p43 = scmp.ne.s32.totalorder %s29, %s30
    %p44 = scmp.eq.s32.totalorder %s22, 1
    %p45 = por %p43, %p44
    %p47 = scmp.ne.s32.totalorder %s30, %s46
    %p48 = scmp.eq.s32.totalorder %s22, 0
    %p49 = por %p47, %p48
    %s50 = ssub.s32 %s16, %s23
    %p51 = scmp.eq.s32.totalorder %s50, 0
    %s53 = sadd.s32 %s52, 1
    %s54 = scalar_select %p51, %s52, %s53
    %p57 = pneg %p51
    %p58 = scmp.eq.s32.totalorder %s16, 1
    %p59 = por %p57, %p58
    %p60 = scmp.ne.s32.totalorder %s52, %s55
    %p61 = scmp.eq.s32.totalorder %s16, 0
    %p62 = por %p60, %p61
    %p63 = scmp.ne.s32.totalorder %s52, %s55
    %p64 = scmp.eq.s32.totalorder %s21, 1
    %p65 = por %p63, %p64
    %p66 = scmp.ne.s32.totalorder %s55, %s56
    %p67 = scmp.eq.s32.totalorder %s21, 0
    %p68 = por %p66, %p67
    %p69 = scmp.ne.s32.totalorder %s55, %s56
    %p70 = scmp.eq.s32.totalorder %s22, 1
    %p71 = por %p69, %p70
    %p73 = scmp.ne.s32.totalorder %s56, %s72
    %p74 = scmp.eq.s32.totalorder %s22, 0
    %p75 = por %p73, %p74
    %s77 = sadd.s32 %s76, 1
    %p80 = scmp.eq.s32.totalorder %s16, 1
    %p81 = scmp.ne.s32.totalorder %s76, %s78
    %p82 = scmp.eq.s32.totalorder %s16, 0
    %p83 = por %p81, %p82
    %p84 = scmp.ne.s32.totalorder %s76, %s78
    %p85 = scmp.eq.s32.totalorder %s21, 1
    %p86 = por %p84, %p85
    %p87 = scmp.ne.s32.totalorder %s78, %s79
    %p88 = scmp.eq.s32.totalorder %s21, 0
    %p89 = por %p87, %p88
    %p90 = scmp.ne.s32.totalorder %s78, %s79
    %p91 = scmp.eq.s32.totalorder %s22, 1
    %p92 = por %p90, %p91
    %p94 = scmp.ne.s32.totalorder %s79, %s93
    %p95 = scmp.eq.s32.totalorder %s22, 0
    %p96 = por %p94, %p95
    %s98 = sadd.s32 %s97, 1
    %p101 = scmp.eq.s32.totalorder %s16, 1
    %p102 = scmp.ne.s32.totalorder %s97, %s99
    %p103 = scmp.eq.s32.totalorder %s16, 0
    %p104 = por %p102, %p103
    %p105 = scmp.ne.s32.totalorder %s97, %s99
    %p106 = scmp.eq.s32.totalorder %s21, 1
    %p107 = por %p105, %p106
    %p108 = scmp.ne.s32.totalorder %s99, %s100
    %p109 = scmp.eq.s32.totalorder %s21, 0
    %p110 = por %p108, %p109
    %p111 = scmp.ne.s32.totalorder %s99, %s100
    %p112 = scmp.eq.s32.totalorder %s22, 1
    %p113 = por %p111, %p112
    %p115 = scmp.ne.s32.totalorder %s100, %s114
    %p116 = scmp.eq.s32.totalorder %s22, 0
    %p117 = por %p115, %p116
    %s119 = sadd.s32 %s118, 1
    %p122 = scmp.eq.s32.totalorder %s16, 1
    %p123 = scmp.ne.s32.totalorder %s118, %s120
    %p124 = scmp.eq.s32.totalorder %s16, 0
    %p125 = por %p123, %p124
    %p126 = scmp.ne.s32.totalorder %s118, %s120
    %p127 = scmp.eq.s32.totalorder %s21, 1
    %p128 = por %p126, %p127
    %p129 = scmp.ne.s32.totalorder %s120, %s121
    %p130 = scmp.eq.s32.totalorder %s21, 0
    %p131 = por %p129, %p130
    %p132 = scmp.ne.s32.totalorder %s120, %s121
    %p133 = scmp.eq.s32.totalorder %s22, 1
    %p134 = por %p132, %p133
    %p136 = scmp.ne.s32.totalorder %s121, %s135
    %p137 = scmp.eq.s32.totalorder %s22, 0
    %p138 = por %p136, %p137
    %s140 = sadd.s32 %s139, 1
    %p143 = scmp.eq.s32.totalorder %s16, 1
    %p144 = scmp.ne.s32.totalorder %s139, %s141
    %p145 = scmp.eq.s32.totalorder %s16, 0
    %p146 = por %p144, %p145
    %p147 = scmp.ne.s32.totalorder %s139, %s141
    %p148 = scmp.eq.s32.totalorder %s21, 1
    %p149 = por %p147, %p148
    %p150 = scmp.ne.s32.totalorder %s141, %s142
    %p151 = scmp.eq.s32.totalorder %s21, 0
    %p152 = por %p150, %p151
    %p153 = scmp.ne.s32.totalorder %s141, %s142
    %p154 = scmp.eq.s32.totalorder %s22, 1
    %p155 = por %p153, %p154
    %p157 = scmp.ne.s32.totalorder %s142, %s156
    %p158 = scmp.eq.s32.totalorder %s22, 0
    %p159 = por %p157, %p158
    %s161 = sadd.s32 %s160, 1
    %p164 = scmp.eq.s32.totalorder %s16, 1
    %p165 = scmp.ne.s32.totalorder %s160, %s162
    %p166 = scmp.eq.s32.totalorder %s16, 0
    %p167 = por %p165, %p166
    %p168 = scmp.ne.s32.totalorder %s160, %s162
    %p169 = scmp.eq.s32.totalorder %s21, 1
    %p170 = por %p168, %p169
    %p171 = scmp.ne.s32.totalorder %s162, %s163
    %p172 = scmp.eq.s32.totalorder %s21, 0
    %p173 = por %p171, %p172
    %p174 = scmp.ne.s32.totalorder %s162, %s163
    %p175 = scmp.eq.s32.totalorder %s22, 1
    %p176 = por %p174, %p175
    %p178 = scmp.ne.s32.totalorder %s163, %s177
    %p179 = scmp.eq.s32.totalorder %s22, 0
    %p180 = por %p178, %p179
    %s182 = sadd.s32 %s181, 1
    %p185 = scmp.eq.s32.totalorder %s16, 1
    %p186 = scmp.ne.s32.totalorder %s181, %s183
    %p187 = scmp.eq.s32.totalorder %s16, 0
    %p188 = por %p186, %p187
    %p189 = scmp.ne.s32.totalorder %s181, %s183
    %p190 = scmp.eq.s32.totalorder %s21, 1
    %p191 = por %p189, %p190
    %p192 = scmp.ne.s32.totalorder %s183, %s184
    %p193 = scmp.eq.s32.totalorder %s21, 0
    %p194 = por %p192, %p193
    %p195 = scmp.ne.s32.totalorder %s183, %s184
    %p196 = scmp.eq.s32.totalorder %s22, 1
    %p197 = por %p195, %p196
    %p199 = scmp.ne.s32.totalorder %s184, %s198
    %p200 = scmp.eq.s32.totalorder %s22, 0
    %p201 = por %p199, %p200
    %s203 = sadd.s32 %s202, 1
    %p206 = scmp.eq.s32.totalorder %s16, 1
    %p207 = scmp.ne.s32.totalorder %s202, %s204
    %p208 = scmp.eq.s32.totalorder %s16, 0
    %p209 = por %p207, %p208
    %p210 = scmp.ne.s32.totalorder %s202, %s204
    %p211 = scmp.eq.s32.totalorder %s21, 1
    %p212 = por %p210, %p211
    %p213 = scmp.ne.s32.totalorder %s204, %s205
    %p214 = scmp.eq.s32.totalorder %s21, 0
    %p215 = por %p213, %p214
    %p216 = scmp.ne.s32.totalorder %s204, %s205
    %p217 = scmp.eq.s32.totalorder %s22, 1
    %p218 = por %p216, %p217
    %p220 = scmp.ne.s32.totalorder %s205, %s219
    %p221 = scmp.eq.s32.totalorder %s22, 0
    %p222 = por %p220, %p221
    %s224 = sadd.s32 %s223, 1
    %p227 = scmp.eq.s32.totalorder %s16, 1
    %p228 = scmp.ne.s32.totalorder %s223, %s225
    %p229 = scmp.eq.s32.totalorder %s16, 0
    %p230 = por %p228, %p229
    %p231 = scmp.ne.s32.totalorder %s223, %s225
    %p232 = scmp.eq.s32.totalorder %s21, 1
    %p233 = por %p231, %p232
    %p234 = scmp.ne.s32.totalorder %s225, %s226
    %p235 = scmp.eq.s32.totalorder %s21, 0
    %p236 = por %p234, %p235
    %p237 = scmp.ne.s32.totalorder %s225, %s226
    %p238 = scmp.eq.s32.totalorder %s22, 1
    %p239 = por %p237, %p238
    %p241 = scmp.ne.s32.totalorder %s226, %s240
    %p242 = scmp.eq.s32.totalorder %s22, 0
    %p243 = por %p241, %p242
    %s244 = ssub.s32 %s16, %s23
    %p245 = scmp.eq.s32.totalorder %s244, 0
    %s247 = sadd.s32 %s246, 1
    %s248 = scalar_select %p245, %s246, %s247
    %p251 = pneg %p245
    %p252 = scmp.eq.s32.totalorder %s16, 1
    %p253 = por %p251, %p252
    %p254 = scmp.ne.s32.totalorder %s246, %s249
    %p255 = scmp.eq.s32.totalorder %s16, 0
    %p256 = por %p254, %p255
    %p257 = scmp.ne.s32.totalorder %s246, %s249
    %p258 = scmp.eq.s32.totalorder %s21, 1
    %p259 = por %p257, %p258
    %p260 = scmp.ne.s32.totalorder %s249, %s250
    %p261 = scmp.eq.s32.totalorder %s21, 0
    %p262 = por %p260, %p261
    %p263 = scmp.ne.s32.totalorder %s249, %s250
    %p264 = scmp.eq.s32.totalorder %s22, 1
    %p265 = por %p263, %p264
    %p267 = scmp.ne.s32.totalorder %s250, %s266
    %p268 = scmp.eq.s32.totalorder %s22, 0
    %p269 = por %p267, %p268
    %p270 = scmp.le.s32.totalorder 1, %s16
    %p271 = scmp.lt.s32.totalorder %s16, 3
    %p272 = pnand %p270, %p271
    %p273 = pneg %p272
    // Predicated region
    $region9: #{_lambda_.1} parent=5 // pred_check
      _
    $region10: #{_lambda_.1} parent=5 // pred_check_branch
      %275 = sbr.rel (%p272) target = $region12
    $region11: #{_lambda_.1} parent=5 // pred_region
      %s276 = ssub.s32 %s16, 1
      // Predicated region
      $region13: #{_lambda_.1} parent=11 // pred_check
        %p277 = pneg %p89
      $region14: #{_lambda_.1} parent=11 // pred_check_branch
        %279 = sbr.rel (%p277) target = $region16
      $region15: #{_lambda_.1} parent=11 // pred_region
        _
      $region16: #{_lambda_.1} parent=11 // pred_fallthru
        _
      // Predicated region
      $region17: #{_lambda_.1} parent=11 // pred_check
        %p280 = pneg %p110
      $region18: #{_lambda_.1} parent=11 // pred_check_branch
        %282 = sbr.rel (%p280) target = $region20
      $region19: #{_lambda_.1} parent=11 // pred_region
        _
      $region20: #{_lambda_.1} parent=11 // pred_fallthru
        _
      // Predicated region
      $region21: #{_lambda_.1} parent=11 // pred_check
        %p283 = pneg %p131
      $region22: #{_lambda_.1} parent=11 // pred_check_branch
        %285 = sbr.rel (%p283) target = $region24
      $region23: #{_lambda_.1} parent=11 // pred_region
        _
      $region24: #{_lambda_.1} parent=11 // pred_fallthru
        _
      // Predicated region
      $region25: #{_lambda_.1} parent=11 // pred_check
        %p286 = pneg %p152
      $region26: #{_lambda_.1} parent=11 // pred_check_branch
        %288 = sbr.rel (%p286) target = $region28
      $region27: #{_lambda_.1} parent=11 // pred_region
        _
      $region28: #{_lambda_.1} parent=11 // pred_fallthru
        _
      // Predicated region
      $region29: #{_lambda_.1} parent=11 // pred_check
        %p289 = pneg %p173
      $region30: #{_lambda_.1} parent=11 // pred_check_branch
        %291 = sbr.rel (%p289) target = $region32
      $region31: #{_lambda_.1} parent=11 // pred_region
        _
      $region32: #{_lambda_.1} parent=11 // pred_fallthru
        _
      // Predicated region
      $region33: #{_lambda_.1} parent=11 // pred_check
        %p292 = pneg %p194
      $region34: #{_lambda_.1} parent=11 // pred_check_branch
        %294 = sbr.rel (%p292) target = $region36
      $region35: #{_lambda_.1} parent=11 // pred_region
        _
      $region36: #{_lambda_.1} parent=11 // pred_fallthru
        _
      // Predicated region
      $region37: #{_lambda_.1} parent=11 // pred_check
        %p295 = pneg %p215
      $region38: #{_lambda_.1} parent=11 // pred_check_branch
        %297 = sbr.rel (%p295) target = $region40
      $region39: #{_lambda_.1} parent=11 // pred_region
        _
      $region40: #{_lambda_.1} parent=11 // pred_fallthru
        _
      // Predicated region
      $region41: #{_lambda_.1} parent=11 // pred_check
        %p298 = pneg %p236
      $region42: #{_lambda_.1} parent=11 // pred_check_branch
        %300 = sbr.rel (%p298) target = $region44
      $region43: #{_lambda_.1} parent=11 // pred_region
        _
      $region44: #{_lambda_.1} parent=11 // pred_fallthru
        _
    $region12: #{_lambda_.1} parent=5 // pred_fallthru
      _
    %p301 = scmp.lt.s32.totalorder %s16, 2
    // Predicated region
    $region45: #{_lambda_.1} parent=5 // pred_check
      %p302 = pneg %p301
    $region46: #{_lambda_.1} parent=5 // pred_check_branch
      %304 = sbr.rel (%p302) target = $region48
    $region47: #{_lambda_.1} parent=5 // pred_region
      // Predicated region
      $region49: #{_lambda_.1} parent=47 // pred_check
        %p305 = pneg %p36
      $region50: #{_lambda_.1} parent=47 // pred_check_branch
        %307 = sbr.rel (%p305) target = $region52
      $region51: #{_lambda_.1} parent=47 // pred_region
        %p308 = scmp.lt.s32.totalorder %s16, 1
        %s309 = scalar_select %p308, %s16, 1
        %s310 = smul.addr %s309, 2
        %s311 = smul.addr %s310, 4
        %s312 = scalar_lea.vmem %s0, %s311
      $region52: #{_lambda_.1} parent=47 // pred_fallthru
        _
      // Predicated region
      $region53: #{_lambda_.1} parent=47 // pred_check
        %p313 = pneg %p62
      $region54: #{_lambda_.1} parent=47 // pred_check_branch
        %315 = sbr.rel (%p313) target = $region56
      $region55: #{_lambda_.1} parent=47 // pred_region
        %p316 = scmp.lt.s32.totalorder %s16, 1
        %s317 = scalar_select %p316, %s16, 1
        %s318 = smul.addr %s317, 2
        %s319 = smul.addr %s318, 4
        %s320 = scalar_lea.vmem %s1, %s319
      $region56: #{_lambda_.1} parent=47 // pred_fallthru
        _
    $region48: #{_lambda_.1} parent=5 // pred_fallthru
      _
    %p321 = scmp.le.s32.totalorder 1, %s16
    %p322 = scmp.lt.s32.totalorder %s16, 3
    %p323 = pnand %p321, %p322
    %p324 = pneg %p323
    // Predicated region
    $region57: #{_lambda_.1} parent=5 // pred_check
      _
    $region58: #{_lambda_.1} parent=5 // pred_check_branch
      %326 = sbr.rel (%p323) target = $region60
    $region59: #{_lambda_.1} parent=5 // pred_region
      %s327 = ssub.s32 %s16, 1
      %p328 = scmp.lt.s32.totalorder %s21, 1
      %s329 = scalar_select %p328, %s21, 1
      %s330 = smul.addr %s329, 2
      %s331 = smul.addr %s330, 4
      %s332 = scalar_lea.vmem %s0, %s331
      %p333 = pneg %p42
      %p334 = pneg %p39
      %p335 = scmp.lt.s32.totalorder %s21, 1
      %s336 = scalar_select %p335, %s21, 1
      %s337 = smul.addr %s336, 2
      %s338 = smul.addr %s337, 4
      %s339 = scalar_lea.vmem %s1, %s338
      %p340 = pneg %p68
      %p341 = pneg %p65
      %p342 = pneg %p89
      %p343 = pneg %p86
      %p344 = pneg %p110
      %p345 = pneg %p107
      %p346 = pneg %p131
      %p347 = pneg %p128
      %p348 = pneg %p152
      %p349 = pneg %p149
      %p350 = pneg %p173
      %p351 = pneg %p170
      %p352 = pneg %p194
      %p353 = pneg %p191
      %p354 = pneg %p215
      %p355 = pneg %p212
      %p356 = pneg %p236
      %p357 = pneg %p233
      %p358 = pneg %p262
      %p359 = pneg %p259
      %p360 = scmp.lt.s32.totalorder %s21, 1
      %s361 = scalar_select %p360, %s21, 1
      %s362 = smul.addr %s361, 2
      %s363 = smul.addr %s362, 4
      %s364 = scalar_lea.vmem %s10, %s363
      %p365 = scmp.lt.s32.totalorder %s21, 1
      %s366 = scalar_select %p365, %s21, 1
      %s367 = smul.addr %s366, 2
      %s368 = smul.addr %s367, 4
      %s369 = scalar_lea.vmem %s0, %s368
      %p370 = scmp.lt.s32.totalorder %s21, 1
      %s371 = scalar_select %p370, %s21, 1
      %s372 = smul.addr %s371, 2
      %s373 = smul.addr %s372, 4
      %s374 = scalar_lea.vmem %s1, %s373
      %p375 = scmp.lt.s32.totalorder %s21, 1
      %s376 = scalar_select %p375, %s21, 1
      %s377 = smul.addr %s376, 2
      %s378 = smul.addr %s377, 4
      %s379 = scalar_lea.vmem %s10, %s378
      %v380 = vld [vmem:[%s369] sm:$0xff]
      %v381 = vld [vmem:[%s374] sm:$0xff]
      loop: start=0, step=1, limit=8
      $region61: #{_lambda_.1} parent=59 // loop_pre_header
        _
      $region62: #{_lambda_.1} parent=59 // loop_header
        %s383 = sphi 0, %s387
        %p384 = scmp.ge.s32.totalorder %s383, 8
        %v388 = vphi %v380, %v3348
        %v389 = vphi %v381, %v3365
      $region63: #{_lambda_.1} parent=59 // loop_header_branch
        %386 = sbr.rel (%p384) target = $region67
      $region64: #{_lambda_.1} parent=59 // loop_body
        %v390 = vld [vmem:[%s2] sm:$0xff]
        %v391 = vld [vmem:[%s2 + $0x8] sm:$0xff]
        %v392 = vld [vmem:[%s3] sm:$0xff]
        %v393 = vld [vmem:[%s3 + $0x8] sm:$0xff]
        %v395 = vcombine.high %v389, %v389
        %vm396 = vcmask 31744
        %v398 = vsel %vm396, %v392, 0
        %v401 = vsel %vm396, %v393, 0
        %vm403 = vcmask 1043456
        %v404 = vsel %vm403, %v389, 0
        %v406 = vsel %vm403, %v395, 0
        %408 = vmatprep.subr.mxu0 %v406
        %409 = vmatpush1.msra.mxu0 %v404
        %410 = vmatprep.subr.mxu0 0.0
        %411 = vmatpush1.msra.mxu0 0.0
        %412 = vmatprep.subr.mxu0 0.0
        %413 = vmatpush1.msra.mxu0 0.0
        %414 = vmatprep.subr.mxu0 0.0
        %415 = vmatpush1.msra.mxu0 0.0
        %416 = vmatprep.subr.mxu0 0.0
        %417 = vmatpush1.msra.mxu0 0.0
        %418 = vmatprep.subr.mxu0 0.0
        %419 = vmatpush1.msra.mxu0 0.0
        %420 = vmatprep.subr.mxu0 0.0
        %421 = vmatpush1.msra.mxu0 0.0
        %422 = vmatprep.subr.mxu0 0.0
        %423 = vmatpush1.msra.mxu0 0.0
        %424 = vmatprep.subr.mxu0 0.0
        %425 = vmatpush1.msra.mxu0 0.0
        %426 = vmatprep.subr.mxu0 0.0
        %427 = vmatpush1.msra.mxu0 0.0
        %428 = vmatprep.subr.mxu0 0.0
        %429 = vmatpush1.msra.mxu0 0.0
        %430 = vmatprep.subr.mxu0 0.0
        %431 = vmatpush1.msra.mxu0 0.0
        %432 = vmatprep.subr.mxu0 0.0
        %433 = vmatpush1.msra.mxu0 0.0
        %434 = vmatprep.subr.mxu0 0.0
        %435 = vmatpush1.msra.mxu0 0.0
        %436 = vmatprep.subr.mxu0 0.0
        %437 = vmatpush1.msra.mxu0 0.0
        %438 = vmatprep.subr.mxu0 0.0
        %439 = vmatpush1.msra.mxu0 0.0
        %440 = vmatprep.subr.mxu0 0.0
        %441 = vmatpush1.msra.mxu0 0.0
        %442 = vmatprep.subr.mxu0 0.0
        %443 = vmatpush1.msra.mxu0 0.0
        %444 = vmatprep.subr.mxu0 0.0
        %445 = vmatpush1.msra.mxu0 0.0
        %446 = vmatprep.subr.mxu0 0.0
        %447 = vmatpush1.msra.mxu0 0.0
        %448 = vmatprep.subr.mxu0 0.0
        %449 = vmatpush1.msra.mxu0 0.0
        %450 = vmatprep.subr.mxu0 0.0
        %451 = vmatpush1.msra.mxu0 0.0
        %452 = vmatprep.subr.mxu0 0.0
        %453 = vmatpush1.msra.mxu0 0.0
        %454 = vmatprep.subr.mxu0 0.0
        %455 = vmatpush1.msra.mxu0 0.0
        %456 = vmatprep.subr.mxu0 0.0
        %457 = vmatpush1.msra.mxu0 0.0
        %458 = vmatprep.subr.mxu0 0.0
        %459 = vmatpush1.msra.mxu0 0.0
        %460 = vmatprep.subr.mxu0 0.0
        %461 = vmatpush1.msra.mxu0 0.0
        %462 = vmatprep.subr.mxu0 0.0
        %463 = vmatpush1.msra.mxu0 0.0
        %464 = vmatprep.subr.mxu0 0.0
        %465 = vmatpush1.msra.mxu0 0.0
        %466 = vmatprep.subr.mxu0 0.0
        %467 = vmatpush1.msra.mxu0 0.0
        %468 = vmatprep.subr.mxu0 0.0
        %469 = vmatpush1.msra.mxu0 0.0
        %470 = vmatprep.subr.mxu0 0.0
        %471 = vmatpush1.msra.mxu0 0.0
        %472 = vmatprep.mubr.f32.mxu0 0.0
        %473 = vmatmul.mubr.f32.gmra.mrb[0].mxu0 %v398
        %v474 = vpop.f32.mrb[0].mxu0
        %v475 = vadd.f32 0.0, %v474
        %v476 = vpop.f32.mrb[0].mxu0
        %v477 = vadd.f32 0.0, %v476
        %478 = vmatprep.mubr.f32.mxu0 0.0
        %479 = vmatmul.mubr.f32.gmra.mrb[0].mxu0 %v401
        %v480 = vpop.f32.mrb[0].mxu0
        %v481 = vadd.f32 0.0, %v480
        %v482 = vpop.f32.mrb[0].mxu0
        %v483 = vadd.f32 0.0, %v482
        %484 = vdwg.mxu0
        %v486 = vcombine.high %v388, %v388
        %v488 = vsel %vm396, %v390, 0
        %v491 = vsel %vm396, %v391, 0
        %v493 = vsel %vm403, %v388, 0
        %v495 = vsel %vm403, %v486, 0
        %497 = vmatprep.subr.mxu0 %v495
        %498 = vmatpush1.msra.mxu0 %v493
        %499 = vmatprep.subr.mxu0 0.0
        %500 = vmatpush1.msra.mxu0 0.0
        %501 = vmatprep.subr.mxu0 0.0
        %502 = vmatpush1.msra.mxu0 0.0
        %503 = vmatprep.subr.mxu0 0.0
        %504 = vmatpush1.msra.mxu0 0.0
        %505 = vmatprep.subr.mxu0 0.0
        %506 = vmatpush1.msra.mxu0 0.0
        %507 = vmatprep.subr.mxu0 0.0
        %508 = vmatpush1.msra.mxu0 0.0
        %509 = vmatprep.subr.mxu0 0.0
        %510 = vmatpush1.msra.mxu0 0.0
        %511 = vmatprep.subr.mxu0 0.0
        %512 = vmatpush1.msra.mxu0 0.0
        %513 = vmatprep.subr.mxu0 0.0
        %514 = vmatpush1.msra.mxu0 0.0
        %515 = vmatprep.subr.mxu0 0.0
        %516 = vmatpush1.msra.mxu0 0.0
        %517 = vmatprep.subr.mxu0 0.0
        %518 = vmatpush1.msra.mxu0 0.0
        %519 = vmatprep.subr.mxu0 0.0
        %520 = vmatpush1.msra.mxu0 0.0
        %521 = vmatprep.subr.mxu0 0.0
        %522 = vmatpush1.msra.mxu0 0.0
        %523 = vmatprep.subr.mxu0 0.0
        %524 = vmatpush1.msra.mxu0 0.0
        %525 = vmatprep.subr.mxu0 0.0
        %526 = vmatpush1.msra.mxu0 0.0
        %527 = vmatprep.subr.mxu0 0.0
        %528 = vmatpush1.msra.mxu0 0.0
        %529 = vmatprep.subr.mxu0 0.0
        %530 = vmatpush1.msra.mxu0 0.0
        %531 = vmatprep.subr.mxu0 0.0
        %532 = vmatpush1.msra.mxu0 0.0
        %533 = vmatprep.subr.mxu0 0.0
        %534 = vmatpush1.msra.mxu0 0.0
        %535 = vmatprep.subr.mxu0 0.0
        %536 = vmatpush1.msra.mxu0 0.0
        %537 = vmatprep.subr.mxu0 0.0
        %538 = vmatpush1.msra.mxu0 0.0
        %539 = vmatprep.subr.mxu0 0.0
        %540 = vmatpush1.msra.mxu0 0.0
        %541 = vmatprep.subr.mxu0 0.0
        %542 = vmatpush1.msra.mxu0 0.0
        %543 = vmatprep.subr.mxu0 0.0
        %544 = vmatpush1.msra.mxu0 0.0
        %545 = vmatprep.subr.mxu0 0.0
        %546 = vmatpush1.msra.mxu0 0.0
        %547 = vmatprep.subr.mxu0 0.0
        %548 = vmatpush1.msra.mxu0 0.0
        %549 = vmatprep.subr.mxu0 0.0
        %550 = vmatpush1.msra.mxu0 0.0
        %551 = vmatprep.subr.mxu0 0.0
        %552 = vmatpush1.msra.mxu0 0.0
        %553 = vmatprep.subr.mxu0 0.0
        %554 = vmatpush1.msra.mxu0 0.0
        %555 = vmatprep.subr.mxu0 0.0
        %556 = vmatpush1.msra.mxu0 0.0
        %557 = vmatprep.subr.mxu0 0.0
        %558 = vmatpush1.msra.mxu0 0.0
        %559 = vmatprep.subr.mxu0 0.0
        %560 = vmatpush1.msra.mxu0 0.0
        %561 = vmatprep.mubr.f32.mxu0 0.0
        %562 = vmatmul.mubr.f32.gmra.mrb[0].mxu0 %v488
        %v563 = vpop.f32.mrb[0].mxu0
        %v564 = vadd.f32 %v475, %v563
        %v565 = vpop.f32.mrb[0].mxu0
        %v566 = vadd.f32 %v477, %v565
        %567 = vmatprep.mubr.f32.mxu0 0.0
        %568 = vmatmul.mubr.f32.gmra.mrb[0].mxu0 %v491
        %v569 = vpop.f32.mrb[0].mxu0
        %v570 = vadd.f32 %v481, %v569
        %v571 = vpop.f32.mrb[0].mxu0
        %v572 = vadd.f32 %v483, %v571
        %573 = vdwg.mxu0
        %v574 = vld [vmem:[%s4] sm:$0xff]
        %v575 = vld [vmem:[%s4 + $0x8] sm:$0xff]
        %577 = vset.pattern.permute.xlu0 0
        %578 = vperm.xlu0 %577, %v574
        %v579 = vpop.permute.xlu0 %578
        %582 = vset.pattern.permute.xlu0 0
        %583 = vperm.xlu0 %582, %v575
        %v584 = vpop.permute.xlu0 %583
        %v586 = vadd.f32 %v564, %v579
        %v587 = vadd.f32 %v566, %v579
        %v588 = vadd.f32 %v570, %v584
        %v589 = vadd.f32 %v572, %v584
        %vm590 = vcmp.gt.f32.partialorder %v586, 0.0
        %vm591 = vcmp.gt.f32.partialorder %v587, 0.0
        %vm592 = vcmp.gt.f32.partialorder %v588, 0.0
        %vm593 = vcmp.gt.f32.partialorder %v589, 0.0
        %v594 = vmin.f32 %v586, 0.0
        %v595 = vmin.f32 %v587, 0.0
        %v596 = vmin.f32 %v588, 0.0
        %v597 = vmin.f32 %v589, 0.0
        %v598 = vmul.f32 %v594, 1.442695
        %v599 = vpow.pop %v598
        %v600 = vmul.f32 %v595, 1.442695
        %v601 = vpow.pop %v600
        %v602 = vmul.f32 %v596, 1.442695
        %v603 = vpow.pop %v602
        %v604 = vmul.f32 %v597, 1.442695
        %v605 = vpow.pop %v604
        %v606 = vsub.f32 %v599, 1.0
        %v607 = vsub.f32 %v601, 1.0
        %v608 = vsub.f32 %v603, 1.0
        %v609 = vsub.f32 %v605, 1.0
        %v610 = vsel %vm590, %v586, %v606
        %v611 = vsel %vm591, %v587, %v607
        %v612 = vsel %vm592, %v588, %v608
        %v613 = vsel %vm593, %v589, %v609
        %v614 = vld [vmem:[%s9] ss:$2 sm:$0x3]
        %s615 = scalar_lea.vmem %s9, 1
        %v616 = vld [vmem:[%s615] ss:$2 sm:$0x3]
        %v618 = vlaneseq
        %v619 = vshrl.u32 %v618, 7
        %v620 = vsub.s32 0, %v619
        %v621 = vrot.slane %v614, %v620
        %v622 = vlaneseq
        %v623 = vshrl.u32 %v622, 7
        %v624 = vsub.s32 1, %v623
        %v625 = vrot.slane %v614, %v624
        %626 = vrot.lane.b32.xlu0 %v621, 111
        %v627 = vpop.permute.xlu0 %626
        %628 = vrot.lane.b32.xlu0 %v625, 111
        %v629 = vpop.permute.xlu0 %628
        %vm630 = vcmask 908288
        %v631 = vsel %vm630, %v627, %v629
        %v635 = vmul.f32 %v627, 0.0
        %v636 = vmul.f32 %v610, %v631
        %v637 = vmul.f32 %v611, %v629
        %v638 = vmul.f32 %v612, %v631
        %v639 = vmul.f32 %v613, %v629
        %v641 = vlaneseq
        %v642 = vshrl.u32 %v641, 7
        %v643 = vsub.s32 0, %v642
        %v644 = vrot.slane %v616, %v643
        %v645 = vlaneseq
        %v646 = vshrl.u32 %v645, 7
        %v647 = vsub.s32 1, %v646
        %v648 = vrot.slane %v616, %v647
        %649 = vrot.lane.b32.xlu0 %v644, 113
        %v650 = vpop.permute.xlu0 %649
        %651 = vrot.lane.b32.xlu0 %v648, 113
        %v652 = vpop.permute.xlu0 %651
        %vm653 = vcmask 924672
        %v654 = vsel %vm653, %v650, %v652
        %v658 = vmul.f32 %v650, 0.0
        %v659 = vmul.f32 %v610, %v654
        %v660 = vmul.f32 %v611, %v652
        %v661 = vmul.f32 %v612, %v654
        %v662 = vmul.f32 %v613, %v652
        %663 = vrot.lane.b32.xlu0 %v621, 127
        %v664 = vpop.permute.xlu0 %663
        %665 = vrot.lane.b32.xlu0 %v625, 127
        %v666 = vpop.permute.xlu0 %665
        %vm667 = vcmask 1039360
        %v668 = vsel %vm667, %v664, %v666
        %v672 = vmul.f32 %v664, 0.0
        %v673 = vmul.f32 %v610, %v668
        %v674 = vmul.f32 %v611, %v666
        %v675 = vmul.f32 %v612, %v668
        %v676 = vmul.f32 %v613, %v666
        %677 = vrot.lane.b32.xlu0 %v644, 1
        %v678 = vpop.permute.xlu0 %677
        %679 = vrot.lane.b32.xlu0 %v648, 1
        %v680 = vpop.permute.xlu0 %679
        %vm681 = vcmask 7168
        %v682 = vsel %vm681, %v678, %v680
        %v686 = vmul.f32 %v610, %v678
        %v687 = vmul.f32 %v611, %v682
        %v688 = vmul.f32 %v680, 0.0
        %v689 = vmul.f32 %v612, %v678
        %v690 = vmul.f32 %v613, %v682
        %691 = vrot.lane.b32.xlu0 %v621, 15
        %v692 = vpop.permute.xlu0 %691
        %693 = vrot.lane.b32.xlu0 %v625, 15
        %v694 = vpop.permute.xlu0 %693
        %vm695 = vcmask 121856
        %v696 = vsel %vm695, %v692, %v694
        %v700 = vmul.f32 %v610, %v692
        %v701 = vmul.f32 %v611, %v696
        %v702 = vmul.f32 %v694, 0.0
        %v703 = vmul.f32 %v612, %v692
        %v704 = vmul.f32 %v613, %v696
        %705 = vrot.lane.b32.xlu0 %v644, 17
        %v706 = vpop.permute.xlu0 %705
        %707 = vrot.lane.b32.xlu0 %v648, 17
        %v708 = vpop.permute.xlu0 %707
        %vm709 = vcmask 138240
        %v710 = vsel %vm709, %v706, %v708
        %v714 = vmul.f32 %v610, %v706
        %v715 = vmul.f32 %v611, %v710
        %v716 = vmul.f32 %v708, 0.0
        %v717 = vmul.f32 %v612, %v706
        %v718 = vmul.f32 %v613, %v710
        %724 = vrot.lane.b32.xlu0 0.0, 127
        %v725 = vpop.permute.xlu0 %724
        %726 = vrot.lane.b32.xlu0 %v610, 127
        %v727 = vpop.permute.xlu0 %726
        %728 = vrot.lane.b32.xlu0 %v611, 127
        %v729 = vpop.permute.xlu0 %728
        %730 = vrot.lane.b32.xlu0 %v612, 127
        %v731 = vpop.permute.xlu0 %730
        %732 = vrot.lane.b32.xlu0 %v613, 127
        %v733 = vpop.permute.xlu0 %732
        %v734 = vsel %vm667, %v725, %v727
        %v735 = vsel %vm667, %v727, %v729
        %v736 = vsel %vm667, %v725, %v731
        %v737 = vsel %vm667, %v731, %v733
        %743 = vrot.lane.b32.xlu0 %v658, 126
        %v744 = vpop.permute.xlu0 %743
        %745 = vrot.lane.b32.xlu0 %v659, 126
        %v746 = vpop.permute.xlu0 %745
        %747 = vrot.lane.b32.xlu0 %v660, 126
        %v748 = vpop.permute.xlu0 %747
        %749 = vrot.lane.b32.xlu0 %v661, 126
        %v750 = vpop.permute.xlu0 %749
        %751 = vrot.lane.b32.xlu0 %v662, 126
        %v752 = vpop.permute.xlu0 %751
        %vm753 = vcmask 1031168
        %v754 = vsel %vm753, %v744, %v746
        %v755 = vsel %vm753, %v746, %v748
        %v756 = vsel %vm753, %v744, %v750
        %v757 = vsel %vm753, %v750, %v752
        %763 = vrot.lane.b32.xlu0 %v672, 112
        %v764 = vpop.permute.xlu0 %763
        %765 = vrot.lane.b32.xlu0 %v673, 112
        %v766 = vpop.permute.xlu0 %765
        %767 = vrot.lane.b32.xlu0 %v674, 112
        %v768 = vpop.permute.xlu0 %767
        %769 = vrot.lane.b32.xlu0 %v675, 112
        %v770 = vpop.permute.xlu0 %769
        %771 = vrot.lane.b32.xlu0 %v676, 112
        %v772 = vpop.permute.xlu0 %771
        %vm773 = vcmask 916480
        %v774 = vsel %vm773, %v764, %v766
        %v775 = vsel %vm773, %v766, %v768
        %v776 = vsel %vm773, %v764, %v770
        %v777 = vsel %vm773, %v770, %v772
        %778 = vrot.lane.b32.xlu0 %v610, 111
        %v779 = vpop.permute.xlu0 %778
        %780 = vrot.lane.b32.xlu0 %v611, 111
        %v781 = vpop.permute.xlu0 %780
        %782 = vrot.lane.b32.xlu0 %v612, 111
        %v783 = vpop.permute.xlu0 %782
        %784 = vrot.lane.b32.xlu0 %v613, 111
        %v785 = vpop.permute.xlu0 %784
        %v786 = vsel %vm630, %v779, %v781
        %v787 = vsel %vm630, %v783, %v785
        %793 = vrot.lane.b32.xlu0 %v686, 110
        %v794 = vpop.permute.xlu0 %793
        %795 = vrot.lane.b32.xlu0 %v687, 110
        %v796 = vpop.permute.xlu0 %795
        %797 = vrot.lane.b32.xlu0 %v688, 110
        %v798 = vpop.permute.xlu0 %797
        %799 = vrot.lane.b32.xlu0 %v689, 110
        %v800 = vpop.permute.xlu0 %799
        %801 = vrot.lane.b32.xlu0 %v690, 110
        %v802 = vpop.permute.xlu0 %801
        %vm803 = vcmask 900096
        %v804 = vsel %vm803, %v794, %v796
        %v805 = vsel %vm803, %v796, %v798
        %v806 = vsel %vm803, %v800, %v802
        %v807 = vsel %vm803, %v802, %v798
        %813 = vrot.lane.b32.xlu0 %v700, 96
        %v814 = vpop.permute.xlu0 %813
        %815 = vrot.lane.b32.xlu0 %v701, 96
        %v816 = vpop.permute.xlu0 %815
        %817 = vrot.lane.b32.xlu0 %v702, 96
        %v818 = vpop.permute.xlu0 %817
        %819 = vrot.lane.b32.xlu0 %v703, 96
        %v820 = vpop.permute.xlu0 %819
        %821 = vrot.lane.b32.xlu0 %v704, 96
        %v822 = vpop.permute.xlu0 %821
        %vm823 = vcmask 785408
        %v824 = vsel %vm823, %v814, %v816
        %v825 = vsel %vm823, %v816, %v818
        %v826 = vsel %vm823, %v820, %v822
        %v827 = vsel %vm823, %v822, %v818
        %828 = vrot.lane.b32.xlu0 %v610, 95
        %v829 = vpop.permute.xlu0 %828
        %830 = vrot.lane.b32.xlu0 %v611, 95
        %v831 = vpop.permute.xlu0 %830
        %832 = vrot.lane.b32.xlu0 0.0, 95
        %v833 = vpop.permute.xlu0 %832
        %834 = vrot.lane.b32.xlu0 %v612, 95
        %v835 = vpop.permute.xlu0 %834
        %836 = vrot.lane.b32.xlu0 %v613, 95
        %v837 = vpop.permute.xlu0 %836
        %vm838 = vcmask 777216
        %v839 = vsel %vm838, %v829, %v831
        %v840 = vsel %vm838, %v831, %v833
        %v841 = vsel %vm838, %v835, %v837
        %v842 = vsel %vm838, %v837, %v833
        %848 = vrot.lane.b32.xlu0 %v714, 94
        %v849 = vpop.permute.xlu0 %848
        %850 = vrot.lane.b32.xlu0 %v715, 94
        %v851 = vpop.permute.xlu0 %850
        %852 = vrot.lane.b32.xlu0 %v716, 94
        %v853 = vpop.permute.xlu0 %852
        %854 = vrot.lane.b32.xlu0 %v717, 94
        %v855 = vpop.permute.xlu0 %854
        %856 = vrot.lane.b32.xlu0 %v718, 94
        %v857 = vpop.permute.xlu0 %856
        %vm858 = vcmask 769024
        %v859 = vsel %vm858, %v849, %v851
        %v860 = vsel %vm858, %v851, %v853
        %v861 = vsel %vm858, %v855, %v857
        %v862 = vsel %vm858, %v857, %v853
        %v863 = vld [vmem:[%s5] sm:$0xff]
        %v864 = vld [vmem:[%s5 + $0x8] sm:$0xff]
        %v865 = vld [vmem:[%s5 + $0x10] sm:$0xff]
        %v866 = vld [vmem:[%s5 + $0x18] sm:$0xff]
        %v867 = vld [vmem:[%s6] sm:$0xff]
        %v868 = vld [vmem:[%s6 + $0x8] sm:$0xff]
        %870 = vset.pattern.permute.xlu0 0
        %871 = vperm.xlu0 %870, %v867
        %v872 = vpop.permute.xlu0 %871
        %875 = vset.pattern.permute.xlu0 0
        %876 = vperm.xlu0 %875, %v868
        %v877 = vpop.permute.xlu0 %876
        %884 = vrot.lane.b32.xlu0 %v635, 17
        %v885 = vpop.permute.xlu0 %884
        %886 = vrot.lane.b32.xlu0 %v636, 17
        %v887 = vpop.permute.xlu0 %886
        %888 = vrot.lane.b32.xlu0 %v637, 17
        %v889 = vpop.permute.xlu0 %888
        %890 = vrot.lane.b32.xlu0 %v638, 17
        %v891 = vpop.permute.xlu0 %890
        %892 = vrot.lane.b32.xlu0 %v639, 17
        %v893 = vpop.permute.xlu0 %892
        %894 = vrot.lane.b32.xlu0 %v734, 17
        %v895 = vpop.permute.xlu0 %894
        %896 = vrot.lane.b32.xlu0 %v735, 17
        %v897 = vpop.permute.xlu0 %896
        %898 = vrot.lane.b32.xlu0 %v729, 17
        %v899 = vpop.permute.xlu0 %898
        %900 = vrot.lane.b32.xlu0 %v736, 17
        %v901 = vpop.permute.xlu0 %900
        %902 = vrot.lane.b32.xlu0 %v737, 17
        %v903 = vpop.permute.xlu0 %902
        %904 = vrot.lane.b32.xlu0 %v733, 17
        %v905 = vpop.permute.xlu0 %904
        %906 = vrot.lane.b32.xlu0 %v754, 17
        %v907 = vpop.permute.xlu0 %906
        %908 = vrot.lane.b32.xlu0 %v755, 17
        %v909 = vpop.permute.xlu0 %908
        %910 = vrot.lane.b32.xlu0 %v748, 17
        %v911 = vpop.permute.xlu0 %910
        %912 = vrot.lane.b32.xlu0 %v756, 17
        %v913 = vpop.permute.xlu0 %912
        %914 = vrot.lane.b32.xlu0 %v757, 17
        %v915 = vpop.permute.xlu0 %914
        %916 = vrot.lane.b32.xlu0 %v752, 17
        %v917 = vpop.permute.xlu0 %916
        %918 = vrot.lane.b32.xlu0 %v774, 17
        %v919 = vpop.permute.xlu0 %918
        %920 = vrot.lane.b32.xlu0 %v775, 17
        %v921 = vpop.permute.xlu0 %920
        %922 = vrot.lane.b32.xlu0 %v768, 17
        %v923 = vpop.permute.xlu0 %922
        %924 = vrot.lane.b32.xlu0 %v776, 17
        %v925 = vpop.permute.xlu0 %924
        %926 = vrot.lane.b32.xlu0 %v777, 17
        %v927 = vpop.permute.xlu0 %926
        %928 = vrot.lane.b32.xlu0 %v772, 17
        %v929 = vpop.permute.xlu0 %928
        %930 = vrot.lane.b32.xlu0 %v779, 17
        %v931 = vpop.permute.xlu0 %930
        %932 = vrot.lane.b32.xlu0 %v786, 17
        %v933 = vpop.permute.xlu0 %932
        %934 = vrot.lane.b32.xlu0 %v781, 17
        %v935 = vpop.permute.xlu0 %934
        %936 = vrot.lane.b32.xlu0 %v783, 17
        %v937 = vpop.permute.xlu0 %936
        %938 = vrot.lane.b32.xlu0 %v787, 17
        %v939 = vpop.permute.xlu0 %938
        %940 = vrot.lane.b32.xlu0 %v785, 17
        %v941 = vpop.permute.xlu0 %940
        %942 = vrot.lane.b32.xlu0 %v794, 17
        %v943 = vpop.permute.xlu0 %942
        %944 = vrot.lane.b32.xlu0 %v804, 17
        %v945 = vpop.permute.xlu0 %944
        %946 = vrot.lane.b32.xlu0 %v805, 17
        %v947 = vpop.permute.xlu0 %946
        %948 = vrot.lane.b32.xlu0 %v800, 17
        %v949 = vpop.permute.xlu0 %948
        %950 = vrot.lane.b32.xlu0 %v806, 17
        %v951 = vpop.permute.xlu0 %950
        %952 = vrot.lane.b32.xlu0 %v807, 17
        %v953 = vpop.permute.xlu0 %952
        %954 = vrot.lane.b32.xlu0 %v814, 17
        %v955 = vpop.permute.xlu0 %954
        %956 = vrot.lane.b32.xlu0 %v824, 17
        %v957 = vpop.permute.xlu0 %956
        %958 = vrot.lane.b32.xlu0 %v825, 17
        %v959 = vpop.permute.xlu0 %958
        %960 = vrot.lane.b32.xlu0 %v820, 17
        %v961 = vpop.permute.xlu0 %960
        %962 = vrot.lane.b32.xlu0 %v826, 17
        %v963 = vpop.permute.xlu0 %962
        %964 = vrot.lane.b32.xlu0 %v827, 17
        %v965 = vpop.permute.xlu0 %964
        %966 = vrot.lane.b32.xlu0 %v829, 17
        %v967 = vpop.permute.xlu0 %966
        %968 = vrot.lane.b32.xlu0 %v839, 17
        %v969 = vpop.permute.xlu0 %968
        %970 = vrot.lane.b32.xlu0 %v840, 17
        %v971 = vpop.permute.xlu0 %970
        %972 = vrot.lane.b32.xlu0 %v835, 17
        %v973 = vpop.permute.xlu0 %972
        %974 = vrot.lane.b32.xlu0 %v841, 17
        %v975 = vpop.permute.xlu0 %974
        %976 = vrot.lane.b32.xlu0 %v842, 17
        %v977 = vpop.permute.xlu0 %976
        %978 = vrot.lane.b32.xlu0 %v849, 17
        %v979 = vpop.permute.xlu0 %978
        %980 = vrot.lane.b32.xlu0 %v859, 17
        %v981 = vpop.permute.xlu0 %980
        %982 = vrot.lane.b32.xlu0 %v860, 17
        %v983 = vpop.permute.xlu0 %982
        %984 = vrot.lane.b32.xlu0 %v855, 17
        %v985 = vpop.permute.xlu0 %984
        %986 = vrot.lane.b32.xlu0 %v861, 17
        %v987 = vpop.permute.xlu0 %986
        %988 = vrot.lane.b32.xlu0 %v862, 17
        %v989 = vpop.permute.xlu0 %988
        %v990 = vsel %vm709, %v885, %v887
        %v991 = vsel %vm709, %v887, %v889
        %v992 = vsel %vm709, %v885, %v891
        %v993 = vsel %vm709, %v891, %v893
        %v994 = vsel %vm709, %v895, %v897
        %v995 = vsel %vm709, %v897, %v899
        %v996 = vsel %vm709, %v901, %v903
        %v997 = vsel %vm709, %v903, %v905
        %v998 = vsel %vm709, %v907, %v909
        %v999 = vsel %vm709, %v909, %v911
        %v1000 = vsel %vm709, %v913, %v915
        %v1001 = vsel %vm709, %v915, %v917
        %v1002 = vsel %vm709, %v919, %v921
        %v1003 = vsel %vm709, %v921, %v923
        %v1004 = vsel %vm709, %v925, %v927
        %v1005 = vsel %vm709, %v927, %v929
        %v1006 = vsel %vm709, %v931, %v933
        %v1007 = vsel %vm709, %v933, %v935
        %v1008 = vsel %vm709, %v937, %v939
        %v1009 = vsel %vm709, %v939, %v941
        %v1010 = vsel %vm709, %v943, %v945
        %v1011 = vsel %vm709, %v945, %v947
        %v1012 = vsel %vm709, %v949, %v951
        %v1013 = vsel %vm709, %v951, %v953
        %v1014 = vsel %vm709, %v955, %v957
        %v1015 = vsel %vm709, %v957, %v959
        %v1016 = vsel %vm709, %v961, %v963
        %v1017 = vsel %vm709, %v963, %v965
        %v1018 = vsel %vm709, %v967, %v969
        %v1019 = vsel %vm709, %v969, %v971
        %v1020 = vsel %vm709, %v973, %v975
        %v1021 = vsel %vm709, %v975, %v977
        %v1022 = vsel %vm709, %v979, %v981
        %v1023 = vsel %vm709, %v981, %v983
        %v1024 = vsel %vm709, %v985, %v987
        %v1025 = vsel %vm709, %v987, %v989
        %vm1062 = vcmask 130048
        %v1064 = vsel %vm1062, %v864, 0
        %v1067 = vsel %vm1062, %v866, 0
        %1069 = vmatprep.subr.mxu0 %v991
        %1070 = vmatpush1.msra.mxu0 %v990
        %1071 = vmatprep.subr.mxu0 %v993
        %1072 = vmatpush1.msra.mxu0 %v992
        %1073 = vmatprep.subr.mxu0 %v995
        %1074 = vmatpush1.msra.mxu0 %v994
        %1075 = vmatprep.subr.mxu0 %v997
        %1076 = vmatpush1.msra.mxu0 %v996
        %1077 = vmatprep.subr.mxu0 %v999
        %1078 = vmatpush1.msra.mxu0 %v998
        %1079 = vmatprep.subr.mxu0 %v1001
        %1080 = vmatpush1.msra.mxu0 %v1000
        %1081 = vmatprep.subr.mxu0 %v1003
        %1082 = vmatpush1.msra.mxu0 %v1002
        %1083 = vmatprep.subr.mxu0 %v1005
        %1084 = vmatpush1.msra.mxu0 %v1004
        %1085 = vmatprep.subr.mxu0 %v1007
        %1086 = vmatpush1.msra.mxu0 %v1006
        %1087 = vmatprep.subr.mxu0 %v1009
        %1088 = vmatpush1.msra.mxu0 %v1008
        %1089 = vmatprep.subr.mxu0 %v1011
        %1090 = vmatpush1.msra.mxu0 %v1010
        %1091 = vmatprep.subr.mxu0 %v1013
        %1092 = vmatpush1.msra.mxu0 %v1012
        %1093 = vmatprep.subr.mxu0 %v1015
        %1094 = vmatpush1.msra.mxu0 %v1014
        %1095 = vmatprep.subr.mxu0 %v1017
        %1096 = vmatpush1.msra.mxu0 %v1016
        %1097 = vmatprep.subr.mxu0 %v1019
        %1098 = vmatpush1.msra.mxu0 %v1018
        %1099 = vmatprep.subr.mxu0 %v1021
        %1100 = vmatpush1.msra.mxu0 %v1020
        %1101 = vmatprep.subr.mxu0 %v1023
        %1102 = vmatpush1.msra.mxu0 %v1022
        %1103 = vmatprep.subr.mxu0 %v1025
        %1104 = vmatpush1.msra.mxu0 %v1024
        %1105 = vmatprep.subr.mxu0 0.0
        %1106 = vmatpush1.msra.mxu0 0.0
        %1107 = vmatprep.subr.mxu0 0.0
        %1108 = vmatpush1.msra.mxu0 0.0
        %1109 = vmatprep.subr.mxu0 0.0
        %1110 = vmatpush1.msra.mxu0 0.0
        %1111 = vmatprep.subr.mxu0 0.0
        %1112 = vmatpush1.msra.mxu0 0.0
        %1113 = vmatprep.subr.mxu0 0.0
        %1114 = vmatpush1.msra.mxu0 0.0
        %1115 = vmatprep.subr.mxu0 0.0
        %1116 = vmatpush1.msra.mxu0 0.0
        %1117 = vmatprep.subr.mxu0 0.0
        %1118 = vmatpush1.msra.mxu0 0.0
        %1119 = vmatprep.subr.mxu0 0.0
        %1120 = vmatpush1.msra.mxu0 0.0
        %1121 = vmatprep.subr.mxu0 0.0
        %1122 = vmatpush1.msra.mxu0 0.0
        %1123 = vmatprep.subr.mxu0 0.0
        %1124 = vmatpush1.msra.mxu0 0.0
        %1125 = vmatprep.subr.mxu0 0.0
        %1126 = vmatpush1.msra.mxu0 0.0
        %1127 = vmatprep.subr.mxu0 0.0
        %1128 = vmatpush1.msra.mxu0 0.0
        %1129 = vmatprep.subr.mxu0 0.0
        %1130 = vmatpush1.msra.mxu0 0.0
        %1131 = vmatprep.subr.mxu0 0.0
        %1132 = vmatpush1.msra.mxu0 0.0
        %1133 = vmatprep.mubr.f32.mxu0 %v1064
        %1134 = vmatmul.mubr.f32.gmra.mrb[0].mxu0 %v863
        %v1135 = vpop.f32.mrb[0].mxu0
        %v1136 = vadd.f32 %v872, %v1135
        %v1137 = vpop.f32.mrb[0].mxu0
        %v1138 = vadd.f32 %v872, %v1137
        %1139 = vmatprep.mubr.f32.mxu0 %v1067
        %1140 = vmatmul.mubr.f32.gmra.mrb[0].mxu0 %v865
        %v1141 = vpop.f32.mrb[0].mxu0
        %v1142 = vadd.f32 %v877, %v1141
        %v1143 = vpop.f32.mrb[0].mxu0
        %v1144 = vadd.f32 %v877, %v1143
        %1145 = vdwg.mxu0
        %vm1146 = vcmp.gt.f32.partialorder %v1136, 0.0
        %vm1147 = vcmp.gt.f32.partialorder %v1138, 0.0
        %vm1148 = vcmp.gt.f32.partialorder %v1142, 0.0
        %vm1149 = vcmp.gt.f32.partialorder %v1144, 0.0
        %v1150 = vmin.f32 %v1136, 0.0
        %v1151 = vmin.f32 %v1138, 0.0
        %v1152 = vmin.f32 %v1142, 0.0
        %v1153 = vmin.f32 %v1144, 0.0
        %v1154 = vmul.f32 %v1150, 1.442695
        %v1155 = vpow.pop %v1154
        %v1156 = vmul.f32 %v1151, 1.442695
        %v1157 = vpow.pop %v1156
        %v1158 = vmul.f32 %v1152, 1.442695
        %v1159 = vpow.pop %v1158
        %v1160 = vmul.f32 %v1153, 1.442695
        %v1161 = vpow.pop %v1160
        %v1162 = vsub.f32 %v1155, 1.0
        %v1163 = vsub.f32 %v1157, 1.0
        %v1164 = vsub.f32 %v1159, 1.0
        %v1165 = vsub.f32 %v1161, 1.0
        %v1166 = vsel %vm1146, %v1136, %v1162
        %v1167 = vsel %vm1147, %v1138, %v1163
        %v1168 = vsel %vm1148, %v1142, %v1164
        %v1169 = vsel %vm1149, %v1144, %v1165
        %v1170 = vld [vmem:[%s7] sm:$0xf]
        %v1171 = vld [vmem:[%s8] sm:$0xf]
        %1173 = vset.pattern.permute.xlu0 0
        %1174 = vperm.xlu0 %1173, %v1171
        %v1175 = vpop.permute.xlu0 %1174
        %v1178 = vsel %vm1062, %v1170, 0
        %1180 = vmatprep.subr.mxu0 %v1167
        %1181 = vmatpush1.msra.mxu0 %v1166
        %1182 = vmatprep.subr.mxu0 %v1169
        %1183 = vmatpush1.msra.mxu0 %v1168
        %1184 = vmatprep.subr.mxu0 0.0
        %1185 = vmatpush1.msra.mxu0 0.0
        %1186 = vmatprep.subr.mxu0 0.0
        %1187 = vmatpush1.msra.mxu0 0.0
        %1188 = vmatprep.subr.mxu0 0.0
        %1189 = vmatpush1.msra.mxu0 0.0
        %1190 = vmatprep.subr.mxu0 0.0
        %1191 = vmatpush1.msra.mxu0 0.0
        %1192 = vmatprep.subr.mxu0 0.0
        %1193 = vmatpush1.msra.mxu0 0.0
        %1194 = vmatprep.subr.mxu0 0.0
        %1195 = vmatpush1.msra.mxu0 0.0
        %1196 = vmatprep.subr.mxu0 0.0
        %1197 = vmatpush1.msra.mxu0 0.0
        %1198 = vmatprep.subr.mxu0 0.0
        %1199 = vmatpush1.msra.mxu0 0.0
        %1200 = vmatprep.subr.mxu0 0.0
        %1201 = vmatpush1.msra.mxu0 0.0
        %1202 = vmatprep.subr.mxu0 0.0
        %1203 = vmatpush1.msra.mxu0 0.0
        %1204 = vmatprep.subr.mxu0 0.0
        %1205 = vmatpush1.msra.mxu0 0.0
        %1206 = vmatprep.subr.mxu0 0.0
        %1207 = vmatpush1.msra.mxu0 0.0
        %1208 = vmatprep.subr.mxu0 0.0
        %1209 = vmatpush1.msra.mxu0 0.0
        %1210 = vmatprep.subr.mxu0 0.0
        %1211 = vmatpush1.msra.mxu0 0.0
        %1212 = vmatprep.subr.mxu0 0.0
        %1213 = vmatpush1.msra.mxu0 0.0
        %1214 = vmatprep.subr.mxu0 0.0
        %1215 = vmatpush1.msra.mxu0 0.0
        %1216 = vmatprep.subr.mxu0 0.0
        %1217 = vmatpush1.msra.mxu0 0.0
        %1218 = vmatprep.subr.mxu0 0.0
        %1219 = vmatpush1.msra.mxu0 0.0
        %1220 = vmatprep.subr.mxu0 0.0
        %1221 = vmatpush1.msra.mxu0 0.0
        %1222 = vmatprep.subr.mxu0 0.0
        %1223 = vmatpush1.msra.mxu0 0.0
        %1224 = vmatprep.subr.mxu0 0.0
        %1225 = vmatpush1.msra.mxu0 0.0
        %1226 = vmatprep.subr.mxu0 0.0
        %1227 = vmatpush1.msra.mxu0 0.0
        %1228 = vmatprep.subr.mxu0 0.0
        %1229 = vmatpush1.msra.mxu0 0.0
        %1230 = vmatprep.subr.mxu0 0.0
        %1231 = vmatpush1.msra.mxu0 0.0
        %1232 = vmatprep.subr.mxu0 0.0
        %1233 = vmatpush1.msra.mxu0 0.0
        %1234 = vmatprep.subr.mxu0 0.0
        %1235 = vmatpush1.msra.mxu0 0.0
        %1236 = vmatprep.subr.mxu0 0.0
        %1237 = vmatpush1.msra.mxu0 0.0
        %1238 = vmatprep.subr.mxu0 0.0
        %1239 = vmatpush1.msra.mxu0 0.0
        %1240 = vmatprep.subr.mxu0 0.0
        %1241 = vmatpush1.msra.mxu0 0.0
        %1242 = vmatprep.subr.mxu0 0.0
        %1243 = vmatpush1.msra.mxu0 0.0
        %1244 = vmatprep.mubr.f32.mxu0 0.0
        %1245 = vmatmul.mubr.f32.gmra.mrb[0].mxu0 %v1178
        %v1246 = vpop.f32.mrb[0].mxu0
        %v1247 = vadd.f32 %v1175, %v1246
        %v1248 = vpop.f32.mrb[0].mxu0
        %v1249 = vadd.f32 %v1175, %v1248
        %1250 = vdwg.mxu0
        %v1251 = vmul.f32 %v389, 0.0625
        %v1252 = vadd.f32 %v388, %v1251
        %v1253 = vmul.f32 %v1247, 0.0625
        %v1254 = vmul.f32 %v1249, 0.0625
        %v1257 = vcombine.low %v1253, %v1254
        %v1259 = vadd.f32 %v389, %v1257
        %v1261 = vcombine.high %v1259, %v1259
        %v1262 = vsel %vm403, %v1259, 0
        %v1264 = vsel %vm403, %v1261, 0
        %1266 = vmatprep.subr.mxu0 %v1264
        %1267 = vmatpush1.msra.mxu0 %v1262
        %1268 = vmatprep.subr.mxu0 0.0
        %1269 = vmatpush1.msra.mxu0 0.0
        %1270 = vmatprep.subr.mxu0 0.0
        %1271 = vmatpush1.msra.mxu0 0.0
        %1272 = vmatprep.subr.mxu0 0.0
        %1273 = vmatpush1.msra.mxu0 0.0
        %1274 = vmatprep.subr.mxu0 0.0
        %1275 = vmatpush1.msra.mxu0 0.0
        %1276 = vmatprep.subr.mxu0 0.0
        %1277 = vmatpush1.msra.mxu0 0.0
        %1278 = vmatprep.subr.mxu0 0.0
        %1279 = vmatpush1.msra.mxu0 0.0
        %1280 = vmatprep.subr.mxu0 0.0
        %1281 = vmatpush1.msra.mxu0 0.0
        %1282 = vmatprep.subr.mxu0 0.0
        %1283 = vmatpush1.msra.mxu0 0.0
        %1284 = vmatprep.subr.mxu0 0.0
        %1285 = vmatpush1.msra.mxu0 0.0
        %1286 = vmatprep.subr.mxu0 0.0
        %1287 = vmatpush1.msra.mxu0 0.0
        %1288 = vmatprep.subr.mxu0 0.0
        %1289 = vmatpush1.msra.mxu0 0.0
        %1290 = vmatprep.subr.mxu0 0.0
        %1291 = vmatpush1.msra.mxu0 0.0
        %1292 = vmatprep.subr.mxu0 0.0
        %1293 = vmatpush1.msra.mxu0 0.0
        %1294 = vmatprep.subr.mxu0 0.0
        %1295 = vmatpush1.msra.mxu0 0.0
        %1296 = vmatprep.subr.mxu0 0.0
        %1297 = vmatpush1.msra.mxu0 0.0
        %1298 = vmatprep.subr.mxu0 0.0
        %1299 = vmatpush1.msra.mxu0 0.0
        %1300 = vmatprep.subr.mxu0 0.0
        %1301 = vmatpush1.msra.mxu0 0.0
        %1302 = vmatprep.subr.mxu0 0.0
        %1303 = vmatpush1.msra.mxu0 0.0
        %1304 = vmatprep.subr.mxu0 0.0
        %1305 = vmatpush1.msra.mxu0 0.0
        %1306 = vmatprep.subr.mxu0 0.0
        %1307 = vmatpush1.msra.mxu0 0.0
        %1308 = vmatprep.subr.mxu0 0.0
        %1309 = vmatpush1.msra.mxu0 0.0
        %1310 = vmatprep.subr.mxu0 0.0
        %1311 = vmatpush1.msra.mxu0 0.0
        %1312 = vmatprep.subr.mxu0 0.0
        %1313 = vmatpush1.msra.mxu0 0.0
        %1314 = vmatprep.subr.mxu0 0.0
        %1315 = vmatpush1.msra.mxu0 0.0
        %1316 = vmatprep.subr.mxu0 0.0
        %1317 = vmatpush1.msra.mxu0 0.0
        %1318 = vmatprep.subr.mxu0 0.0
        %1319 = vmatpush1.msra.mxu0 0.0
        %1320 = vmatprep.subr.mxu0 0.0
        %1321 = vmatpush1.msra.mxu0 0.0
        %1322 = vmatprep.subr.mxu0 0.0
        %1323 = vmatpush1.msra.mxu0 0.0
        %1324 = vmatprep.subr.mxu0 0.0
        %1325 = vmatpush1.msra.mxu0 0.0
        %1326 = vmatprep.subr.mxu0 0.0
        %1327 = vmatpush1.msra.mxu0 0.0
        %1328 = vmatprep.subr.mxu0 0.0
        %1329 = vmatpush1.msra.mxu0 0.0
        %1330 = vmatprep.mubr.f32.mxu0 0.0
        %1331 = vmatmul.mubr.f32.gmra.mrb[0].mxu0 %v398
        %v1332 = vpop.f32.mrb[0].mxu0
        %v1333 = vadd.f32 0.0, %v1332
        %v1334 = vpop.f32.mrb[0].mxu0
        %v1335 = vadd.f32 0.0, %v1334
        %1336 = vmatprep.mubr.f32.mxu0 0.0
        %1337 = vmatmul.mubr.f32.gmra.mrb[0].mxu0 %v401
        %v1338 = vpop.f32.mrb[0].mxu0
        %v1339 = vadd.f32 0.0, %v1338
        %v1340 = vpop.f32.mrb[0].mxu0
        %v1341 = vadd.f32 0.0, %v1340
        %1342 = vdwg.mxu0
        %v1344 = vcombine.high %v1252, %v1252
        %v1345 = vsel %vm403, %v1252, 0
        %v1347 = vsel %vm403, %v1344, 0
        %1349 = vmatprep.subr.mxu0 %v1347
        %1350 = vmatpush1.msra.mxu0 %v1345
        %1351 = vmatprep.subr.mxu0 0.0
        %1352 = vmatpush1.msra.mxu0 0.0
        %1353 = vmatprep.subr.mxu0 0.0
        %1354 = vmatpush1.msra.mxu0 0.0
        %1355 = vmatprep.subr.mxu0 0.0
        %1356 = vmatpush1.msra.mxu0 0.0
        %1357 = vmatprep.subr.mxu0 0.0
        %1358 = vmatpush1.msra.mxu0 0.0
        %1359 = vmatprep.subr.mxu0 0.0
        %1360 = vmatpush1.msra.mxu0 0.0
        %1361 = vmatprep.subr.mxu0 0.0
        %1362 = vmatpush1.msra.mxu0 0.0
        %1363 = vmatprep.subr.mxu0 0.0
        %1364 = vmatpush1.msra.mxu0 0.0
        %1365 = vmatprep.subr.mxu0 0.0
        %1366 = vmatpush1.msra.mxu0 0.0
        %1367 = vmatprep.subr.mxu0 0.0
        %1368 = vmatpush1.msra.mxu0 0.0
        %1369 = vmatprep.subr.mxu0 0.0
        %1370 = vmatpush1.msra.mxu0 0.0
        %1371 = vmatprep.subr.mxu0 0.0
        %1372 = vmatpush1.msra.mxu0 0.0
        %1373 = vmatprep.subr.mxu0 0.0
        %1374 = vmatpush1.msra.mxu0 0.0
        %1375 = vmatprep.subr.mxu0 0.0
        %1376 = vmatpush1.msra.mxu0 0.0
        %1377 = vmatprep.subr.mxu0 0.0
        %1378 = vmatpush1.msra.mxu0 0.0
        %1379 = vmatprep.subr.mxu0 0.0
        %1380 = vmatpush1.msra.mxu0 0.0
        %1381 = vmatprep.subr.mxu0 0.0
        %1382 = vmatpush1.msra.mxu0 0.0
        %1383 = vmatprep.subr.mxu0 0.0
        %1384 = vmatpush1.msra.mxu0 0.0
        %1385 = vmatprep.subr.mxu0 0.0
        %1386 = vmatpush1.msra.mxu0 0.0
        %1387 = vmatprep.subr.mxu0 0.0
        %1388 = vmatpush1.msra.mxu0 0.0
        %1389 = vmatprep.subr.mxu0 0.0
        %1390 = vmatpush1.msra.mxu0 0.0
        %1391 = vmatprep.subr.mxu0 0.0
        %1392 = vmatpush1.msra.mxu0 0.0
        %1393 = vmatprep.subr.mxu0 0.0
        %1394 = vmatpush1.msra.mxu0 0.0
        %1395 = vmatprep.subr.mxu0 0.0
        %1396 = vmatpush1.msra.mxu0 0.0
        %1397 = vmatprep.subr.mxu0 0.0
        %1398 = vmatpush1.msra.mxu0 0.0
        %1399 = vmatprep.subr.mxu0 0.0
        %1400 = vmatpush1.msra.mxu0 0.0
        %1401 = vmatprep.subr.mxu0 0.0
        %1402 = vmatpush1.msra.mxu0 0.0
        %1403 = vmatprep.subr.mxu0 0.0
        %1404 = vmatpush1.msra.mxu0 0.0
        %1405 = vmatprep.subr.mxu0 0.0
        %1406 = vmatpush1.msra.mxu0 0.0
        %1407 = vmatprep.subr.mxu0 0.0
        %1408 = vmatpush1.msra.mxu0 0.0
        %1409 = vmatprep.subr.mxu0 0.0
        %1410 = vmatpush1.msra.mxu0 0.0
        %1411 = vmatprep.subr.mxu0 0.0
        %1412 = vmatpush1.msra.mxu0 0.0
        %1413 = vmatprep.mubr.f32.mxu0 0.0
        %1414 = vmatmul.mubr.f32.gmra.mrb[0].mxu0 %v488
        %v1415 = vpop.f32.mrb[0].mxu0
        %v1416 = vadd.f32 %v1333, %v1415
        %v1417 = vpop.f32.mrb[0].mxu0
        %v1418 = vadd.f32 %v1335, %v1417
        %1419 = vmatprep.mubr.f32.mxu0 0.0
        %1420 = vmatmul.mubr.f32.gmra.mrb[0].mxu0 %v491
        %v1421 = vpop.f32.mrb[0].mxu0
        %v1422 = vadd.f32 %v1339, %v1421
        %v1423 = vpop.f32.mrb[0].mxu0
        %v1424 = vadd.f32 %v1341, %v1423
        %1425 = vdwg.mxu0
        %v1426 = vadd.f32 %v1416, %v579
        %v1427 = vadd.f32 %v1418, %v579
        %v1428 = vadd.f32 %v1422, %v584
        %v1429 = vadd.f32 %v1424, %v584
        %vm1430 = vcmp.gt.f32.partialorder %v1426, 0.0
        %vm1431 = vcmp.gt.f32.partialorder %v1427, 0.0
        %vm1432 = vcmp.gt.f32.partialorder %v1428, 0.0
        %vm1433 = vcmp.gt.f32.partialorder %v1429, 0.0
        %v1434 = vmin.f32 %v1426, 0.0
        %v1435 = vmin.f32 %v1427, 0.0
        %v1436 = vmin.f32 %v1428, 0.0
        %v1437 = vmin.f32 %v1429, 0.0
        %v1438 = vmul.f32 %v1434, 1.442695
        %v1439 = vpow.pop %v1438
        %v1440 = vmul.f32 %v1435, 1.442695
        %v1441 = vpow.pop %v1440
        %v1442 = vmul.f32 %v1436, 1.442695
        %v1443 = vpow.pop %v1442
        %v1444 = vmul.f32 %v1437, 1.442695
        %v1445 = vpow.pop %v1444
        %v1446 = vsub.f32 %v1439, 1.0
        %v1447 = vsub.f32 %v1441, 1.0
        %v1448 = vsub.f32 %v1443, 1.0
        %v1449 = vsub.f32 %v1445, 1.0
        %v1450 = vsel %vm1430, %v1426, %v1446
        %v1451 = vsel %vm1431, %v1427, %v1447
        %v1452 = vsel %vm1432, %v1428, %v1448
        %v1453 = vsel %vm1433, %v1429, %v1449
        %v1454 = vmul.f32 %v1450, %v631
        %v1455 = vmul.f32 %v1451, %v629
        %v1456 = vmul.f32 %v1452, %v631
        %v1457 = vmul.f32 %v1453, %v629
        %v1458 = vmul.f32 %v1450, %v654
        %v1459 = vmul.f32 %v1451, %v652
        %v1460 = vmul.f32 %v1452, %v654
        %v1461 = vmul.f32 %v1453, %v652
        %v1462 = vmul.f32 %v1450, %v668
        %v1463 = vmul.f32 %v1451, %v666
        %v1464 = vmul.f32 %v1452, %v668
        %v1465 = vmul.f32 %v1453, %v666
        %v1466 = vmul.f32 %v1450, %v678
        %v1467 = vmul.f32 %v1451, %v682
        %v1468 = vmul.f32 %v1452, %v678
        %v1469 = vmul.f32 %v1453, %v682
        %v1470 = vmul.f32 %v1450, %v692
        %v1471 = vmul.f32 %v1451, %v696
        %v1472 = vmul.f32 %v1452, %v692
        %v1473 = vmul.f32 %v1453, %v696
        %v1474 = vmul.f32 %v1450, %v706
        %v1475 = vmul.f32 %v1451, %v710
        %v1476 = vmul.f32 %v1452, %v706
        %v1477 = vmul.f32 %v1453, %v710
        %1482 = vrot.lane.b32.xlu0 %v1450, 127
        %v1483 = vpop.permute.xlu0 %1482
        %1484 = vrot.lane.b32.xlu0 %v1451, 127
        %v1485 = vpop.permute.xlu0 %1484
        %1486 = vrot.lane.b32.xlu0 %v1452, 127
        %v1487 = vpop.permute.xlu0 %1486
        %1488 = vrot.lane.b32.xlu0 %v1453, 127
        %v1489 = vpop.permute.xlu0 %1488
        %v1490 = vsel %vm667, %v725, %v1483
        %v1491 = vsel %vm667, %v1483, %v1485
        %v1492 = vsel %vm667, %v725, %v1487
        %v1493 = vsel %vm667, %v1487, %v1489
        %1498 = vrot.lane.b32.xlu0 %v1458, 126
        %v1499 = vpop.permute.xlu0 %1498
        %1500 = vrot.lane.b32.xlu0 %v1459, 126
        %v1501 = vpop.permute.xlu0 %1500
        %1502 = vrot.lane.b32.xlu0 %v1460, 126
        %v1503 = vpop.permute.xlu0 %1502
        %1504 = vrot.lane.b32.xlu0 %v1461, 126
        %v1505 = vpop.permute.xlu0 %1504
        %v1506 = vsel %vm753, %v744, %v1499
        %v1507 = vsel %vm753, %v1499, %v1501
        %v1508 = vsel %vm753, %v744, %v1503
        %v1509 = vsel %vm753, %v1503, %v1505
        %1514 = vrot.lane.b32.xlu0 %v1462, 112
        %v1515 = vpop.permute.xlu0 %1514
        %1516 = vrot.lane.b32.xlu0 %v1463, 112
        %v1517 = vpop.permute.xlu0 %1516
        %1518 = vrot.lane.b32.xlu0 %v1464, 112
        %v1519 = vpop.permute.xlu0 %1518
        %1520 = vrot.lane.b32.xlu0 %v1465, 112
        %v1521 = vpop.permute.xlu0 %1520
        %v1522 = vsel %vm773, %v764, %v1515
        %v1523 = vsel %vm773, %v1515, %v1517
        %v1524 = vsel %vm773, %v764, %v1519
        %v1525 = vsel %vm773, %v1519, %v1521
        %1526 = vrot.lane.b32.xlu0 %v1450, 111
        %v1527 = vpop.permute.xlu0 %1526
        %1528 = vrot.lane.b32.xlu0 %v1451, 111
        %v1529 = vpop.permute.xlu0 %1528
        %1530 = vrot.lane.b32.xlu0 %v1452, 111
        %v1531 = vpop.permute.xlu0 %1530
        %1532 = vrot.lane.b32.xlu0 %v1453, 111
        %v1533 = vpop.permute.xlu0 %1532
        %v1534 = vsel %vm630, %v1527, %v1529
        %v1535 = vsel %vm630, %v1531, %v1533
        %1540 = vrot.lane.b32.xlu0 %v1466, 110
        %v1541 = vpop.permute.xlu0 %1540
        %1542 = vrot.lane.b32.xlu0 %v1467, 110
        %v1543 = vpop.permute.xlu0 %1542
        %1544 = vrot.lane.b32.xlu0 %v1468, 110
        %v1545 = vpop.permute.xlu0 %1544
        %1546 = vrot.lane.b32.xlu0 %v1469, 110
        %v1547 = vpop.permute.xlu0 %1546
        %v1548 = vsel %vm803, %v1541, %v1543
        %v1549 = vsel %vm803, %v1543, %v798
        %v1550 = vsel %vm803, %v1545, %v1547
        %v1551 = vsel %vm803, %v1547, %v798
        %1556 = vrot.lane.b32.xlu0 %v1470, 96
        %v1557 = vpop.permute.xlu0 %1556
        %1558 = vrot.lane.b32.xlu0 %v1471, 96
        %v1559 = vpop.permute.xlu0 %1558
        %1560 = vrot.lane.b32.xlu0 %v1472, 96
        %v1561 = vpop.permute.xlu0 %1560
        %1562 = vrot.lane.b32.xlu0 %v1473, 96
        %v1563 = vpop.permute.xlu0 %1562
        %v1564 = vsel %vm823, %v1557, %v1559
        %v1565 = vsel %vm823, %v1559, %v818
        %v1566 = vsel %vm823, %v1561, %v1563
        %v1567 = vsel %vm823, %v1563, %v818
        %1568 = vrot.lane.b32.xlu0 %v1450, 95
        %v1569 = vpop.permute.xlu0 %1568
        %1570 = vrot.lane.b32.xlu0 %v1451, 95
        %v1571 = vpop.permute.xlu0 %1570
        %1572 = vrot.lane.b32.xlu0 %v1452, 95
        %v1573 = vpop.permute.xlu0 %1572
        %1574 = vrot.lane.b32.xlu0 %v1453, 95
        %v1575 = vpop.permute.xlu0 %1574
        %v1576 = vsel %vm838, %v1569, %v1571
        %v1577 = vsel %vm838, %v1571, %v833
        %v1578 = vsel %vm838, %v1573, %v1575
        %v1579 = vsel %vm838, %v1575, %v833
        %1584 = vrot.lane.b32.xlu0 %v1474, 94
        %v1585 = vpop.permute.xlu0 %1584
        %1586 = vrot.lane.b32.xlu0 %v1475, 94
        %v1587 = vpop.permute.xlu0 %1586
        %1588 = vrot.lane.b32.xlu0 %v1476, 94
        %v1589 = vpop.permute.xlu0 %1588
        %1590 = vrot.lane.b32.xlu0 %v1477, 94
        %v1591 = vpop.permute.xlu0 %1590
        %v1592 = vsel %vm858, %v1585, %v1587
        %v1593 = vsel %vm858, %v1587, %v853
        %v1594 = vsel %vm858, %v1589, %v1591
        %v1595 = vsel %vm858, %v1591, %v853
        %1600 = vrot.lane.b32.xlu0 %v1454, 17
        %v1601 = vpop.permute.xlu0 %1600
        %1602 = vrot.lane.b32.xlu0 %v1455, 17
        %v1603 = vpop.permute.xlu0 %1602
        %1604 = vrot.lane.b32.xlu0 %v1456, 17
        %v1605 = vpop.permute.xlu0 %1604
        %1606 = vrot.lane.b32.xlu0 %v1457, 17
        %v1607 = vpop.permute.xlu0 %1606
        %1608 = vrot.lane.b32.xlu0 %v1490, 17
        %v1609 = vpop.permute.xlu0 %1608
        %1610 = vrot.lane.b32.xlu0 %v1491, 17
        %v1611 = vpop.permute.xlu0 %1610
        %1612 = vrot.lane.b32.xlu0 %v1485, 17
        %v1613 = vpop.permute.xlu0 %1612
        %1614 = vrot.lane.b32.xlu0 %v1492, 17
        %v1615 = vpop.permute.xlu0 %1614
        %1616 = vrot.lane.b32.xlu0 %v1493, 17
        %v1617 = vpop.permute.xlu0 %1616
        %1618 = vrot.lane.b32.xlu0 %v1489, 17
        %v1619 = vpop.permute.xlu0 %1618
        %1620 = vrot.lane.b32.xlu0 %v1506, 17
        %v1621 = vpop.permute.xlu0 %1620
        %1622 = vrot.lane.b32.xlu0 %v1507, 17
        %v1623 = vpop.permute.xlu0 %1622
        %1624 = vrot.lane.b32.xlu0 %v1501, 17
        %v1625 = vpop.permute.xlu0 %1624
        %1626 = vrot.lane.b32.xlu0 %v1508, 17
        %v1627 = vpop.permute.xlu0 %1626
        %1628 = vrot.lane.b32.xlu0 %v1509, 17
        %v1629 = vpop.permute.xlu0 %1628
        %1630 = vrot.lane.b32.xlu0 %v1505, 17
        %v1631 = vpop.permute.xlu0 %1630
        %1632 = vrot.lane.b32.xlu0 %v1522, 17
        %v1633 = vpop.permute.xlu0 %1632
        %1634 = vrot.lane.b32.xlu0 %v1523, 17
        %v1635 = vpop.permute.xlu0 %1634
        %1636 = vrot.lane.b32.xlu0 %v1517, 17
        %v1637 = vpop.permute.xlu0 %1636
        %1638 = vrot.lane.b32.xlu0 %v1524, 17
        %v1639 = vpop.permute.xlu0 %1638
        %1640 = vrot.lane.b32.xlu0 %v1525, 17
        %v1641 = vpop.permute.xlu0 %1640
        %1642 = vrot.lane.b32.xlu0 %v1521, 17
        %v1643 = vpop.permute.xlu0 %1642
        %1644 = vrot.lane.b32.xlu0 %v1527, 17
        %v1645 = vpop.permute.xlu0 %1644
        %1646 = vrot.lane.b32.xlu0 %v1534, 17
        %v1647 = vpop.permute.xlu0 %1646
        %1648 = vrot.lane.b32.xlu0 %v1529, 17
        %v1649 = vpop.permute.xlu0 %1648
        %1650 = vrot.lane.b32.xlu0 %v1531, 17
        %v1651 = vpop.permute.xlu0 %1650
        %1652 = vrot.lane.b32.xlu0 %v1535, 17
        %v1653 = vpop.permute.xlu0 %1652
        %1654 = vrot.lane.b32.xlu0 %v1533, 17
        %v1655 = vpop.permute.xlu0 %1654
        %1656 = vrot.lane.b32.xlu0 %v1541, 17
        %v1657 = vpop.permute.xlu0 %1656
        %1658 = vrot.lane.b32.xlu0 %v1548, 17
        %v1659 = vpop.permute.xlu0 %1658
        %1660 = vrot.lane.b32.xlu0 %v1549, 17
        %v1661 = vpop.permute.xlu0 %1660
        %1662 = vrot.lane.b32.xlu0 %v1545, 17
        %v1663 = vpop.permute.xlu0 %1662
        %1664 = vrot.lane.b32.xlu0 %v1550, 17
        %v1665 = vpop.permute.xlu0 %1664
        %1666 = vrot.lane.b32.xlu0 %v1551, 17
        %v1667 = vpop.permute.xlu0 %1666
        %1668 = vrot.lane.b32.xlu0 %v1557, 17
        %v1669 = vpop.permute.xlu0 %1668
        %1670 = vrot.lane.b32.xlu0 %v1564, 17
        %v1671 = vpop.permute.xlu0 %1670
        %1672 = vrot.lane.b32.xlu0 %v1565, 17
        %v1673 = vpop.permute.xlu0 %1672
        %1674 = vrot.lane.b32.xlu0 %v1561, 17
        %v1675 = vpop.permute.xlu0 %1674
        %1676 = vrot.lane.b32.xlu0 %v1566, 17
        %v1677 = vpop.permute.xlu0 %1676
        %1678 = vrot.lane.b32.xlu0 %v1567, 17
        %v1679 = vpop.permute.xlu0 %1678
        %1680 = vrot.lane.b32.xlu0 %v1569, 17
        %v1681 = vpop.permute.xlu0 %1680
        %1682 = vrot.lane.b32.xlu0 %v1576, 17
        %v1683 = vpop.permute.xlu0 %1682
        %1684 = vrot.lane.b32.xlu0 %v1577, 17
        %v1685 = vpop.permute.xlu0 %1684
        %1686 = vrot.lane.b32.xlu0 %v1573, 17
        %v1687 = vpop.permute.xlu0 %1686
        %1688 = vrot.lane.b32.xlu0 %v1578, 17
        %v1689 = vpop.permute.xlu0 %1688
        %1690 = vrot.lane.b32.xlu0 %v1579, 17
        %v1691 = vpop.permute.xlu0 %1690
        %1692 = vrot.lane.b32.xlu0 %v1585, 17
        %v1693 = vpop.permute.xlu0 %1692
        %1694 = vrot.lane.b32.xlu0 %v1592, 17
        %v1695 = vpop.permute.xlu0 %1694
        %1696 = vrot.lane.b32.xlu0 %v1593, 17
        %v1697 = vpop.permute.xlu0 %1696
        %1698 = vrot.lane.b32.xlu0 %v1589, 17
        %v1699 = vpop.permute.xlu0 %1698
        %1700 = vrot.lane.b32.xlu0 %v1594, 17
        %v1701 = vpop.permute.xlu0 %1700
        %1702 = vrot.lane.b32.xlu0 %v1595, 17
        %v1703 = vpop.permute.xlu0 %1702
        %v1704 = vsel %vm709, %v885, %v1601
        %v1705 = vsel %vm709, %v1601, %v1603
        %v1706 = vsel %vm709, %v885, %v1605
        %v1707 = vsel %vm709, %v1605, %v1607
        %v1708 = vsel %vm709, %v1609, %v1611
        %v1709 = vsel %vm709, %v1611, %v1613
        %v1710 = vsel %vm709, %v1615, %v1617
        %v1711 = vsel %vm709, %v1617, %v1619
        %v1712 = vsel %vm709, %v1621, %v1623
        %v1713 = vsel %vm709, %v1623, %v1625
        %v1714 = vsel %vm709, %v1627, %v1629
        %v1715 = vsel %vm709, %v1629, %v1631
        %v1716 = vsel %vm709, %v1633, %v1635
        %v1717 = vsel %vm709, %v1635, %v1637
        %v1718 = vsel %vm709, %v1639, %v1641
        %v1719 = vsel %vm709, %v1641, %v1643
        %v1720 = vsel %vm709, %v1645, %v1647
        %v1721 = vsel %vm709, %v1647, %v1649
        %v1722 = vsel %vm709, %v1651, %v1653
        %v1723 = vsel %vm709, %v1653, %v1655
        %v1724 = vsel %vm709, %v1657, %v1659
        %v1725 = vsel %vm709, %v1659, %v1661
        %v1726 = vsel %vm709, %v1663, %v1665
        %v1727 = vsel %vm709, %v1665, %v1667
        %v1728 = vsel %vm709, %v1669, %v1671
        %v1729 = vsel %vm709, %v1671, %v1673
        %v1730 = vsel %vm709, %v1675, %v1677
        %v1731 = vsel %vm709, %v1677, %v1679
        %v1732 = vsel %vm709, %v1681, %v1683
        %v1733 = vsel %vm709, %v1683, %v1685
        %v1734 = vsel %vm709, %v1687, %v1689
        %v1735 = vsel %vm709, %v1689, %v1691
        %v1736 = vsel %vm709, %v1693, %v1695
        %v1737 = vsel %vm709, %v1695, %v1697
        %v1738 = vsel %vm709, %v1699, %v1701
        %v1739 = vsel %vm709, %v1701, %v1703
        %1776 = vmatprep.subr.mxu0 %v1705
        %1777 = vmatpush1.msra.mxu0 %v1704
        %1778 = vmatprep.subr.mxu0 %v1707
        %1779 = vmatpush1.msra.mxu0 %v1706
        %1780 = vmatprep.subr.mxu0 %v1709
        %1781 = vmatpush1.msra.mxu0 %v1708
        %1782 = vmatprep.subr.mxu0 %v1711
        %1783 = vmatpush1.msra.mxu0 %v1710
        %1784 = vmatprep.subr.mxu0 %v1713
        %1785 = vmatpush1.msra.mxu0 %v1712
        %1786 = vmatprep.subr.mxu0 %v1715
        %1787 = vmatpush1.msra.mxu0 %v1714
        %1788 = vmatprep.subr.mxu0 %v1717
        %1789 = vmatpush1.msra.mxu0 %v1716
        %1790 = vmatprep.subr.mxu0 %v1719
        %1791 = vmatpush1.msra.mxu0 %v1718
        %1792 = vmatprep.subr.mxu0 %v1721
        %1793 = vmatpush1.msra.mxu0 %v1720
        %1794 = vmatprep.subr.mxu0 %v1723
        %1795 = vmatpush1.msra.mxu0 %v1722
        %1796 = vmatprep.subr.mxu0 %v1725
        %1797 = vmatpush1.msra.mxu0 %v1724
        %1798 = vmatprep.subr.mxu0 %v1727
        %1799 = vmatpush1.msra.mxu0 %v1726
        %1800 = vmatprep.subr.mxu0 %v1729
        %1801 = vmatpush1.msra.mxu0 %v1728
        %1802 = vmatprep.subr.mxu0 %v1731
        %1803 = vmatpush1.msra.mxu0 %v1730
        %1804 = vmatprep.subr.mxu0 %v1733
        %1805 = vmatpush1.msra.mxu0 %v1732
        %1806 = vmatprep.subr.mxu0 %v1735
        %1807 = vmatpush1.msra.mxu0 %v1734
        %1808 = vmatprep.subr.mxu0 %v1737
        %1809 = vmatpush1.msra.mxu0 %v1736
        %1810 = vmatprep.subr.mxu0 %v1739
        %1811 = vmatpush1.msra.mxu0 %v1738
        %1812 = vmatprep.subr.mxu0 0.0
        %1813 = vmatpush1.msra.mxu0 0.0
        %1814 = vmatprep.subr.mxu0 0.0
        %1815 = vmatpush1.msra.mxu0 0.0
        %1816 = vmatprep.subr.mxu0 0.0
        %1817 = vmatpush1.msra.mxu0 0.0
        %1818 = vmatprep.subr.mxu0 0.0
        %1819 = vmatpush1.msra.mxu0 0.0
        %1820 = vmatprep.subr.mxu0 0.0
        %1821 = vmatpush1.msra.mxu0 0.0
        %1822 = vmatprep.subr.mxu0 0.0
        %1823 = vmatpush1.msra.mxu0 0.0
        %1824 = vmatprep.subr.mxu0 0.0
        %1825 = vmatpush1.msra.mxu0 0.0
        %1826 = vmatprep.subr.mxu0 0.0
        %1827 = vmatpush1.msra.mxu0 0.0
        %1828 = vmatprep.subr.mxu0 0.0
        %1829 = vmatpush1.msra.mxu0 0.0
        %1830 = vmatprep.subr.mxu0 0.0
        %1831 = vmatpush1.msra.mxu0 0.0
        %1832 = vmatprep.subr.mxu0 0.0
        %1833 = vmatpush1.msra.mxu0 0.0
        %1834 = vmatprep.subr.mxu0 0.0
        %1835 = vmatpush1.msra.mxu0 0.0
        %1836 = vmatprep.subr.mxu0 0.0
        %1837 = vmatpush1.msra.mxu0 0.0
        %1838 = vmatprep.subr.mxu0 0.0
        %1839 = vmatpush1.msra.mxu0 0.0
        %1840 = vmatprep.mubr.f32.mxu0 %v1064
        %1841 = vmatmul.mubr.f32.gmra.mrb[0].mxu0 %v863
        %v1842 = vpop.f32.mrb[0].mxu0
        %v1843 = vadd.f32 %v872, %v1842
        %v1844 = vpop.f32.mrb[0].mxu0
        %v1845 = vadd.f32 %v872, %v1844
        %1846 = vmatprep.mubr.f32.mxu0 %v1067
        %1847 = vmatmul.mubr.f32.gmra.mrb[0].mxu0 %v865
        %v1848 = vpop.f32.mrb[0].mxu0
        %v1849 = vadd.f32 %v877, %v1848
        %v1850 = vpop.f32.mrb[0].mxu0
        %v1851 = vadd.f32 %v877, %v1850
        %1852 = vdwg.mxu0
        %vm1853 = vcmp.gt.f32.partialorder %v1843, 0.0
        %vm1854 = vcmp.gt.f32.partialorder %v1845, 0.0
        %vm1855 = vcmp.gt.f32.partialorder %v1849, 0.0
        %vm1856 = vcmp.gt.f32.partialorder %v1851, 0.0
        %v1857 = vmin.f32 %v1843, 0.0
        %v1858 = vmin.f32 %v1845, 0.0
        %v1859 = vmin.f32 %v1849, 0.0
        %v1860 = vmin.f32 %v1851, 0.0
        %v1861 = vmul.f32 %v1857, 1.442695
        %v1862 = vpow.pop %v1861
        %v1863 = vmul.f32 %v1858, 1.442695
        %v1864 = vpow.pop %v1863
        %v1865 = vmul.f32 %v1859, 1.442695
        %v1866 = vpow.pop %v1865
        %v1867 = vmul.f32 %v1860, 1.442695
        %v1868 = vpow.pop %v1867
        %v1869 = vsub.f32 %v1862, 1.0
        %v1870 = vsub.f32 %v1864, 1.0
        %v1871 = vsub.f32 %v1866, 1.0
        %v1872 = vsub.f32 %v1868, 1.0
        %v1873 = vsel %vm1853, %v1843, %v1869
        %v1874 = vsel %vm1854, %v1845, %v1870
        %v1875 = vsel %vm1855, %v1849, %v1871
        %v1876 = vsel %vm1856, %v1851, %v1872
        %1877 = vmatprep.subr.mxu0 %v1874
        %1878 = vmatpush1.msra.mxu0 %v1873
        %1879 = vmatprep.subr.mxu0 %v1876
        %1880 = vmatpush1.msra.mxu0 %v1875
        %1881 = vmatprep.subr.mxu0 0.0
        %1882 = vmatpush1.msra.mxu0 0.0
        %1883 = vmatprep.subr.mxu0 0.0
        %1884 = vmatpush1.msra.mxu0 0.0
        %1885 = vmatprep.subr.mxu0 0.0
        %1886 = vmatpush1.msra.mxu0 0.0
        %1887 = vmatprep.subr.mxu0 0.0
        %1888 = vmatpush1.msra.mxu0 0.0
        %1889 = vmatprep.subr.mxu0 0.0
        %1890 = vmatpush1.msra.mxu0 0.0
        %1891 = vmatprep.subr.mxu0 0.0
        %1892 = vmatpush1.msra.mxu0 0.0
        %1893 = vmatprep.subr.mxu0 0.0
        %1894 = vmatpush1.msra.mxu0 0.0
        %1895 = vmatprep.subr.mxu0 0.0
        %1896 = vmatpush1.msra.mxu0 0.0
        %1897 = vmatprep.subr.mxu0 0.0
        %1898 = vmatpush1.msra.mxu0 0.0
        %1899 = vmatprep.subr.mxu0 0.0
        %1900 = vmatpush1.msra.mxu0 0.0
        %1901 = vmatprep.subr.mxu0 0.0
        %1902 = vmatpush1.msra.mxu0 0.0
        %1903 = vmatprep.subr.mxu0 0.0
        %1904 = vmatpush1.msra.mxu0 0.0
        %1905 = vmatprep.subr.mxu0 0.0
        %1906 = vmatpush1.msra.mxu0 0.0
        %1907 = vmatprep.subr.mxu0 0.0
        %1908 = vmatpush1.msra.mxu0 0.0
        %1909 = vmatprep.subr.mxu0 0.0
        %1910 = vmatpush1.msra.mxu0 0.0
        %1911 = vmatprep.subr.mxu0 0.0
        %1912 = vmatpush1.msra.mxu0 0.0
        %1913 = vmatprep.subr.mxu0 0.0
        %1914 = vmatpush1.msra.mxu0 0.0
        %1915 = vmatprep.subr.mxu0 0.0
        %1916 = vmatpush1.msra.mxu0 0.0
        %1917 = vmatprep.subr.mxu0 0.0
        %1918 = vmatpush1.msra.mxu0 0.0
        %1919 = vmatprep.subr.mxu0 0.0
        %1920 = vmatpush1.msra.mxu0 0.0
        %1921 = vmatprep.subr.mxu0 0.0
        %1922 = vmatpush1.msra.mxu0 0.0
        %1923 = vmatprep.subr.mxu0 0.0
        %1924 = vmatpush1.msra.mxu0 0.0
        %1925 = vmatprep.subr.mxu0 0.0
        %1926 = vmatpush1.msra.mxu0 0.0
        %1927 = vmatprep.subr.mxu0 0.0
        %1928 = vmatpush1.msra.mxu0 0.0
        %1929 = vmatprep.subr.mxu0 0.0
        %1930 = vmatpush1.msra.mxu0 0.0
        %1931 = vmatprep.subr.mxu0 0.0
        %1932 = vmatpush1.msra.mxu0 0.0
        %1933 = vmatprep.subr.mxu0 0.0
        %1934 = vmatpush1.msra.mxu0 0.0
        %1935 = vmatprep.subr.mxu0 0.0
        %1936 = vmatpush1.msra.mxu0 0.0
        %1937 = vmatprep.subr.mxu0 0.0
        %1938 = vmatpush1.msra.mxu0 0.0
        %1939 = vmatprep.subr.mxu0 0.0
        %1940 = vmatpush1.msra.mxu0 0.0
        %1941 = vmatprep.mubr.f32.mxu0 0.0
        %1942 = vmatmul.mubr.f32.gmra.mrb[0].mxu0 %v1178
        %v1943 = vpop.f32.mrb[0].mxu0
        %v1944 = vadd.f32 %v1175, %v1943
        %v1945 = vpop.f32.mrb[0].mxu0
        %v1946 = vadd.f32 %v1175, %v1945
        %1947 = vdwg.mxu0
        %v1948 = vmul.f32 %v1259, 0.0625
        %v1949 = vadd.f32 %v388, %v1948
        %v1950 = vmul.f32 %v1944, 0.0625
        %v1951 = vmul.f32 %v1946, 0.0625
        %v1954 = vcombine.low %v1950, %v1951
        %v1956 = vadd.f32 %v389, %v1954
        %v1958 = vcombine.high %v1956, %v1956
        %v1959 = vsel %vm403, %v1956, 0
        %v1961 = vsel %vm403, %v1958, 0
        %1963 = vmatprep.subr.mxu0 %v1961
        %1964 = vmatpush1.msra.mxu0 %v1959
        %1965 = vmatprep.subr.mxu0 0.0
        %1966 = vmatpush1.msra.mxu0 0.0
        %1967 = vmatprep.subr.mxu0 0.0
        %1968 = vmatpush1.msra.mxu0 0.0
        %1969 = vmatprep.subr.mxu0 0.0
        %1970 = vmatpush1.msra.mxu0 0.0
        %1971 = vmatprep.subr.mxu0 0.0
        %1972 = vmatpush1.msra.mxu0 0.0
        %1973 = vmatprep.subr.mxu0 0.0
        %1974 = vmatpush1.msra.mxu0 0.0
        %1975 = vmatprep.subr.mxu0 0.0
        %1976 = vmatpush1.msra.mxu0 0.0
        %1977 = vmatprep.subr.mxu0 0.0
        %1978 = vmatpush1.msra.mxu0 0.0
        %1979 = vmatprep.subr.mxu0 0.0
        %1980 = vmatpush1.msra.mxu0 0.0
        %1981 = vmatprep.subr.mxu0 0.0
        %1982 = vmatpush1.msra.mxu0 0.0
        %1983 = vmatprep.subr.mxu0 0.0
        %1984 = vmatpush1.msra.mxu0 0.0
        %1985 = vmatprep.subr.mxu0 0.0
        %1986 = vmatpush1.msra.mxu0 0.0
        %1987 = vmatprep.subr.mxu0 0.0
        %1988 = vmatpush1.msra.mxu0 0.0
        %1989 = vmatprep.subr.mxu0 0.0
        %1990 = vmatpush1.msra.mxu0 0.0
        %1991 = vmatprep.subr.mxu0 0.0
        %1992 = vmatpush1.msra.mxu0 0.0
        %1993 = vmatprep.subr.mxu0 0.0
        %1994 = vmatpush1.msra.mxu0 0.0
        %1995 = vmatprep.subr.mxu0 0.0
        %1996 = vmatpush1.msra.mxu0 0.0
        %1997 = vmatprep.subr.mxu0 0.0
        %1998 = vmatpush1.msra.mxu0 0.0
        %1999 = vmatprep.subr.mxu0 0.0
        %2000 = vmatpush1.msra.mxu0 0.0
        %2001 = vmatprep.subr.mxu0 0.0
        %2002 = vmatpush1.msra.mxu0 0.0
        %2003 = vmatprep.subr.mxu0 0.0
        %2004 = vmatpush1.msra.mxu0 0.0
        %2005 = vmatprep.subr.mxu0 0.0
        %2006 = vmatpush1.msra.mxu0 0.0
        %2007 = vmatprep.subr.mxu0 0.0
        %2008 = vmatpush1.msra.mxu0 0.0
        %2009 = vmatprep.subr.mxu0 0.0
        %2010 = vmatpush1.msra.mxu0 0.0
        %2011 = vmatprep.subr.mxu0 0.0
        %2012 = vmatpush1.msra.mxu0 0.0
        %2013 = vmatprep.subr.mxu0 0.0
        %2014 = vmatpush1.msra.mxu0 0.0
        %2015 = vmatprep.subr.mxu0 0.0
        %2016 = vmatpush1.msra.mxu0 0.0
        %2017 = vmatprep.subr.mxu0 0.0
        %2018 = vmatpush1.msra.mxu0 0.0
        %2019 = vmatprep.subr.mxu0 0.0
        %2020 = vmatpush1.msra.mxu0 0.0
        %2021 = vmatprep.subr.mxu0 0.0
        %2022 = vmatpush1.msra.mxu0 0.0
        %2023 = vmatprep.subr.mxu0 0.0
        %2024 = vmatpush1.msra.mxu0 0.0
        %2025 = vmatprep.subr.mxu0 0.0
        %2026 = vmatpush1.msra.mxu0 0.0
        %2027 = vmatprep.mubr.f32.mxu0 0.0
        %2028 = vmatmul.mubr.f32.gmra.mrb[0].mxu0 %v398
        %v2029 = vpop.f32.mrb[0].mxu0
        %v2030 = vadd.f32 0.0, %v2029
        %v2031 = vpop.f32.mrb[0].mxu0
        %v2032 = vadd.f32 0.0, %v2031
        %2033 = vmatprep.mubr.f32.mxu0 0.0
        %2034 = vmatmul.mubr.f32.gmra.mrb[0].mxu0 %v401
        %v2035 = vpop.f32.mrb[0].mxu0
        %v2036 = vadd.f32 0.0, %v2035
        %v2037 = vpop.f32.mrb[0].mxu0
        %v2038 = vadd.f32 0.0, %v2037
        %2039 = vdwg.mxu0
        %v2041 = vcombine.high %v1949, %v1949
        %v2042 = vsel %vm403, %v1949, 0
        %v2044 = vsel %vm403, %v2041, 0
        %2046 = vmatprep.subr.mxu0 %v2044
        %2047 = vmatpush1.msra.mxu0 %v2042
        %2048 = vmatprep.subr.mxu0 0.0
        %2049 = vmatpush1.msra.mxu0 0.0
        %2050 = vmatprep.subr.mxu0 0.0
        %2051 = vmatpush1.msra.mxu0 0.0
        %2052 = vmatprep.subr.mxu0 0.0
        %2053 = vmatpush1.msra.mxu0 0.0
        %2054 = vmatprep.subr.mxu0 0.0
        %2055 = vmatpush1.msra.mxu0 0.0
        %2056 = vmatprep.subr.mxu0 0.0
        %2057 = vmatpush1.msra.mxu0 0.0
        %2058 = vmatprep.subr.mxu0 0.0
        %2059 = vmatpush1.msra.mxu0 0.0
        %2060 = vmatprep.subr.mxu0 0.0
        %2061 = vmatpush1.msra.mxu0 0.0
        %2062 = vmatprep.subr.mxu0 0.0
        %2063 = vmatpush1.msra.mxu0 0.0
        %2064 = vmatprep.subr.mxu0 0.0
        %2065 = vmatpush1.msra.mxu0 0.0
        %2066 = vmatprep.subr.mxu0 0.0
        %2067 = vmatpush1.msra.mxu0 0.0
        %2068 = vmatprep.subr.mxu0 0.0
        %2069 = vmatpush1.msra.mxu0 0.0
        %2070 = vmatprep.subr.mxu0 0.0
        %2071 = vmatpush1.msra.mxu0 0.0
        %2072 = vmatprep.subr.mxu0 0.0
        %2073 = vmatpush1.msra.mxu0 0.0
        %2074 = vmatprep.subr.mxu0 0.0
        %2075 = vmatpush1.msra.mxu0 0.0
        %2076 = vmatprep.subr.mxu0 0.0
        %2077 = vmatpush1.msra.mxu0 0.0
        %2078 = vmatprep.subr.mxu0 0.0
        %2079 = vmatpush1.msra.mxu0 0.0
        %2080 = vmatprep.subr.mxu0 0.0
        %2081 = vmatpush1.msra.mxu0 0.0
        %2082 = vmatprep.subr.mxu0 0.0
        %2083 = vmatpush1.msra.mxu0 0.0
        %2084 = vmatprep.subr.mxu0 0.0
        %2085 = vmatpush1.msra.mxu0 0.0
        %2086 = vmatprep.subr.mxu0 0.0
        %2087 = vmatpush1.msra.mxu0 0.0
        %2088 = vmatprep.subr.mxu0 0.0
        %2089 = vmatpush1.msra.mxu0 0.0
        %2090 = vmatprep.subr.mxu0 0.0
        %2091 = vmatpush1.msra.mxu0 0.0
        %2092 = vmatprep.subr.mxu0 0.0
        %2093 = vmatpush1.msra.mxu0 0.0
        %2094 = vmatprep.subr.mxu0 0.0
        %2095 = vmatpush1.msra.mxu0 0.0
        %2096 = vmatprep.subr.mxu0 0.0
        %2097 = vmatpush1.msra.mxu0 0.0
        %2098 = vmatprep.subr.mxu0 0.0
        %2099 = vmatpush1.msra.mxu0 0.0
        %2100 = vmatprep.subr.mxu0 0.0
        %2101 = vmatpush1.msra.mxu0 0.0
        %2102 = vmatprep.subr.mxu0 0.0
        %2103 = vmatpush1.msra.mxu0 0.0
        %2104 = vmatprep.subr.mxu0 0.0
        %2105 = vmatpush1.msra.mxu0 0.0
        %2106 = vmatprep.subr.mxu0 0.0
        %2107 = vmatpush1.msra.mxu0 0.0
        %2108 = vmatprep.subr.mxu0 0.0
        %2109 = vmatpush1.msra.mxu0 0.0
        %2110 = vmatprep.mubr.f32.mxu0 0.0
        %2111 = vmatmul.mubr.f32.gmra.mrb[0].mxu0 %v488
        %v2112 = vpop.f32.mrb[0].mxu0
        %v2113 = vadd.f32 %v2030, %v2112
        %v2114 = vpop.f32.mrb[0].mxu0
        %v2115 = vadd.f32 %v2032, %v2114
        %2116 = vmatprep.mubr.f32.mxu0 0.0
        %2117 = vmatmul.mubr.f32.gmra.mrb[0].mxu0 %v491
        %v2118 = vpop.f32.mrb[0].mxu0
        %v2119 = vadd.f32 %v2036, %v2118
        %v2120 = vpop.f32.mrb[0].mxu0
        %v2121 = vadd.f32 %v2038, %v2120
        %2122 = vdwg.mxu0
        %v2123 = vadd.f32 %v2113, %v579
        %v2124 = vadd.f32 %v2115, %v579
        %v2125 = vadd.f32 %v2119, %v584
        %v2126 = vadd.f32 %v2121, %v584
        %vm2127 = vcmp.gt.f32.partialorder %v2123, 0.0
        %vm2128 = vcmp.gt.f32.partialorder %v2124, 0.0
        %vm2129 = vcmp.gt.f32.partialorder %v2125, 0.0
        %vm2130 = vcmp.gt.f32.partialorder %v2126, 0.0
        %v2131 = vmin.f32 %v2123, 0.0
        %v2132 = vmin.f32 %v2124, 0.0
        %v2133 = vmin.f32 %v2125, 0.0
        %v2134 = vmin.f32 %v2126, 0.0
        %v2135 = vmul.f32 %v2131, 1.442695
        %v2136 = vpow.pop %v2135
        %v2137 = vmul.f32 %v2132, 1.442695
        %v2138 = vpow.pop %v2137
        %v2139 = vmul.f32 %v2133, 1.442695
        %v2140 = vpow.pop %v2139
        %v2141 = vmul.f32 %v2134, 1.442695
        %v2142 = vpow.pop %v2141
        %v2143 = vsub.f32 %v2136, 1.0
        %v2144 = vsub.f32 %v2138, 1.0
        %v2145 = vsub.f32 %v2140, 1.0
        %v2146 = vsub.f32 %v2142, 1.0
        %v2147 = vsel %vm2127, %v2123, %v2143
        %v2148 = vsel %vm2128, %v2124, %v2144
        %v2149 = vsel %vm2129, %v2125, %v2145
        %v2150 = vsel %vm2130, %v2126, %v2146
        %v2151 = vmul.f32 %v2147, %v631
        %v2152 = vmul.f32 %v2148, %v629
        %v2153 = vmul.f32 %v2149, %v631
        %v2154 = vmul.f32 %v2150, %v629
        %v2155 = vmul.f32 %v2147, %v654
        %v2156 = vmul.f32 %v2148, %v652
        %v2157 = vmul.f32 %v2149, %v654
        %v2158 = vmul.f32 %v2150, %v652
        %v2159 = vmul.f32 %v2147, %v668
        %v2160 = vmul.f32 %v2148, %v666
        %v2161 = vmul.f32 %v2149, %v668
        %v2162 = vmul.f32 %v2150, %v666
        %v2163 = vmul.f32 %v2147, %v678
        %v2164 = vmul.f32 %v2148, %v682
        %v2165 = vmul.f32 %v2149, %v678
        %v2166 = vmul.f32 %v2150, %v682
        %v2167 = vmul.f32 %v2147, %v692
        %v2168 = vmul.f32 %v2148, %v696
        %v2169 = vmul.f32 %v2149, %v692
        %v2170 = vmul.f32 %v2150, %v696
        %v2171 = vmul.f32 %v2147, %v706
        %v2172 = vmul.f32 %v2148, %v710
        %v2173 = vmul.f32 %v2149, %v706
        %v2174 = vmul.f32 %v2150, %v710
        %2179 = vrot.lane.b32.xlu0 %v2147, 127
        %v2180 = vpop.permute.xlu0 %2179
        %2181 = vrot.lane.b32.xlu0 %v2148, 127
        %v2182 = vpop.permute.xlu0 %2181
        %2183 = vrot.lane.b32.xlu0 %v2149, 127
        %v2184 = vpop.permute.xlu0 %2183
        %2185 = vrot.lane.b32.xlu0 %v2150, 127
        %v2186 = vpop.permute.xlu0 %2185
        %v2187 = vsel %vm667, %v725, %v2180
        %v2188 = vsel %vm667, %v2180, %v2182
        %v2189 = vsel %vm667, %v725, %v2184
        %v2190 = vsel %vm667, %v2184, %v2186
        %2195 = vrot.lane.b32.xlu0 %v2155, 126
        %v2196 = vpop.permute.xlu0 %2195
        %2197 = vrot.lane.b32.xlu0 %v2156, 126
        %v2198 = vpop.permute.xlu0 %2197
        %2199 = vrot.lane.b32.xlu0 %v2157, 126
        %v2200 = vpop.permute.xlu0 %2199
        %2201 = vrot.lane.b32.xlu0 %v2158, 126
        %v2202 = vpop.permute.xlu0 %2201
        %v2203 = vsel %vm753, %v744, %v2196
        %v2204 = vsel %vm753, %v2196, %v2198
        %v2205 = vsel %vm753, %v744, %v2200
        %v2206 = vsel %vm753, %v2200, %v2202
        %2211 = vrot.lane.b32.xlu0 %v2159, 112
        %v2212 = vpop.permute.xlu0 %2211
        %2213 = vrot.lane.b32.xlu0 %v2160, 112
        %v2214 = vpop.permute.xlu0 %2213
        %2215 = vrot.lane.b32.xlu0 %v2161, 112
        %v2216 = vpop.permute.xlu0 %2215
        %2217 = vrot.lane.b32.xlu0 %v2162, 112
        %v2218 = vpop.permute.xlu0 %2217
        %v2219 = vsel %vm773, %v764, %v2212
        %v2220 = vsel %vm773, %v2212, %v2214
        %v2221 = vsel %vm773, %v764, %v2216
        %v2222 = vsel %vm773, %v2216, %v2218
        %2223 = vrot.lane.b32.xlu0 %v2147, 111
        %v2224 = vpop.permute.xlu0 %2223
        %2225 = vrot.lane.b32.xlu0 %v2148, 111
        %v2226 = vpop.permute.xlu0 %2225
        %2227 = vrot.lane.b32.xlu0 %v2149, 111
        %v2228 = vpop.permute.xlu0 %2227
        %2229 = vrot.lane.b32.xlu0 %v2150, 111
        %v2230 = vpop.permute.xlu0 %2229
        %v2231 = vsel %vm630, %v2224, %v2226
        %v2232 = vsel %vm630, %v2228, %v2230
        %2237 = vrot.lane.b32.xlu0 %v2163, 110
        %v2238 = vpop.permute.xlu0 %2237
        %2239 = vrot.lane.b32.xlu0 %v2164, 110
        %v2240 = vpop.permute.xlu0 %2239
        %2241 = vrot.lane.b32.xlu0 %v2165, 110
        %v2242 = vpop.permute.xlu0 %2241
        %2243 = vrot.lane.b32.xlu0 %v2166, 110
        %v2244 = vpop.permute.xlu0 %2243
        %v2245 = vsel %vm803, %v2238, %v2240
        %v2246 = vsel %vm803, %v2240, %v798
        %v2247 = vsel %vm803, %v2242, %v2244
        %v2248 = vsel %vm803, %v2244, %v798
        %2253 = vrot.lane.b32.xlu0 %v2167, 96
        %v2254 = vpop.permute.xlu0 %2253
        %2255 = vrot.lane.b32.xlu0 %v2168, 96
        %v2256 = vpop.permute.xlu0 %2255
        %2257 = vrot.lane.b32.xlu0 %v2169, 96
        %v2258 = vpop.permute.xlu0 %2257
        %2259 = vrot.lane.b32.xlu0 %v2170, 96
        %v2260 = vpop.permute.xlu0 %2259
        %v2261 = vsel %vm823, %v2254, %v2256
        %v2262 = vsel %vm823, %v2256, %v818
        %v2263 = vsel %vm823, %v2258, %v2260
        %v2264 = vsel %vm823, %v2260, %v818
        %2265 = vrot.lane.b32.xlu0 %v2147, 95
        %v2266 = vpop.permute.xlu0 %2265
        %2267 = vrot.lane.b32.xlu0 %v2148, 95
        %v2268 = vpop.permute.xlu0 %2267
        %2269 = vrot.lane.b32.xlu0 %v2149, 95
        %v2270 = vpop.permute.xlu0 %2269
        %2271 = vrot.lane.b32.xlu0 %v2150, 95
        %v2272 = vpop.permute.xlu0 %2271
        %v2273 = vsel %vm838, %v2266, %v2268
        %v2274 = vsel %vm838, %v2268, %v833
        %v2275 = vsel %vm838, %v2270, %v2272
        %v2276 = vsel %vm838, %v2272, %v833
        %2281 = vrot.lane.b32.xlu0 %v2171, 94
        %v2282 = vpop.permute.xlu0 %2281
        %2283 = vrot.lane.b32.xlu0 %v2172, 94
        %v2284 = vpop.permute.xlu0 %2283
        %2285 = vrot.lane.b32.xlu0 %v2173, 94
        %v2286 = vpop.permute.xlu0 %2285
        %2287 = vrot.lane.b32.xlu0 %v2174, 94
        %v2288 = vpop.permute.xlu0 %2287
        %v2289 = vsel %vm858, %v2282, %v2284
        %v2290 = vsel %vm858, %v2284, %v853
        %v2291 = vsel %vm858, %v2286, %v2288
        %v2292 = vsel %vm858, %v2288, %v853
        %2297 = vrot.lane.b32.xlu0 %v2151, 17
        %v2298 = vpop.permute.xlu0 %2297
        %2299 = vrot.lane.b32.xlu0 %v2152, 17
        %v2300 = vpop.permute.xlu0 %2299
        %2301 = vrot.lane.b32.xlu0 %v2153, 17
        %v2302 = vpop.permute.xlu0 %2301
        %2303 = vrot.lane.b32.xlu0 %v2154, 17
        %v2304 = vpop.permute.xlu0 %2303
        %2305 = vrot.lane.b32.xlu0 %v2187, 17
        %v2306 = vpop.permute.xlu0 %2305
        %2307 = vrot.lane.b32.xlu0 %v2188, 17
        %v2308 = vpop.permute.xlu0 %2307
        %2309 = vrot.lane.b32.xlu0 %v2182, 17
        %v2310 = vpop.permute.xlu0 %2309
        %2311 = vrot.lane.b32.xlu0 %v2189, 17
        %v2312 = vpop.permute.xlu0 %2311
        %2313 = vrot.lane.b32.xlu0 %v2190, 17
        %v2314 = vpop.permute.xlu0 %2313
        %2315 = vrot.lane.b32.xlu0 %v2186, 17
        %v2316 = vpop.permute.xlu0 %2315
        %2317 = vrot.lane.b32.xlu0 %v2203, 17
        %v2318 = vpop.permute.xlu0 %2317
        %2319 = vrot.lane.b32.xlu0 %v2204, 17
        %v2320 = vpop.permute.xlu0 %2319
        %2321 = vrot.lane.b32.xlu0 %v2198, 17
        %v2322 = vpop.permute.xlu0 %2321
        %2323 = vrot.lane.b32.xlu0 %v2205, 17
        %v2324 = vpop.permute.xlu0 %2323
        %2325 = vrot.lane.b32.xlu0 %v2206, 17
        %v2326 = vpop.permute.xlu0 %2325
        %2327 = vrot.lane.b32.xlu0 %v2202, 17
        %v2328 = vpop.permute.xlu0 %2327
        %2329 = vrot.lane.b32.xlu0 %v2219, 17
        %v2330 = vpop.permute.xlu0 %2329
        %2331 = vrot.lane.b32.xlu0 %v2220, 17
        %v2332 = vpop.permute.xlu0 %2331
        %2333 = vrot.lane.b32.xlu0 %v2214, 17
        %v2334 = vpop.permute.xlu0 %2333
        %2335 = vrot.lane.b32.xlu0 %v2221, 17
        %v2336 = vpop.permute.xlu0 %2335
        %2337 = vrot.lane.b32.xlu0 %v2222, 17
        %v2338 = vpop.permute.xlu0 %2337
        %2339 = vrot.lane.b32.xlu0 %v2218, 17
        %v2340 = vpop.permute.xlu0 %2339
        %2341 = vrot.lane.b32.xlu0 %v2224, 17
        %v2342 = vpop.permute.xlu0 %2341
        %2343 = vrot.lane.b32.xlu0 %v2231, 17
        %v2344 = vpop.permute.xlu0 %2343
        %2345 = vrot.lane.b32.xlu0 %v2226, 17
        %v2346 = vpop.permute.xlu0 %2345
        %2347 = vrot.lane.b32.xlu0 %v2228, 17
        %v2348 = vpop.permute.xlu0 %2347
        %2349 = vrot.lane.b32.xlu0 %v2232, 17
        %v2350 = vpop.permute.xlu0 %2349
        %2351 = vrot.lane.b32.xlu0 %v2230, 17
        %v2352 = vpop.permute.xlu0 %2351
        %2353 = vrot.lane.b32.xlu0 %v2238, 17
        %v2354 = vpop.permute.xlu0 %2353
        %2355 = vrot.lane.b32.xlu0 %v2245, 17
        %v2356 = vpop.permute.xlu0 %2355
        %2357 = vrot.lane.b32.xlu0 %v2246, 17
        %v2358 = vpop.permute.xlu0 %2357
        %2359 = vrot.lane.b32.xlu0 %v2242, 17
        %v2360 = vpop.permute.xlu0 %2359
        %2361 = vrot.lane.b32.xlu0 %v2247, 17
        %v2362 = vpop.permute.xlu0 %2361
        %2363 = vrot.lane.b32.xlu0 %v2248, 17
        %v2364 = vpop.permute.xlu0 %2363
        %2365 = vrot.lane.b32.xlu0 %v2254, 17
        %v2366 = vpop.permute.xlu0 %2365
        %2367 = vrot.lane.b32.xlu0 %v2261, 17
        %v2368 = vpop.permute.xlu0 %2367
        %2369 = vrot.lane.b32.xlu0 %v2262, 17
        %v2370 = vpop.permute.xlu0 %2369
        %2371 = vrot.lane.b32.xlu0 %v2258, 17
        %v2372 = vpop.permute.xlu0 %2371
        %2373 = vrot.lane.b32.xlu0 %v2263, 17
        %v2374 = vpop.permute.xlu0 %2373
        %2375 = vrot.lane.b32.xlu0 %v2264, 17
        %v2376 = vpop.permute.xlu0 %2375
        %2377 = vrot.lane.b32.xlu0 %v2266, 17
        %v2378 = vpop.permute.xlu0 %2377
        %2379 = vrot.lane.b32.xlu0 %v2273, 17
        %v2380 = vpop.permute.xlu0 %2379
        %2381 = vrot.lane.b32.xlu0 %v2274, 17
        %v2382 = vpop.permute.xlu0 %2381
        %2383 = vrot.lane.b32.xlu0 %v2270, 17
        %v2384 = vpop.permute.xlu0 %2383
        %2385 = vrot.lane.b32.xlu0 %v2275, 17
        %v2386 = vpop.permute.xlu0 %2385
        %2387 = vrot.lane.b32.xlu0 %v2276, 17
        %v2388 = vpop.permute.xlu0 %2387
        %2389 = vrot.lane.b32.xlu0 %v2282, 17
        %v2390 = vpop.permute.xlu0 %2389
        %2391 = vrot.lane.b32.xlu0 %v2289, 17
        %v2392 = vpop.permute.xlu0 %2391
        %2393 = vrot.lane.b32.xlu0 %v2290, 17
        %v2394 = vpop.permute.xlu0 %2393
        %2395 = vrot.lane.b32.xlu0 %v2286, 17
        %v2396 = vpop.permute.xlu0 %2395
        %2397 = vrot.lane.b32.xlu0 %v2291, 17
        %v2398 = vpop.permute.xlu0 %2397
        %2399 = vrot.lane.b32.xlu0 %v2292, 17
        %v2400 = vpop.permute.xlu0 %2399
        %v2401 = vsel %vm709, %v885, %v2298
        %v2402 = vsel %vm709, %v2298, %v2300
        %v2403 = vsel %vm709, %v885, %v2302
        %v2404 = vsel %vm709, %v2302, %v2304
        %v2405 = vsel %vm709, %v2306, %v2308
        %v2406 = vsel %vm709, %v2308, %v2310
        %v2407 = vsel %vm709, %v2312, %v2314
        %v2408 = vsel %vm709, %v2314, %v2316
        %v2409 = vsel %vm709, %v2318, %v2320
        %v2410 = vsel %vm709, %v2320, %v2322
        %v2411 = vsel %vm709, %v2324, %v2326
        %v2412 = vsel %vm709, %v2326, %v2328
        %v2413 = vsel %vm709, %v2330, %v2332
        %v2414 = vsel %vm709, %v2332, %v2334
        %v2415 = vsel %vm709, %v2336, %v2338
        %v2416 = vsel %vm709, %v2338, %v2340
        %v2417 = vsel %vm709, %v2342, %v2344
        %v2418 = vsel %vm709, %v2344, %v2346
        %v2419 = vsel %vm709, %v2348, %v2350
        %v2420 = vsel %vm709, %v2350, %v2352
        %v2421 = vsel %vm709, %v2354, %v2356
        %v2422 = vsel %vm709, %v2356, %v2358
        %v2423 = vsel %vm709, %v2360, %v2362
        %v2424 = vsel %vm709, %v2362, %v2364
        %v2425 = vsel %vm709, %v2366, %v2368
        %v2426 = vsel %vm709, %v2368, %v2370
        %v2427 = vsel %vm709, %v2372, %v2374
        %v2428 = vsel %vm709, %v2374, %v2376
        %v2429 = vsel %vm709, %v2378, %v2380
        %v2430 = vsel %vm709, %v2380, %v2382
        %v2431 = vsel %vm709, %v2384, %v2386
        %v2432 = vsel %vm709, %v2386, %v2388
        %v2433 = vsel %vm709, %v2390, %v2392
        %v2434 = vsel %vm709, %v2392, %v2394
        %v2435 = vsel %vm709, %v2396, %v2398
        %v2436 = vsel %vm709, %v2398, %v2400
        %2473 = vmatprep.subr.mxu0 %v2402
        %2474 = vmatpush1.msra.mxu0 %v2401
        %2475 = vmatprep.subr.mxu0 %v2404
        %2476 = vmatpush1.msra.mxu0 %v2403
        %2477 = vmatprep.subr.mxu0 %v2406
        %2478 = vmatpush1.msra.mxu0 %v2405
        %2479 = vmatprep.subr.mxu0 %v2408
        %2480 = vmatpush1.msra.mxu0 %v2407
        %2481 = vmatprep.subr.mxu0 %v2410
        %2482 = vmatpush1.msra.mxu0 %v2409
        %2483 = vmatprep.subr.mxu0 %v2412
        %2484 = vmatpush1.msra.mxu0 %v2411
        %2485 = vmatprep.subr.mxu0 %v2414
        %2486 = vmatpush1.msra.mxu0 %v2413
        %2487 = vmatprep.subr.mxu0 %v2416
        %2488 = vmatpush1.msra.mxu0 %v2415
        %2489 = vmatprep.subr.mxu0 %v2418
        %2490 = vmatpush1.msra.mxu0 %v2417
        %2491 = vmatprep.subr.mxu0 %v2420
        %2492 = vmatpush1.msra.mxu0 %v2419
        %2493 = vmatprep.subr.mxu0 %v2422
        %2494 = vmatpush1.msra.mxu0 %v2421
        %2495 = vmatprep.subr.mxu0 %v2424
        %2496 = vmatpush1.msra.mxu0 %v2423
        %2497 = vmatprep.subr.mxu0 %v2426
        %2498 = vmatpush1.msra.mxu0 %v2425
        %2499 = vmatprep.subr.mxu0 %v2428
        %2500 = vmatpush1.msra.mxu0 %v2427
        %2501 = vmatprep.subr.mxu0 %v2430
        %2502 = vmatpush1.msra.mxu0 %v2429
        %2503 = vmatprep.subr.mxu0 %v2432
        %2504 = vmatpush1.msra.mxu0 %v2431
        %2505 = vmatprep.subr.mxu0 %v2434
        %2506 = vmatpush1.msra.mxu0 %v2433
        %2507 = vmatprep.subr.mxu0 %v2436
        %2508 = vmatpush1.msra.mxu0 %v2435
        %2509 = vmatprep.subr.mxu0 0.0
        %2510 = vmatpush1.msra.mxu0 0.0
        %2511 = vmatprep.subr.mxu0 0.0
        %2512 = vmatpush1.msra.mxu0 0.0
        %2513 = vmatprep.subr.mxu0 0.0
        %2514 = vmatpush1.msra.mxu0 0.0
        %2515 = vmatprep.subr.mxu0 0.0
        %2516 = vmatpush1.msra.mxu0 0.0
        %2517 = vmatprep.subr.mxu0 0.0
        %2518 = vmatpush1.msra.mxu0 0.0
        %2519 = vmatprep.subr.mxu0 0.0
        %2520 = vmatpush1.msra.mxu0 0.0
        %2521 = vmatprep.subr.mxu0 0.0
        %2522 = vmatpush1.msra.mxu0 0.0
        %2523 = vmatprep.subr.mxu0 0.0
        %2524 = vmatpush1.msra.mxu0 0.0
        %2525 = vmatprep.subr.mxu0 0.0
        %2526 = vmatpush1.msra.mxu0 0.0
        %2527 = vmatprep.subr.mxu0 0.0
        %2528 = vmatpush1.msra.mxu0 0.0
        %2529 = vmatprep.subr.mxu0 0.0
        %2530 = vmatpush1.msra.mxu0 0.0
        %2531 = vmatprep.subr.mxu0 0.0
        %2532 = vmatpush1.msra.mxu0 0.0
        %2533 = vmatprep.subr.mxu0 0.0
        %2534 = vmatpush1.msra.mxu0 0.0
        %2535 = vmatprep.subr.mxu0 0.0
        %2536 = vmatpush1.msra.mxu0 0.0
        %2537 = vmatprep.mubr.f32.mxu0 %v1064
        %2538 = vmatmul.mubr.f32.gmra.mrb[0].mxu0 %v863
        %v2539 = vpop.f32.mrb[0].mxu0
        %v2540 = vadd.f32 %v872, %v2539
        %v2541 = vpop.f32.mrb[0].mxu0
        %v2542 = vadd.f32 %v872, %v2541
        %2543 = vmatprep.mubr.f32.mxu0 %v1067
        %2544 = vmatmul.mubr.f32.gmra.mrb[0].mxu0 %v865
        %v2545 = vpop.f32.mrb[0].mxu0
        %v2546 = vadd.f32 %v877, %v2545
        %v2547 = vpop.f32.mrb[0].mxu0
        %v2548 = vadd.f32 %v877, %v2547
        %2549 = vdwg.mxu0
        %vm2550 = vcmp.gt.f32.partialorder %v2540, 0.0
        %vm2551 = vcmp.gt.f32.partialorder %v2542, 0.0
        %vm2552 = vcmp.gt.f32.partialorder %v2546, 0.0
        %vm2553 = vcmp.gt.f32.partialorder %v2548, 0.0
        %v2554 = vmin.f32 %v2540, 0.0
        %v2555 = vmin.f32 %v2542, 0.0
        %v2556 = vmin.f32 %v2546, 0.0
        %v2557 = vmin.f32 %v2548, 0.0
        %v2558 = vmul.f32 %v2554, 1.442695
        %v2559 = vpow.pop %v2558
        %v2560 = vmul.f32 %v2555, 1.442695
        %v2561 = vpow.pop %v2560
        %v2562 = vmul.f32 %v2556, 1.442695
        %v2563 = vpow.pop %v2562
        %v2564 = vmul.f32 %v2557, 1.442695
        %v2565 = vpow.pop %v2564
        %v2566 = vsub.f32 %v2559, 1.0
        %v2567 = vsub.f32 %v2561, 1.0
        %v2568 = vsub.f32 %v2563, 1.0
        %v2569 = vsub.f32 %v2565, 1.0
        %v2570 = vsel %vm2550, %v2540, %v2566
        %v2571 = vsel %vm2551, %v2542, %v2567
        %v2572 = vsel %vm2552, %v2546, %v2568
        %v2573 = vsel %vm2553, %v2548, %v2569
        %2574 = vmatprep.subr.mxu0 %v2571
        %2575 = vmatpush1.msra.mxu0 %v2570
        %2576 = vmatprep.subr.mxu0 %v2573
        %2577 = vmatpush1.msra.mxu0 %v2572
        %2578 = vmatprep.subr.mxu0 0.0
        %2579 = vmatpush1.msra.mxu0 0.0
        %2580 = vmatprep.subr.mxu0 0.0
        %2581 = vmatpush1.msra.mxu0 0.0
        %2582 = vmatprep.subr.mxu0 0.0
        %2583 = vmatpush1.msra.mxu0 0.0
        %2584 = vmatprep.subr.mxu0 0.0
        %2585 = vmatpush1.msra.mxu0 0.0
        %2586 = vmatprep.subr.mxu0 0.0
        %2587 = vmatpush1.msra.mxu0 0.0
        %2588 = vmatprep.subr.mxu0 0.0
        %2589 = vmatpush1.msra.mxu0 0.0
        %2590 = vmatprep.subr.mxu0 0.0
        %2591 = vmatpush1.msra.mxu0 0.0
        %2592 = vmatprep.subr.mxu0 0.0
        %2593 = vmatpush1.msra.mxu0 0.0
        %2594 = vmatprep.subr.mxu0 0.0
        %2595 = vmatpush1.msra.mxu0 0.0
        %2596 = vmatprep.subr.mxu0 0.0
        %2597 = vmatpush1.msra.mxu0 0.0
        %2598 = vmatprep.subr.mxu0 0.0
        %2599 = vmatpush1.msra.mxu0 0.0
        %2600 = vmatprep.subr.mxu0 0.0
        %2601 = vmatpush1.msra.mxu0 0.0
        %2602 = vmatprep.subr.mxu0 0.0
        %2603 = vmatpush1.msra.mxu0 0.0
        %2604 = vmatprep.subr.mxu0 0.0
        %2605 = vmatpush1.msra.mxu0 0.0
        %2606 = vmatprep.subr.mxu0 0.0
        %2607 = vmatpush1.msra.mxu0 0.0
        %2608 = vmatprep.subr.mxu0 0.0
        %2609 = vmatpush1.msra.mxu0 0.0
        %2610 = vmatprep.subr.mxu0 0.0
        %2611 = vmatpush1.msra.mxu0 0.0
        %2612 = vmatprep.subr.mxu0 0.0
        %2613 = vmatpush1.msra.mxu0 0.0
        %2614 = vmatprep.subr.mxu0 0.0
        %2615 = vmatpush1.msra.mxu0 0.0
        %2616 = vmatprep.subr.mxu0 0.0
        %2617 = vmatpush1.msra.mxu0 0.0
        %2618 = vmatprep.subr.mxu0 0.0
        %2619 = vmatpush1.msra.mxu0 0.0
        %2620 = vmatprep.subr.mxu0 0.0
        %2621 = vmatpush1.msra.mxu0 0.0
        %2622 = vmatprep.subr.mxu0 0.0
        %2623 = vmatpush1.msra.mxu0 0.0
        %2624 = vmatprep.subr.mxu0 0.0
        %2625 = vmatpush1.msra.mxu0 0.0
        %2626 = vmatprep.subr.mxu0 0.0
        %2627 = vmatpush1.msra.mxu0 0.0
        %2628 = vmatprep.subr.mxu0 0.0
        %2629 = vmatpush1.msra.mxu0 0.0
        %2630 = vmatprep.subr.mxu0 0.0
        %2631 = vmatpush1.msra.mxu0 0.0
        %2632 = vmatprep.subr.mxu0 0.0
        %2633 = vmatpush1.msra.mxu0 0.0
        %2634 = vmatprep.subr.mxu0 0.0
        %2635 = vmatpush1.msra.mxu0 0.0
        %2636 = vmatprep.subr.mxu0 0.0
        %2637 = vmatpush1.msra.mxu0 0.0
        %2638 = vmatprep.mubr.f32.mxu0 0.0
        %2639 = vmatmul.mubr.f32.gmra.mrb[0].mxu0 %v1178
        %v2640 = vpop.f32.mrb[0].mxu0
        %v2641 = vadd.f32 %v1175, %v2640
        %v2642 = vpop.f32.mrb[0].mxu0
        %v2643 = vadd.f32 %v1175, %v2642
        %2644 = vdwg.mxu0
        %v2645 = vmul.f32 %v1956, 0.125
        %v2646 = vadd.f32 %v388, %v2645
        %v2647 = vmul.f32 %v2641, 0.125
        %v2648 = vmul.f32 %v2643, 0.125
        %v2651 = vcombine.low %v2647, %v2648
        %v2653 = vadd.f32 %v389, %v2651
        %v2655 = vcombine.high %v2653, %v2653
        %v2656 = vsel %vm403, %v2653, 0
        %v2658 = vsel %vm403, %v2655, 0
        %2660 = vmatprep.subr.mxu0 %v2658
        %2661 = vmatpush1.msra.mxu0 %v2656
        %2662 = vmatprep.subr.mxu0 0.0
        %2663 = vmatpush1.msra.mxu0 0.0
        %2664 = vmatprep.subr.mxu0 0.0
        %2665 = vmatpush1.msra.mxu0 0.0
        %2666 = vmatprep.subr.mxu0 0.0
        %2667 = vmatpush1.msra.mxu0 0.0
        %2668 = vmatprep.subr.mxu0 0.0
        %2669 = vmatpush1.msra.mxu0 0.0
        %2670 = vmatprep.subr.mxu0 0.0
        %2671 = vmatpush1.msra.mxu0 0.0
        %2672 = vmatprep.subr.mxu0 0.0
        %2673 = vmatpush1.msra.mxu0 0.0
        %2674 = vmatprep.subr.mxu0 0.0
        %2675 = vmatpush1.msra.mxu0 0.0
        %2676 = vmatprep.subr.mxu0 0.0
        %2677 = vmatpush1.msra.mxu0 0.0
        %2678 = vmatprep.subr.mxu0 0.0
        %2679 = vmatpush1.msra.mxu0 0.0
        %2680 = vmatprep.subr.mxu0 0.0
        %2681 = vmatpush1.msra.mxu0 0.0
        %2682 = vmatprep.subr.mxu0 0.0
        %2683 = vmatpush1.msra.mxu0 0.0
        %2684 = vmatprep.subr.mxu0 0.0
        %2685 = vmatpush1.msra.mxu0 0.0
        %2686 = vmatprep.subr.mxu0 0.0
        %2687 = vmatpush1.msra.mxu0 0.0
        %2688 = vmatprep.subr.mxu0 0.0
        %2689 = vmatpush1.msra.mxu0 0.0
        %2690 = vmatprep.subr.mxu0 0.0
        %2691 = vmatpush1.msra.mxu0 0.0
        %2692 = vmatprep.subr.mxu0 0.0
        %2693 = vmatpush1.msra.mxu0 0.0
        %2694 = vmatprep.subr.mxu0 0.0
        %2695 = vmatpush1.msra.mxu0 0.0
        %2696 = vmatprep.subr.mxu0 0.0
        %2697 = vmatpush1.msra.mxu0 0.0
        %2698 = vmatprep.subr.mxu0 0.0
        %2699 = vmatpush1.msra.mxu0 0.0
        %2700 = vmatprep.subr.mxu0 0.0
        %2701 = vmatpush1.msra.mxu0 0.0
        %2702 = vmatprep.subr.mxu0 0.0
        %2703 = vmatpush1.msra.mxu0 0.0
        %2704 = vmatprep.subr.mxu0 0.0
        %2705 = vmatpush1.msra.mxu0 0.0
        %2706 = vmatprep.subr.mxu0 0.0
        %2707 = vmatpush1.msra.mxu0 0.0
        %2708 = vmatprep.subr.mxu0 0.0
        %2709 = vmatpush1.msra.mxu0 0.0
        %2710 = vmatprep.subr.mxu0 0.0
        %2711 = vmatpush1.msra.mxu0 0.0
        %2712 = vmatprep.subr.mxu0 0.0
        %2713 = vmatpush1.msra.mxu0 0.0
        %2714 = vmatprep.subr.mxu0 0.0
        %2715 = vmatpush1.msra.mxu0 0.0
        %2716 = vmatprep.subr.mxu0 0.0
        %2717 = vmatpush1.msra.mxu0 0.0
        %2718 = vmatprep.subr.mxu0 0.0
        %2719 = vmatpush1.msra.mxu0 0.0
        %2720 = vmatprep.subr.mxu0 0.0
        %2721 = vmatpush1.msra.mxu0 0.0
        %2722 = vmatprep.subr.mxu0 0.0
        %2723 = vmatpush1.msra.mxu0 0.0
        %2724 = vmatprep.mubr.f32.mxu0 0.0
        %2725 = vmatmul.mubr.f32.gmra.mrb[0].mxu0 %v398
        %v2726 = vpop.f32.mrb[0].mxu0
        %v2727 = vadd.f32 0.0, %v2726
        %v2728 = vpop.f32.mrb[0].mxu0
        %v2729 = vadd.f32 0.0, %v2728
        %2730 = vmatprep.mubr.f32.mxu0 0.0
        %2731 = vmatmul.mubr.f32.gmra.mrb[0].mxu0 %v401
        %v2732 = vpop.f32.mrb[0].mxu0
        %v2733 = vadd.f32 0.0, %v2732
        %v2734 = vpop.f32.mrb[0].mxu0
        %v2735 = vadd.f32 0.0, %v2734
        %2736 = vdwg.mxu0
        %v2738 = vcombine.high %v2646, %v2646
        %v2739 = vsel %vm403, %v2646, 0
        %v2741 = vsel %vm403, %v2738, 0
        %2743 = vmatprep.subr.mxu0 %v2741
        %2744 = vmatpush1.msra.mxu0 %v2739
        %2745 = vmatprep.subr.mxu0 0.0
        %2746 = vmatpush1.msra.mxu0 0.0
        %2747 = vmatprep.subr.mxu0 0.0
        %2748 = vmatpush1.msra.mxu0 0.0
        %2749 = vmatprep.subr.mxu0 0.0
        %2750 = vmatpush1.msra.mxu0 0.0
        %2751 = vmatprep.subr.mxu0 0.0
        %2752 = vmatpush1.msra.mxu0 0.0
        %2753 = vmatprep.subr.mxu0 0.0
        %2754 = vmatpush1.msra.mxu0 0.0
        %2755 = vmatprep.subr.mxu0 0.0
        %2756 = vmatpush1.msra.mxu0 0.0
        %2757 = vmatprep.subr.mxu0 0.0
        %2758 = vmatpush1.msra.mxu0 0.0
        %2759 = vmatprep.subr.mxu0 0.0
        %2760 = vmatpush1.msra.mxu0 0.0
        %2761 = vmatprep.subr.mxu0 0.0
        %2762 = vmatpush1.msra.mxu0 0.0
        %2763 = vmatprep.subr.mxu0 0.0
        %2764 = vmatpush1.msra.mxu0 0.0
        %2765 = vmatprep.subr.mxu0 0.0
        %2766 = vmatpush1.msra.mxu0 0.0
        %2767 = vmatprep.subr.mxu0 0.0
        %2768 = vmatpush1.msra.mxu0 0.0
        %2769 = vmatprep.subr.mxu0 0.0
        %2770 = vmatpush1.msra.mxu0 0.0
        %2771 = vmatprep.subr.mxu0 0.0
        %2772 = vmatpush1.msra.mxu0 0.0
        %2773 = vmatprep.subr.mxu0 0.0
        %2774 = vmatpush1.msra.mxu0 0.0
        %2775 = vmatprep.subr.mxu0 0.0
        %2776 = vmatpush1.msra.mxu0 0.0
        %2777 = vmatprep.subr.mxu0 0.0
        %2778 = vmatpush1.msra.mxu0 0.0
        %2779 = vmatprep.subr.mxu0 0.0
        %2780 = vmatpush1.msra.mxu0 0.0
        %2781 = vmatprep.subr.mxu0 0.0
        %2782 = vmatpush1.msra.mxu0 0.0
        %2783 = vmatprep.subr.mxu0 0.0
        %2784 = vmatpush1.msra.mxu0 0.0
        %2785 = vmatprep.subr.mxu0 0.0
        %2786 = vmatpush1.msra.mxu0 0.0
        %2787 = vmatprep.subr.mxu0 0.0
        %2788 = vmatpush1.msra.mxu0 0.0
        %2789 = vmatprep.subr.mxu0 0.0
        %2790 = vmatpush1.msra.mxu0 0.0
        %2791 = vmatprep.subr.mxu0 0.0
        %2792 = vmatpush1.msra.mxu0 0.0
        %2793 = vmatprep.subr.mxu0 0.0
        %2794 = vmatpush1.msra.mxu0 0.0
        %2795 = vmatprep.subr.mxu0 0.0
        %2796 = vmatpush1.msra.mxu0 0.0
        %2797 = vmatprep.subr.mxu0 0.0
        %2798 = vmatpush1.msra.mxu0 0.0
        %2799 = vmatprep.subr.mxu0 0.0
        %2800 = vmatpush1.msra.mxu0 0.0
        %2801 = vmatprep.subr.mxu0 0.0
        %2802 = vmatpush1.msra.mxu0 0.0
        %2803 = vmatprep.subr.mxu0 0.0
        %2804 = vmatpush1.msra.mxu0 0.0
        %2805 = vmatprep.subr.mxu0 0.0
        %2806 = vmatpush1.msra.mxu0 0.0
        %2807 = vmatprep.mubr.f32.mxu0 0.0
        %2808 = vmatmul.mubr.f32.gmra.mrb[0].mxu0 %v488
        %v2809 = vpop.f32.mrb[0].mxu0
        %v2810 = vadd.f32 %v2727, %v2809
        %v2811 = vpop.f32.mrb[0].mxu0
        %v2812 = vadd.f32 %v2729, %v2811
        %2813 = vmatprep.mubr.f32.mxu0 0.0
        %2814 = vmatmul.mubr.f32.gmra.mrb[0].mxu0 %v491
        %v2815 = vpop.f32.mrb[0].mxu0
        %v2816 = vadd.f32 %v2733, %v2815
        %v2817 = vpop.f32.mrb[0].mxu0
        %v2818 = vadd.f32 %v2735, %v2817
        %2819 = vdwg.mxu0
        %v2820 = vadd.f32 %v2810, %v579
        %v2821 = vadd.f32 %v2812, %v579
        %v2822 = vadd.f32 %v2816, %v584
        %v2823 = vadd.f32 %v2818, %v584
        %vm2824 = vcmp.gt.f32.partialorder %v2820, 0.0
        %vm2825 = vcmp.gt.f32.partialorder %v2821, 0.0
        %vm2826 = vcmp.gt.f32.partialorder %v2822, 0.0
        %vm2827 = vcmp.gt.f32.partialorder %v2823, 0.0
        %v2828 = vmin.f32 %v2820, 0.0
        %v2829 = vmin.f32 %v2821, 0.0
        %v2830 = vmin.f32 %v2822, 0.0
        %v2831 = vmin.f32 %v2823, 0.0
        %v2832 = vmul.f32 %v2828, 1.442695
        %v2833 = vpow.pop %v2832
        %v2834 = vmul.f32 %v2829, 1.442695
        %v2835 = vpow.pop %v2834
        %v2836 = vmul.f32 %v2830, 1.442695
        %v2837 = vpow.pop %v2836
        %v2838 = vmul.f32 %v2831, 1.442695
        %v2839 = vpow.pop %v2838
        %v2840 = vsub.f32 %v2833, 1.0
        %v2841 = vsub.f32 %v2835, 1.0
        %v2842 = vsub.f32 %v2837, 1.0
        %v2843 = vsub.f32 %v2839, 1.0
        %v2844 = vsel %vm2824, %v2820, %v2840
        %v2845 = vsel %vm2825, %v2821, %v2841
        %v2846 = vsel %vm2826, %v2822, %v2842
        %v2847 = vsel %vm2827, %v2823, %v2843
        %v2848 = vmul.f32 %v2844, %v631
        %v2849 = vmul.f32 %v2845, %v629
        %v2850 = vmul.f32 %v2846, %v631
        %v2851 = vmul.f32 %v2847, %v629
        %v2852 = vmul.f32 %v2844, %v654
        %v2853 = vmul.f32 %v2845, %v652
        %v2854 = vmul.f32 %v2846, %v654
        %v2855 = vmul.f32 %v2847, %v652
        %v2856 = vmul.f32 %v2844, %v668
        %v2857 = vmul.f32 %v2845, %v666
        %v2858 = vmul.f32 %v2846, %v668
        %v2859 = vmul.f32 %v2847, %v666
        %v2860 = vmul.f32 %v2844, %v678
        %v2861 = vmul.f32 %v2845, %v682
        %v2862 = vmul.f32 %v2846, %v678
        %v2863 = vmul.f32 %v2847, %v682
        %v2864 = vmul.f32 %v2844, %v692
        %v2865 = vmul.f32 %v2845, %v696
        %v2866 = vmul.f32 %v2846, %v692
        %v2867 = vmul.f32 %v2847, %v696
        %v2868 = vmul.f32 %v2844, %v706
        %v2869 = vmul.f32 %v2845, %v710
        %v2870 = vmul.f32 %v2846, %v706
        %v2871 = vmul.f32 %v2847, %v710
        %2876 = vrot.lane.b32.xlu0 %v2844, 127
        %v2877 = vpop.permute.xlu0 %2876
        %2878 = vrot.lane.b32.xlu0 %v2845, 127
        %v2879 = vpop.permute.xlu0 %2878
        %2880 = vrot.lane.b32.xlu0 %v2846, 127
        %v2881 = vpop.permute.xlu0 %2880
        %2882 = vrot.lane.b32.xlu0 %v2847, 127
        %v2883 = vpop.permute.xlu0 %2882
        %v2884 = vsel %vm667, %v725, %v2877
        %v2885 = vsel %vm667, %v2877, %v2879
        %v2886 = vsel %vm667, %v725, %v2881
        %v2887 = vsel %vm667, %v2881, %v2883
        %2892 = vrot.lane.b32.xlu0 %v2852, 126
        %v2893 = vpop.permute.xlu0 %2892
        %2894 = vrot.lane.b32.xlu0 %v2853, 126
        %v2895 = vpop.permute.xlu0 %2894
        %2896 = vrot.lane.b32.xlu0 %v2854, 126
        %v2897 = vpop.permute.xlu0 %2896
        %2898 = vrot.lane.b32.xlu0 %v2855, 126
        %v2899 = vpop.permute.xlu0 %2898
        %v2900 = vsel %vm753, %v744, %v2893
        %v2901 = vsel %vm753, %v2893, %v2895
        %v2902 = vsel %vm753, %v744, %v2897
        %v2903 = vsel %vm753, %v2897, %v2899
        %2908 = vrot.lane.b32.xlu0 %v2856, 112
        %v2909 = vpop.permute.xlu0 %2908
        %2910 = vrot.lane.b32.xlu0 %v2857, 112
        %v2911 = vpop.permute.xlu0 %2910
        %2912 = vrot.lane.b32.xlu0 %v2858, 112
        %v2913 = vpop.permute.xlu0 %2912
        %2914 = vrot.lane.b32.xlu0 %v2859, 112
        %v2915 = vpop.permute.xlu0 %2914
        %v2916 = vsel %vm773, %v764, %v2909
        %v2917 = vsel %vm773, %v2909, %v2911
        %v2918 = vsel %vm773, %v764, %v2913
        %v2919 = vsel %vm773, %v2913, %v2915
        %2920 = vrot.lane.b32.xlu0 %v2844, 111
        %v2921 = vpop.permute.xlu0 %2920
        %2922 = vrot.lane.b32.xlu0 %v2845, 111
        %v2923 = vpop.permute.xlu0 %2922
        %2924 = vrot.lane.b32.xlu0 %v2846, 111
        %v2925 = vpop.permute.xlu0 %2924
        %2926 = vrot.lane.b32.xlu0 %v2847, 111
        %v2927 = vpop.permute.xlu0 %2926
        %v2928 = vsel %vm630, %v2921, %v2923
        %v2929 = vsel %vm630, %v2925, %v2927
        %2934 = vrot.lane.b32.xlu0 %v2860, 110
        %v2935 = vpop.permute.xlu0 %2934
        %2936 = vrot.lane.b32.xlu0 %v2861, 110
        %v2937 = vpop.permute.xlu0 %2936
        %2938 = vrot.lane.b32.xlu0 %v2862, 110
        %v2939 = vpop.permute.xlu0 %2938
        %2940 = vrot.lane.b32.xlu0 %v2863, 110
        %v2941 = vpop.permute.xlu0 %2940
        %v2942 = vsel %vm803, %v2935, %v2937
        %v2943 = vsel %vm803, %v2937, %v798
        %v2944 = vsel %vm803, %v2939, %v2941
        %v2945 = vsel %vm803, %v2941, %v798
        %2950 = vrot.lane.b32.xlu0 %v2864, 96
        %v2951 = vpop.permute.xlu0 %2950
        %2952 = vrot.lane.b32.xlu0 %v2865, 96
        %v2953 = vpop.permute.xlu0 %2952
        %2954 = vrot.lane.b32.xlu0 %v2866, 96
        %v2955 = vpop.permute.xlu0 %2954
        %2956 = vrot.lane.b32.xlu0 %v2867, 96
        %v2957 = vpop.permute.xlu0 %2956
        %v2958 = vsel %vm823, %v2951, %v2953
        %v2959 = vsel %vm823, %v2953, %v818
        %v2960 = vsel %vm823, %v2955, %v2957
        %v2961 = vsel %vm823, %v2957, %v818
        %2962 = vrot.lane.b32.xlu0 %v2844, 95
        %v2963 = vpop.permute.xlu0 %2962
        %2964 = vrot.lane.b32.xlu0 %v2845, 95
        %v2965 = vpop.permute.xlu0 %2964
        %2966 = vrot.lane.b32.xlu0 %v2846, 95
        %v2967 = vpop.permute.xlu0 %2966
        %2968 = vrot.lane.b32.xlu0 %v2847, 95
        %v2969 = vpop.permute.xlu0 %2968
        %v2970 = vsel %vm838, %v2963, %v2965
        %v2971 = vsel %vm838, %v2965, %v833
        %v2972 = vsel %vm838, %v2967, %v2969
        %v2973 = vsel %vm838, %v2969, %v833
        %2978 = vrot.lane.b32.xlu0 %v2868, 94
        %v2979 = vpop.permute.xlu0 %2978
        %2980 = vrot.lane.b32.xlu0 %v2869, 94
        %v2981 = vpop.permute.xlu0 %2980
        %2982 = vrot.lane.b32.xlu0 %v2870, 94
        %v2983 = vpop.permute.xlu0 %2982
        %2984 = vrot.lane.b32.xlu0 %v2871, 94
        %v2985 = vpop.permute.xlu0 %2984
        %v2986 = vsel %vm858, %v2979, %v2981
        %v2987 = vsel %vm858, %v2981, %v853
        %v2988 = vsel %vm858, %v2983, %v2985
        %v2989 = vsel %vm858, %v2985, %v853
        %2994 = vrot.lane.b32.xlu0 %v2848, 17
        %v2995 = vpop.permute.xlu0 %2994
        %2996 = vrot.lane.b32.xlu0 %v2849, 17
        %v2997 = vpop.permute.xlu0 %2996
        %2998 = vrot.lane.b32.xlu0 %v2850, 17
        %v2999 = vpop.permute.xlu0 %2998
        %3000 = vrot.lane.b32.xlu0 %v2851, 17
        %v3001 = vpop.permute.xlu0 %3000
        %3002 = vrot.lane.b32.xlu0 %v2884, 17
        %v3003 = vpop.permute.xlu0 %3002
        %3004 = vrot.lane.b32.xlu0 %v2885, 17
        %v3005 = vpop.permute.xlu0 %3004
        %3006 = vrot.lane.b32.xlu0 %v2879, 17
        %v3007 = vpop.permute.xlu0 %3006
        %3008 = vrot.lane.b32.xlu0 %v2886, 17
        %v3009 = vpop.permute.xlu0 %3008
        %3010 = vrot.lane.b32.xlu0 %v2887, 17
        %v3011 = vpop.permute.xlu0 %3010
        %3012 = vrot.lane.b32.xlu0 %v2883, 17
        %v3013 = vpop.permute.xlu0 %3012
        %3014 = vrot.lane.b32.xlu0 %v2900, 17
        %v3015 = vpop.permute.xlu0 %3014
        %3016 = vrot.lane.b32.xlu0 %v2901, 17
        %v3017 = vpop.permute.xlu0 %3016
        %3018 = vrot.lane.b32.xlu0 %v2895, 17
        %v3019 = vpop.permute.xlu0 %3018
        %3020 = vrot.lane.b32.xlu0 %v2902, 17
        %v3021 = vpop.permute.xlu0 %3020
        %3022 = vrot.lane.b32.xlu0 %v2903, 17
        %v3023 = vpop.permute.xlu0 %3022
        %3024 = vrot.lane.b32.xlu0 %v2899, 17
        %v3025 = vpop.permute.xlu0 %3024
        %3026 = vrot.lane.b32.xlu0 %v2916, 17
        %v3027 = vpop.permute.xlu0 %3026
        %3028 = vrot.lane.b32.xlu0 %v2917, 17
        %v3029 = vpop.permute.xlu0 %3028
        %3030 = vrot.lane.b32.xlu0 %v2911, 17
        %v3031 = vpop.permute.xlu0 %3030
        %3032 = vrot.lane.b32.xlu0 %v2918, 17
        %v3033 = vpop.permute.xlu0 %3032
        %3034 = vrot.lane.b32.xlu0 %v2919, 17
        %v3035 = vpop.permute.xlu0 %3034
        %3036 = vrot.lane.b32.xlu0 %v2915, 17
        %v3037 = vpop.permute.xlu0 %3036
        %3038 = vrot.lane.b32.xlu0 %v2921, 17
        %v3039 = vpop.permute.xlu0 %3038
        %3040 = vrot.lane.b32.xlu0 %v2928, 17
        %v3041 = vpop.permute.xlu0 %3040
        %3042 = vrot.lane.b32.xlu0 %v2923, 17
        %v3043 = vpop.permute.xlu0 %3042
        %3044 = vrot.lane.b32.xlu0 %v2925, 17
        %v3045 = vpop.permute.xlu0 %3044
        %3046 = vrot.lane.b32.xlu0 %v2929, 17
        %v3047 = vpop.permute.xlu0 %3046
        %3048 = vrot.lane.b32.xlu0 %v2927, 17
        %v3049 = vpop.permute.xlu0 %3048
        %3050 = vrot.lane.b32.xlu0 %v2935, 17
        %v3051 = vpop.permute.xlu0 %3050
        %3052 = vrot.lane.b32.xlu0 %v2942, 17
        %v3053 = vpop.permute.xlu0 %3052
        %3054 = vrot.lane.b32.xlu0 %v2943, 17
        %v3055 = vpop.permute.xlu0 %3054
        %3056 = vrot.lane.b32.xlu0 %v2939, 17
        %v3057 = vpop.permute.xlu0 %3056
        %3058 = vrot.lane.b32.xlu0 %v2944, 17
        %v3059 = vpop.permute.xlu0 %3058
        %3060 = vrot.lane.b32.xlu0 %v2945, 17
        %v3061 = vpop.permute.xlu0 %3060
        %3062 = vrot.lane.b32.xlu0 %v2951, 17
        %v3063 = vpop.permute.xlu0 %3062
        %3064 = vrot.lane.b32.xlu0 %v2958, 17
        %v3065 = vpop.permute.xlu0 %3064
        %3066 = vrot.lane.b32.xlu0 %v2959, 17
        %v3067 = vpop.permute.xlu0 %3066
        %3068 = vrot.lane.b32.xlu0 %v2955, 17
        %v3069 = vpop.permute.xlu0 %3068
        %3070 = vrot.lane.b32.xlu0 %v2960, 17
        %v3071 = vpop.permute.xlu0 %3070
        %3072 = vrot.lane.b32.xlu0 %v2961, 17
        %v3073 = vpop.permute.xlu0 %3072
        %3074 = vrot.lane.b32.xlu0 %v2963, 17
        %v3075 = vpop.permute.xlu0 %3074
        %3076 = vrot.lane.b32.xlu0 %v2970, 17
        %v3077 = vpop.permute.xlu0 %3076
        %3078 = vrot.lane.b32.xlu0 %v2971, 17
        %v3079 = vpop.permute.xlu0 %3078
        %3080 = vrot.lane.b32.xlu0 %v2967, 17
        %v3081 = vpop.permute.xlu0 %3080
        %3082 = vrot.lane.b32.xlu0 %v2972, 17
        %v3083 = vpop.permute.xlu0 %3082
        %3084 = vrot.lane.b32.xlu0 %v2973, 17
        %v3085 = vpop.permute.xlu0 %3084
        %3086 = vrot.lane.b32.xlu0 %v2979, 17
        %v3087 = vpop.permute.xlu0 %3086
        %3088 = vrot.lane.b32.xlu0 %v2986, 17
        %v3089 = vpop.permute.xlu0 %3088
        %3090 = vrot.lane.b32.xlu0 %v2987, 17
        %v3091 = vpop.permute.xlu0 %3090
        %3092 = vrot.lane.b32.xlu0 %v2983, 17
        %v3093 = vpop.permute.xlu0 %3092
        %3094 = vrot.lane.b32.xlu0 %v2988, 17
        %v3095 = vpop.permute.xlu0 %3094
        %3096 = vrot.lane.b32.xlu0 %v2989, 17
        %v3097 = vpop.permute.xlu0 %3096
        %v3098 = vsel %vm709, %v885, %v2995
        %v3099 = vsel %vm709, %v2995, %v2997
        %v3100 = vsel %vm709, %v885, %v2999
        %v3101 = vsel %vm709, %v2999, %v3001
        %v3102 = vsel %vm709, %v3003, %v3005
        %v3103 = vsel %vm709, %v3005, %v3007
        %v3104 = vsel %vm709, %v3009, %v3011
        %v3105 = vsel %vm709, %v3011, %v3013
        %v3106 = vsel %vm709, %v3015, %v3017
        %v3107 = vsel %vm709, %v3017, %v3019
        %v3108 = vsel %vm709, %v3021, %v3023
        %v3109 = vsel %vm709, %v3023, %v3025
        %v3110 = vsel %vm709, %v3027, %v3029
        %v3111 = vsel %vm709, %v3029, %v3031
        %v3112 = vsel %vm709, %v3033, %v3035
        %v3113 = vsel %vm709, %v3035, %v3037
        %v3114 = vsel %vm709, %v3039, %v3041
        %v3115 = vsel %vm709, %v3041, %v3043
        %v3116 = vsel %vm709, %v3045, %v3047
        %v3117 = vsel %vm709, %v3047, %v3049
        %v3118 = vsel %vm709, %v3051, %v3053
        %v3119 = vsel %vm709, %v3053, %v3055
        %v3120 = vsel %vm709, %v3057, %v3059
        %v3121 = vsel %vm709, %v3059, %v3061
        %v3122 = vsel %vm709, %v3063, %v3065
        %v3123 = vsel %vm709, %v3065, %v3067
        %v3124 = vsel %vm709, %v3069, %v3071
        %v3125 = vsel %vm709, %v3071, %v3073
        %v3126 = vsel %vm709, %v3075, %v3077
        %v3127 = vsel %vm709, %v3077, %v3079
        %v3128 = vsel %vm709, %v3081, %v3083
        %v3129 = vsel %vm709, %v3083, %v3085
        %v3130 = vsel %vm709, %v3087, %v3089
        %v3131 = vsel %vm709, %v3089, %v3091
        %v3132 = vsel %vm709, %v3093, %v3095
        %v3133 = vsel %vm709, %v3095, %v3097
        %3170 = vmatprep.subr.mxu0 %v3099
        %3171 = vmatpush1.msra.mxu0 %v3098
        %3172 = vmatprep.subr.mxu0 %v3101
        %3173 = vmatpush1.msra.mxu0 %v3100
        %3174 = vmatprep.subr.mxu0 %v3103
        %3175 = vmatpush1.msra.mxu0 %v3102
        %3176 = vmatprep.subr.mxu0 %v3105
        %3177 = vmatpush1.msra.mxu0 %v3104
        %3178 = vmatprep.subr.mxu0 %v3107
        %3179 = vmatpush1.msra.mxu0 %v3106
        %3180 = vmatprep.subr.mxu0 %v3109
        %3181 = vmatpush1.msra.mxu0 %v3108
        %3182 = vmatprep.subr.mxu0 %v3111
        %3183 = vmatpush1.msra.mxu0 %v3110
        %3184 = vmatprep.subr.mxu0 %v3113
        %3185 = vmatpush1.msra.mxu0 %v3112
        %3186 = vmatprep.subr.mxu0 %v3115
        %3187 = vmatpush1.msra.mxu0 %v3114
        %3188 = vmatprep.subr.mxu0 %v3117
        %3189 = vmatpush1.msra.mxu0 %v3116
        %3190 = vmatprep.subr.mxu0 %v3119
        %3191 = vmatpush1.msra.mxu0 %v3118
        %3192 = vmatprep.subr.mxu0 %v3121
        %3193 = vmatpush1.msra.mxu0 %v3120
        %3194 = vmatprep.subr.mxu0 %v3123
        %3195 = vmatpush1.msra.mxu0 %v3122
        %3196 = vmatprep.subr.mxu0 %v3125
        %3197 = vmatpush1.msra.mxu0 %v3124
        %3198 = vmatprep.subr.mxu0 %v3127
        %3199 = vmatpush1.msra.mxu0 %v3126
        %3200 = vmatprep.subr.mxu0 %v3129
        %3201 = vmatpush1.msra.mxu0 %v3128
        %3202 = vmatprep.subr.mxu0 %v3131
        %3203 = vmatpush1.msra.mxu0 %v3130
        %3204 = vmatprep.subr.mxu0 %v3133
        %3205 = vmatpush1.msra.mxu0 %v3132
        %3206 = vmatprep.subr.mxu0 0.0
        %3207 = vmatpush1.msra.mxu0 0.0
        %3208 = vmatprep.subr.mxu0 0.0
        %3209 = vmatpush1.msra.mxu0 0.0
        %3210 = vmatprep.subr.mxu0 0.0
        %3211 = vmatpush1.msra.mxu0 0.0
        %3212 = vmatprep.subr.mxu0 0.0
        %3213 = vmatpush1.msra.mxu0 0.0
        %3214 = vmatprep.subr.mxu0 0.0
        %3215 = vmatpush1.msra.mxu0 0.0
        %3216 = vmatprep.subr.mxu0 0.0
        %3217 = vmatpush1.msra.mxu0 0.0
        %3218 = vmatprep.subr.mxu0 0.0
        %3219 = vmatpush1.msra.mxu0 0.0
        %3220 = vmatprep.subr.mxu0 0.0
        %3221 = vmatpush1.msra.mxu0 0.0
        %3222 = vmatprep.subr.mxu0 0.0
        %3223 = vmatpush1.msra.mxu0 0.0
        %3224 = vmatprep.subr.mxu0 0.0
        %3225 = vmatpush1.msra.mxu0 0.0
        %3226 = vmatprep.subr.mxu0 0.0
        %3227 = vmatpush1.msra.mxu0 0.0
        %3228 = vmatprep.subr.mxu0 0.0
        %3229 = vmatpush1.msra.mxu0 0.0
        %3230 = vmatprep.subr.mxu0 0.0
        %3231 = vmatpush1.msra.mxu0 0.0
        %3232 = vmatprep.subr.mxu0 0.0
        %3233 = vmatpush1.msra.mxu0 0.0
        %3234 = vmatprep.mubr.f32.mxu0 %v1064
        %3235 = vmatmul.mubr.f32.gmra.mrb[0].mxu0 %v863
        %v3236 = vpop.f32.mrb[0].mxu0
        %v3237 = vadd.f32 %v872, %v3236
        %v3238 = vpop.f32.mrb[0].mxu0
        %v3239 = vadd.f32 %v872, %v3238
        %3240 = vmatprep.mubr.f32.mxu0 %v1067
        %3241 = vmatmul.mubr.f32.gmra.mrb[0].mxu0 %v865
        %v3242 = vpop.f32.mrb[0].mxu0
        %v3243 = vadd.f32 %v877, %v3242
        %v3244 = vpop.f32.mrb[0].mxu0
        %v3245 = vadd.f32 %v877, %v3244
        %3246 = vdwg.mxu0
        %vm3247 = vcmp.gt.f32.partialorder %v3237, 0.0
        %vm3248 = vcmp.gt.f32.partialorder %v3239, 0.0
        %vm3249 = vcmp.gt.f32.partialorder %v3243, 0.0
        %vm3250 = vcmp.gt.f32.partialorder %v3245, 0.0
        %v3251 = vmin.f32 %v3237, 0.0
        %v3252 = vmin.f32 %v3239, 0.0
        %v3253 = vmin.f32 %v3243, 0.0
        %v3254 = vmin.f32 %v3245, 0.0
        %v3255 = vmul.f32 %v3251, 1.442695
        %v3256 = vpow.pop %v3255
        %v3257 = vmul.f32 %v3252, 1.442695
        %v3258 = vpow.pop %v3257
        %v3259 = vmul.f32 %v3253, 1.442695
        %v3260 = vpow.pop %v3259
        %v3261 = vmul.f32 %v3254, 1.442695
        %v3262 = vpow.pop %v3261
        %v3263 = vsub.f32 %v3256, 1.0
        %v3264 = vsub.f32 %v3258, 1.0
        %v3265 = vsub.f32 %v3260, 1.0
        %v3266 = vsub.f32 %v3262, 1.0
        %v3267 = vsel %vm3247, %v3237, %v3263
        %v3268 = vsel %vm3248, %v3239, %v3264
        %v3269 = vsel %vm3249, %v3243, %v3265
        %v3270 = vsel %vm3250, %v3245, %v3266
        %3271 = vmatprep.subr.mxu0 %v3268
        %3272 = vmatpush1.msra.mxu0 %v3267
        %3273 = vmatprep.subr.mxu0 %v3270
        %3274 = vmatpush1.msra.mxu0 %v3269
        %3275 = vmatprep.subr.mxu0 0.0
        %3276 = vmatpush1.msra.mxu0 0.0
        %3277 = vmatprep.subr.mxu0 0.0
        %3278 = vmatpush1.msra.mxu0 0.0
        %3279 = vmatprep.subr.mxu0 0.0
        %3280 = vmatpush1.msra.mxu0 0.0
        %3281 = vmatprep.subr.mxu0 0.0
        %3282 = vmatpush1.msra.mxu0 0.0
        %3283 = vmatprep.subr.mxu0 0.0
        %3284 = vmatpush1.msra.mxu0 0.0
        %3285 = vmatprep.subr.mxu0 0.0
        %3286 = vmatpush1.msra.mxu0 0.0
        %3287 = vmatprep.subr.mxu0 0.0
        %3288 = vmatpush1.msra.mxu0 0.0
        %3289 = vmatprep.subr.mxu0 0.0
        %3290 = vmatpush1.msra.mxu0 0.0
        %3291 = vmatprep.subr.mxu0 0.0
        %3292 = vmatpush1.msra.mxu0 0.0
        %3293 = vmatprep.subr.mxu0 0.0
        %3294 = vmatpush1.msra.mxu0 0.0
        %3295 = vmatprep.subr.mxu0 0.0
        %3296 = vmatpush1.msra.mxu0 0.0
        %3297 = vmatprep.subr.mxu0 0.0
        %3298 = vmatpush1.msra.mxu0 0.0
        %3299 = vmatprep.subr.mxu0 0.0
        %3300 = vmatpush1.msra.mxu0 0.0
        %3301 = vmatprep.subr.mxu0 0.0
        %3302 = vmatpush1.msra.mxu0 0.0
        %3303 = vmatprep.subr.mxu0 0.0
        %3304 = vmatpush1.msra.mxu0 0.0
        %3305 = vmatprep.subr.mxu0 0.0
        %3306 = vmatpush1.msra.mxu0 0.0
        %3307 = vmatprep.subr.mxu0 0.0
        %3308 = vmatpush1.msra.mxu0 0.0
        %3309 = vmatprep.subr.mxu0 0.0
        %3310 = vmatpush1.msra.mxu0 0.0
        %3311 = vmatprep.subr.mxu0 0.0
        %3312 = vmatpush1.msra.mxu0 0.0
        %3313 = vmatprep.subr.mxu0 0.0
        %3314 = vmatpush1.msra.mxu0 0.0
        %3315 = vmatprep.subr.mxu0 0.0
        %3316 = vmatpush1.msra.mxu0 0.0
        %3317 = vmatprep.subr.mxu0 0.0
        %3318 = vmatpush1.msra.mxu0 0.0
        %3319 = vmatprep.subr.mxu0 0.0
        %3320 = vmatpush1.msra.mxu0 0.0
        %3321 = vmatprep.subr.mxu0 0.0
        %3322 = vmatpush1.msra.mxu0 0.0
        %3323 = vmatprep.subr.mxu0 0.0
        %3324 = vmatpush1.msra.mxu0 0.0
        %3325 = vmatprep.subr.mxu0 0.0
        %3326 = vmatpush1.msra.mxu0 0.0
        %3327 = vmatprep.subr.mxu0 0.0
        %3328 = vmatpush1.msra.mxu0 0.0
        %3329 = vmatprep.subr.mxu0 0.0
        %3330 = vmatpush1.msra.mxu0 0.0
        %3331 = vmatprep.subr.mxu0 0.0
        %3332 = vmatpush1.msra.mxu0 0.0
        %3333 = vmatprep.subr.mxu0 0.0
        %3334 = vmatpush1.msra.mxu0 0.0
        %3335 = vmatprep.mubr.f32.mxu0 0.0
        %3336 = vmatmul.mubr.f32.gmra.mrb[0].mxu0 %v1178
        %v3337 = vpop.f32.mrb[0].mxu0
        %v3338 = vadd.f32 %v1175, %v3337
        %v3339 = vpop.f32.mrb[0].mxu0
        %v3340 = vadd.f32 %v1175, %v3339
        %3341 = vdwg.mxu0
        %v3342 = vmul.f32 %v1259, 2.0
        %v3343 = vadd.f32 %v389, %v3342
        %v3344 = vmul.f32 %v1956, 2.0
        %v3345 = vadd.f32 %v3343, %v3344
        %v3346 = vadd.f32 %v3345, %v2653
        %v3347 = vmul.f32 %v3346, 0.020833334
        %v3348 = vadd.f32 %v388, %v3347
        %v3349 = vmul.f32 %v1944, 2.0
        %v3350 = vmul.f32 %v1946, 2.0
        %v3351 = vadd.f32 %v1247, %v3349
        %v3352 = vadd.f32 %v1249, %v3350
        %v3353 = vmul.f32 %v2641, 2.0
        %v3354 = vmul.f32 %v2643, 2.0
        %v3355 = vadd.f32 %v3351, %v3353
        %v3356 = vadd.f32 %v3352, %v3354
        %v3357 = vadd.f32 %v3355, %v3338
        %v3358 = vadd.f32 %v3356, %v3340
        %v3359 = vmul.f32 %v3357, 0.020833334
        %v3360 = vmul.f32 %v3358, 0.020833334
        %v3363 = vcombine.low %v3359, %v3360
        %v3365 = vadd.f32 %v389, %v3363
      $region65: #{_lambda_.1} parent=59 // loop_footer
        %s387 = sadd.s32 1, %s383
      $region66: #{_lambda_.1} parent=59 // loop_footer_branch
        %382 = sbr.rel target = $region62
      $region67: #{_lambda_.1} parent=59 // loop_exit
        _
      %3366 = vst [vmem:[%s379] sm:$0xff] %v388
      %p3367 = scmp.lt.s32.totalorder %s21, 1
      %s3368 = scalar_select %p3367, %s21, 1
      %s3369 = smul.addr %s3368, 2
      %s3370 = smul.addr %s3369, 4
      %s3371 = scalar_lea.vmem %s10, %s3370
      // Predicated region
      $region68: #{_lambda_.1} parent=59 // pred_check
        %p3372 = pneg %p259
      $region69: #{_lambda_.1} parent=59 // pred_check_branch
        %3374 = sbr.rel (%p3372) target = $region71
      $region70: #{_lambda_.1} parent=59 // pred_region
        _
      $region71: #{_lambda_.1} parent=59 // pred_fallthru
        _
    $region60: #{_lambda_.1} parent=5 // pred_fallthru
      _
    %p3375 = scmp.le.s32.totalorder 2, %s16
    // Predicated region
    $region72: #{_lambda_.1} parent=5 // pred_check
      %p3376 = pneg %p3375
    $region73: #{_lambda_.1} parent=5 // pred_check_branch
      %3378 = sbr.rel (%p3376) target = $region75
    $region74: #{_lambda_.1} parent=5 // pred_region
      %s3379 = ssub.s32 %s16, 2
      // Predicated region
      $region76: #{_lambda_.1} parent=74 // pred_check
        %p3380 = pneg %p265
      $region77: #{_lambda_.1} parent=74 // pred_check_branch
        %3382 = sbr.rel (%p3380) target = $region79
      $region78: #{_lambda_.1} parent=74 // pred_region
        %p3383 = scmp.lt.s32.totalorder %s22, 1
        %s3384 = scalar_select %p3383, %s22, 1
        %s3385 = smul.addr %s3384, 2
        %s3386 = smul.addr %s3385, 4
        %s3387 = scalar_lea.vmem %s10, %s3386
      $region79: #{_lambda_.1} parent=74 // pred_fallthru
        _
    $region75: #{_lambda_.1} parent=5 // pred_fallthru
      _
  $region6: #{_lambda_.1} parent=0 // loop_footer
    %s20 = sadd.s32 1, %s16
  $region7: #{_lambda_.1} parent=0 // loop_footer_branch
    %15 = sbr.rel target = $region3
  $region8: #{_lambda_.1} parent=0 // loop_exit
    _

</llo_original>
